<compile_context>
chip_gen: v6e
topology: v6e:2x2x1
jax: 0.10.0
libtpu: 0.0.40
codegen_flags: <defaults>
</compile_context>

<pallas_src>
import functools

import jax
import jax.numpy as jnp
from jax import lax
from jax.experimental import pallas as pl
from jax.experimental.pallas import tpu as pltpu

F32 = jnp.float32
BF16 = jnp.bfloat16


# ------------------------------------------------------------------------------
# Fused kernel: pre-GNN x2, bilinear interact, post-GNN x2, masked-mean +
# LayerNorm + output linear — one grid step == BT batch elements.
# ------------------------------------------------------------------------------
def _fused_kernel(pool_ref, xs_ref, ms_ref, abd_ref,
                  wdd_ref, wp3_ref, vec_ref, wo_ref, bo_ref, wbs_ref,
                  out_ref, *, n_sent, bt):
    N, BT = n_sent, bt
    D = pool_ref.shape[-1]
    R = BT * 2 * N

    abd = abd_ref[...]                   # [R, R] bf16  kron(I_BT, blockdiag(A1,A2))
    xs = xs_ref[...]                     # [R, D] bf16  rows = (batch, [sent1|sent2])
    ms_b = ms_ref[...]                   # [BT, 2N, 1] f32
    vec = vec_ref[...]                   # [13, D] f32 packed vectors

    pre_b1, pre_b2 = vec[0:1], vec[1:2]
    post_b1, post_b2 = vec[2:3], vec[3:4]
    bp, wbcol, wbrow = vec[4:5], vec[5:6], vec[6:7]
    ln_g = jnp.concatenate([vec[7:8], vec[8:9], vec[9:10]], axis=-1)      # [1, 3D]
    ln_b = jnp.concatenate([vec[10:11], vec[11:12], vec[12:13]], axis=-1)

    def gnn(x, w1, b1, w2, b2):
        # GCNConv (node_dim=1): A_norm @ (X @ W) + b, ReLU after each layer
        # (dropout = identity).  bf16 MXU operands, f32 accumulation.
        h = jnp.dot(x.astype(BF16), w1, preferred_element_type=F32)
        h = jnp.maximum(
            jnp.dot(abd, h.astype(BF16), preferred_element_type=F32) + b1, 0.0)
        h = jnp.dot(h.astype(BF16), w2, preferred_element_type=F32)
        return jnp.maximum(
            jnp.dot(abd, h.astype(BF16), preferred_element_type=F32) + b2, 0.0)

    # ---- Net.pre_interact_gnn: both sentences and BT batch elements in one stack
    hs = gnn(xs, wdd_ref[0], pre_b1, wdd_ref[1], pre_b2)                  # [R, D] f32
    hs_b = hs.reshape(BT, 2 * N, D)
    h1, h2 = hs_b[:, :N, :], hs_b[:, N:, :]                               # [BT, N, D]
    m1, m2 = ms_b[:, :N, :], ms_b[:, N:, :]                               # [BT, N, 1]

    # ---- InteractGraphsNet.attn_biaffine (BilinearMatrixAttention, input biases)
    #   attn[b,i,j] = h1_i Wc h2_j^T + wrow.h2_j + h1_i.wcol + s
    # Row bias folded into the core matmul; column bias is a VPU mul + lane sum;
    # scalar bias (corner + attention bias) comes from SMEM.
    t = jnp.dot(hs.astype(BF16), wdd_ref[4], preferred_element_type=F32) + wbrow
    t1 = t.reshape(BT, 2 * N, D)[:, :N, :]                                # [BT, N, D]
    attn = jnp.einsum('bnd,bmd->bnm', t1.astype(BF16), h2.astype(BF16),
                      preferred_element_type=F32)                         # [BT, N, N]
    attn = attn + jnp.sum(h1 * wbcol, axis=-1, keepdims=True) + wbs_ref[0]

    def masked_softmax_nodes(logits, mask):
        # allennlp masked_softmax (memory_efficient=False) over the node axis (=1):
        #   p = softmax(logits*mask, 1); p = p*mask; p = p / (p.sum(1) + 1e-13)
        z = logits * mask
        e = jnp.exp(z - jnp.max(z, axis=1, keepdims=True))
        prob = e / jnp.sum(e, axis=1, keepdims=True)
        prob = prob * mask
        return prob / (jnp.sum(prob, axis=1, keepdims=True) + 1e-13)

    # Direction 1: mask_1 over sentence-1 nodes; attended_1 = attn^T @ h1.
    n1 = masked_softmax_nodes(attn, m1)
    att1 = jnp.einsum('bmn,bnd->bmd',
                      jnp.swapaxes(n1, 1, 2).astype(BF16), h1.astype(BF16),
                      preferred_element_type=F32)                         # [BT, N, D]
    # Direction 2: the reference applies mask_2 along the sentence-1 axis and
    # contracts over sentence 2 (normalized_attn_2.bmm(h_2)).  Kept verbatim —
    # this asymmetry is in the PyTorch model, not a port artifact.
    n2 = masked_softmax_nodes(attn, m2)
    att2 = jnp.einsum('bnm,bmd->bnd', n2.astype(BF16), h2.astype(BF16),
                      preferred_element_type=F32)                         # [BT, N, D]

    # ---- attn_proj (Linear 4D->D), collapsed to ONE matmul:
    #   [h, a, h-a, h*a]@[W0;W1;W2;W3] = [h | a | h*a] @ [W0+W2; W1-W2; W3]
    atts = jnp.concatenate([att2, att1], axis=1).reshape(R, D)            # aligned w/ hs
    hs3 = jnp.concatenate([hs, atts, hs * atts], axis=-1)                 # [R, 3D]
    new_hs = jnp.maximum(
        jnp.dot(hs3.astype(BF16), wp3_ref[...], preferred_element_type=F32) + bp, 0.0)

    # ---- Net.post_interact_gnn (shared weights, same adjacency structure)
    gs = gnn(new_hs, wdd_ref[2], post_b1, wdd_ref[3], post_b2)            # [R, D] f32
    gs_b = gs.reshape(BT, 2 * N, D)
    g1, g2 = gs_b[:, :N, :], gs_b[:, N:, :]

    # ---- SentenceLevelNet head: masked mean + LayerNorm(3D) + output linear
    mean1 = jnp.sum(g1 * m1, axis=1) / jnp.maximum(jnp.sum(m1, axis=1), 1e-13)
    mean2 = jnp.sum(g2 * m2, axis=1) / jnp.maximum(jnp.sum(m2, axis=1), 1e-13)
    cat = jnp.concatenate([pool_ref[:, 0, :], mean1, mean2], axis=-1)     # [BT, 3D]
    mu = jnp.mean(cat, axis=-1, keepdims=True)
    var = jnp.mean(jnp.square(cat - mu), axis=-1, keepdims=True)
    y = (cat - mu) * lax.rsqrt(var + 1e-5) * ln_g + ln_b
    out = jnp.dot(y.astype(BF16), wo_ref[...], preferred_element_type=F32) + bo_ref[...]
    out_ref[:, 0, :] = out


# ------------------------------------------------------------------------------
# Glue (plain JAX): GCN adjacency normalization, parameter init, forward wrapper.
# ------------------------------------------------------------------------------
def build_gcn_adjacency(edge_index, edge_attr, num_nodes):
    # GCNConv gcn_norm: add self loops (weight 1), D^{-1/2} A D^{-1/2}.
    edge_weight = edge_attr.reshape(-1).astype(F32)          # edge_attr.flatten()
    loop = jnp.arange(num_nodes, dtype=edge_index.dtype)
    src = jnp.concatenate([edge_index[0], loop])
    tgt = jnp.concatenate([edge_index[1], loop])
    w = jnp.concatenate([edge_weight, jnp.ones((num_nodes,), F32)])
    deg = jnp.zeros((num_nodes,), F32).at[tgt].add(w)
    dinv = jnp.where(deg > 0, lax.rsqrt(deg), 0.0)
    norm = dinv[src] * w * dinv[tgt]
    return jnp.zeros((num_nodes, num_nodes), F32).at[tgt, src].add(norm)


def init_params(key, d, c):
    ks = jax.random.split(key, 16)

    def w(k, shape, scale=0.1):
        return scale * jax.random.normal(k, shape, F32)

    return {
        # pre-interact GNNNet (shared between sentence 1 and sentence 2)
        "pre_w1": w(ks[0], (d, d)), "pre_b1": w(ks[1], (1, d)),
        "pre_w2": w(ks[2], (d, d)), "pre_b2": w(ks[3], (1, d)),
        # BilinearMatrixAttention(use_input_biases=True):
        #   [h1;1] Wb [h2;1]^T + bias -> core (d,d), col-bias (1,d), row-bias
        #   (1,d), scalar (1,1) = corner + attention bias, folded.
        "wbc": w(ks[4], (d, d)), "wbcol": w(ks[5], (1, d)),
        "wbrow": w(ks[6], (1, d)), "wbs": w(ks[7], (1, 1)),
        # attn_proj: Linear(4d -> d) stored as 4 stacked (d,d) blocks matching
        # the [h, attended, h-attended, h*attended] concat order.
        "wp": w(ks[8], (4, d, d)), "bp": w(ks[9], (1, d)),
        # post-interact GNNNet (shared between sentence 1 and sentence 2)
        "post_w1": w(ks[10], (d, d)), "post_b1": w(ks[11], (1, d)),
        "post_w2": w(ks[12], (d, d)), "post_b2": w(ks[13], (1, d)),
        # LayerNorm(3d) split into three (1,d) segments [pool | mean1 | mean2]
        "ln_g": jnp.ones((3, 1, d), F32), "ln_b": jnp.zeros((3, 1, d), F32),
        # output_probs_linear: Linear(3d -> c), split into three (d,c) blocks
        "out_w": w(ks[14], (3, d, c)), "out_b": w(ks[15], (1, c)),
    }


def _pick_block_batch(batch, n_nodes):
    # Fill ~128 sublanes per grid step (BT*2N rows), but keep >=2 grid steps
    # when the batch allows it so both TensorCores are used on v7x megacore.
    bt = max(1, 128 // (2 * n_nodes))
    bt = min(bt, batch)
    if batch >= 2 * bt:
        return bt
    return max(1, batch // 2) if batch >= 2 else 1


def sentence_level_net_forward(pooler_output, x1, x2, mask1, mask2, a1, a2, p):
    B, N, D = x1.shape
    C = p["out_b"].shape[-1]
    BT = _pick_block_batch(B, N)
    Bp = ((B + BT - 1) // BT) * BT
    pad = Bp - B
    if pad:  # pad batch to a multiple of BT (all-zero rows/masks; sliced off below)
        pooler_output = jnp.pad(pooler_output, ((0, pad), (0, 0)))
        x1 = jnp.pad(x1, ((0, pad), (0, 0), (0, 0)))
        x2 = jnp.pad(x2, ((0, pad), (0, 0), (0, 0)))
        mask1 = jnp.pad(mask1, ((0, pad), (0, 0)))
        mask2 = jnp.pad(mask2, ((0, pad), (0, 0)))

    m1 = mask1.astype(F32)[..., None]
    m2 = mask2.astype(F32)[..., None]
    ms = jnp.concatenate([m1, m2], axis=1)                      # [Bp, 2N, 1] f32
    xs = jnp.concatenate([x1, x2], axis=1).astype(BF16)         # bf16 MXU operands
    xs = xs.reshape(Bp * 2 * N, D)                               # flat row stack
    pool = pooler_output.astype(F32).reshape(Bp, 1, D)

    # Shared, normalized GCN adjacency: block-diag over sentences, kron over the
    # BT batch elements of one grid step -> gnn() stays two plain 2-D matmuls.
    abd = (jnp.zeros((2 * N, 2 * N), F32)
           .at[:N, :N].set(a1).at[N:, N:].set(a2))
    abd_big = jnp.kron(jnp.eye(BT, dtype=F32), abd).astype(BF16)  # [BT*2N, BT*2N]

    # Packed parameter stacks (bf16 for MXU operands, f32 for VPU-side vectors).
    w_dd = jnp.stack([p["pre_w1"], p["pre_w2"], p["post_w1"], p["post_w2"],
                      p["wbc"]]).astype(BF16)                     # [5, D, D]
    # Linear(4d->d) collapsed: h@W0 + a@W1 + (h-a)@W2 + (h*a)@W3
    #                        = [h|a|h*a] @ [W0+W2; W1-W2; W3]
    w_p3 = jnp.concatenate([p["wp"][0] + p["wp"][2],
                            p["wp"][1] - p["wp"][2],
                            p["wp"][3]], axis=0).astype(BF16)     # [3D, D]
    vecs = jnp.concatenate([p["pre_b1"], p["pre_b2"], p["post_b1"], p["post_b2"],
                            p["bp"], p["wbcol"], p["wbrow"],
                            p["ln_g"][0], p["ln_g"][1], p["ln_g"][2],
                            p["ln_b"][0], p["ln_b"][1], p["ln_b"][2]],
                           axis=0).astype(F32)                    # [13, D]
    w_out = p["out_w"].reshape(3 * D, C).astype(BF16)             # [3D, C]
    b_out = p["out_b"].astype(F32)                                # [1, C]
    wbs = p["wbs"].reshape(1).astype(F32)                         # SMEM scalar

    R = BT * 2 * N
    rep2 = lambda i: (0, 0)
    rep3 = lambda i: (0, 0, 0)

    out = pl.pallas_call(
        functools.partial(_fused_kernel, n_sent=N, bt=BT),
        out_shape=jax.ShapeDtypeStruct((Bp, 1, C), F32),
        grid=(Bp // BT,),
        in_specs=[
            pl.BlockSpec((BT, 1, D), lambda i: (i, 0, 0)),      # lm pooler_output
            pl.BlockSpec((R, D), lambda i: (i, 0)),             # [x1|x2] row stack
            pl.BlockSpec((BT, 2 * N, 1), lambda i: (i, 0, 0)),  # [m1|m2]
            pl.BlockSpec((R, R), rep2),                         # kron'd adjacency
            pl.BlockSpec((5, D, D), rep3),                      # (D,D) weight stack
            pl.BlockSpec((3 * D, D), rep2),                     # fused Linear4D W
            pl.BlockSpec((13, D), rep2),                        # biases / LN / attn vecs
            pl.BlockSpec((3 * D, C), rep2),                     # output linear W
            pl.BlockSpec((1, C), rep2),                         # output linear b
            pl.BlockSpec(memory_space=pltpu.MemorySpace.SMEM),  # bilinear scalar bias
        ],
        out_specs=pl.BlockSpec((BT, 1, C), lambda i: (i, 0, 0)),
        compiler_params=pltpu.CompilerParams(
            # Batch-block axis is fully independent -> "parallel".
            dimension_semantics=("parallel",)),
    )(pool, xs, ms, abd_big, w_dd, w_p3, vecs, w_out, b_out, wbs)
    return out[:B, 0, :]


# ------------------------------------------------------------------------------
# Pure-JAX f32 reference (mirrors the PyTorch forward) for a tolerance check.
# ------------------------------------------------------------------------------
def _reference_forward(pooler, x1, x2, mask1, mask2, a1, a2, p):
    m1 = mask1.astype(F32)[..., None]
    m2 = mask2.astype(F32)[..., None]

    def gnn(x, a, w1, b1, w2, b2):
        h = jnp.maximum(jnp.einsum('nm,bmd->bnd', a, x @ w1) + b1, 0.0)
        return jnp.maximum(jnp.einsum('nm,bmd->bnd', a, h @ w2) + b2, 0.0)

    h1 = gnn(x1, a1, p["pre_w1"], p["pre_b1"], p["pre_w2"], p["pre_b2"])
    h2 = gnn(x2, a2, p["pre_w1"], p["pre_b1"], p["pre_w2"], p["pre_b2"])

    attn = (jnp.einsum('bnd,de,bme->bnm', h1, p["wbc"], h2)
            + jnp.sum(h1 * p["wbcol"], axis=-1, keepdims=True)
            + jnp.sum(h2 * p["wbrow"], axis=-1)[:, None, :]
            + p["wbs"][0, 0])

    def masked_softmax_dim1(t, mask):
        z = t * mask
        e = jnp.exp(z - jnp.max(z, axis=1, keepdims=True))
        prob = e / jnp.sum(e, axis=1, keepdims=True)
        prob = prob * mask
        return prob / (jnp.sum(prob, axis=1, keepdims=True) + 1e-13)

    n1 = masked_softmax_dim1(attn, m1)
    att1 = jnp.einsum('bnm,bnd->bmd', n1, h1)
    n2 = masked_softmax_dim1(attn, m2)
    att2 = jnp.einsum('bnm,bmd->bnd', n2, h2)

    w4 = jnp.concatenate([p["wp"][0], p["wp"][1], p["wp"][2], p["wp"][3]], axis=0)

    def linear4d(h, a):
        z = jnp.concatenate([h, a, h - a, h * a], axis=-1)
        return jnp.maximum(z @ w4 + p["bp"], 0.0)

    nh1 = linear4d(h1, att2)
    nh2 = linear4d(h2, att1)

    g1 = gnn(nh1, a1, p["post_w1"], p["post_b1"], p["post_w2"], p["post_b2"])
    g2 = gnn(nh2, a2, p["post_w1"], p["post_b1"], p["post_w2"], p["post_b2"])

    mean1 = jnp.sum(g1 * m1, axis=1) / jnp.maximum(jnp.sum(m1, axis=1), 1e-13)
    mean2 = jnp.sum(g2 * m2, axis=1) / jnp.maximum(jnp.sum(m2, axis=1), 1e-13)
    cat = jnp.concatenate([pooler, mean1, mean2], axis=-1)
    mu = jnp.mean(cat, axis=-1, keepdims=True)
    var = jnp.mean(jnp.square(cat - mu), axis=-1, keepdims=True)
    gamma = jnp.concatenate([p["ln_g"][0], p["ln_g"][1], p["ln_g"][2]], axis=-1)
    beta = jnp.concatenate([p["ln_b"][0], p["ln_b"][1], p["ln_b"][2]], axis=-1)
    y = (cat - mu) / jnp.sqrt(var + 1e-5) * gamma + beta
    return y @ p["out_w"].reshape(-1, p["out_w"].shape[-1]) + p["out_b"]


if __name__ == "__main__":
    B, N, D, C, E = 16, 8, 32, 3, 12        # BT=8 -> 128-row stacks, grid of 2
    key = jax.random.PRNGKey(0)
    k_inp, k_par, k_g1, k_g2, k_len = jax.random.split(key, 5)

    ki = jax.random.split(k_inp, 3)
    pooler = jax.random.normal(ki[0], (B, D), F32)          # lm pooler_output
    x1 = jax.random.normal(ki[1], (B, N, D), F32)           # word features, sent 1
    x2 = jax.random.normal(ki[2], (B, N, D), F32)           # word features, sent 2
    len1 = jax.random.randint(jax.random.fold_in(k_len, 0), (B,), 1, N + 1)
    len2 = jax.random.randint(jax.random.fold_in(k_len, 1), (B,), 1, N + 1)
    mask1 = (jnp.arange(N)[None, :] < len1[:, None]).astype(F32)
    mask2 = (jnp.arange(N)[None, :] < len2[:, None]).astype(F32)

    kg1 = jax.random.split(k_g1, 2)
    kg2 = jax.random.split(k_g2, 2)
    ei1 = jax.random.randint(kg1[0], (2, E), 0, N)
    ea1 = jax.random.uniform(kg1[1], (E, 1), F32, 0.5, 1.5)
    ei2 = jax.random.randint(kg2[0], (2, E), 0, N)
    ea2 = jax.random.uniform(kg2[1], (E, 1), F32, 0.5, 1.5)
    a1 = build_gcn_adjacency(ei1, ea1, N)
    a2 = build_gcn_adjacency(ei2, ea2, N)

    params = init_params(k_par, D, C)

    fwd = jax.jit(sentence_level_net_forward)
    out = jax.block_until_ready(fwd(pooler, x1, x2, mask1, mask2, a1, a2, params))

    assert out.shape == (B, C), out.shape
    assert bool(jnp.all(jnp.isfinite(out)))

    # Loose tolerance: kernel uses bf16 MXU operands (f32 accumulation).
    ref = _reference_forward(pooler, x1, x2, mask1, mask2, a1, a2, params)
    err = float(jnp.max(jnp.abs(out - ref)))
    assert err < 0.25, f"max |kernel - f32 reference| too large: {err}"
    print("KERNEL_OK")
</pallas_src>

<mosaic_0001>
module attributes {stable_mosaic.version = 11 : i64} {
  func.func @_fused_kernel(%arg0: i32, %arg1: memref<8x1x32xf32, #tpu.memory_space<vmem>>, %arg2: memref<128x32xbf16, #tpu.memory_space<vmem>>, %arg3: memref<8x16x1xf32, #tpu.memory_space<vmem>>, %arg4: memref<128x128xbf16, #tpu.memory_space<vmem>>, %arg5: memref<5x32x32xbf16, #tpu.memory_space<vmem>>, %arg6: memref<96x32xbf16, #tpu.memory_space<vmem>>, %arg7: memref<13x32xf32, #tpu.memory_space<vmem>>, %arg8: memref<96x3xbf16, #tpu.memory_space<vmem>>, %arg9: memref<1x3xf32, #tpu.memory_space<vmem>>, %arg10: memref<1xf32, #tpu.memory_space<smem>>, %arg11: memref<8x1x3xf32, #tpu.memory_space<vmem>>) attributes {dimension_semantics = [#tpu.dimension_semantics<parallel>], iteration_bounds = array<i64: 2>, scalar_prefetch = 0 : i64, scratch_operands = 0 : i64, tpu.core_type = #tpu.core_type<tc>, window_params = [{transform_indices = @transform_0, window_bounds = array<i64: 8, 1, 32>}, {transform_indices = @transform_1, window_bounds = array<i64: 128, 32>}, {transform_indices = @transform_2, window_bounds = array<i64: 8, 16, 1>}, {pipeline_mode = #tpu.pipeline_mode<synchronous>, transform_indices = @transform_3, window_bounds = array<i64: 128, 128>}, {pipeline_mode = #tpu.pipeline_mode<synchronous>, transform_indices = @transform_4, window_bounds = array<i64: 5, 32, 32>}, {pipeline_mode = #tpu.pipeline_mode<synchronous>, transform_indices = @transform_5, window_bounds = array<i64: 96, 32>}, {pipeline_mode = #tpu.pipeline_mode<synchronous>, transform_indices = @transform_6, window_bounds = array<i64: 13, 32>}, {pipeline_mode = #tpu.pipeline_mode<synchronous>, transform_indices = @transform_7, window_bounds = array<i64: 96, 3>}, {pipeline_mode = #tpu.pipeline_mode<synchronous>, transform_indices = @transform_8, window_bounds = array<i64: 1, 3>}, {transform_indices = @transform_9, window_bounds = array<i64: 1>}, {transform_indices = @transform_10, window_bounds = array<i64: 8, 1, 3>}]} {
    %c0 = arith.constant 0 : index
    %c0_0 = arith.constant 0 : index
    %0 = vector.load %arg4[%c0, %c0_0] : memref<128x128xbf16, #tpu.memory_space<vmem>>, vector<128x128xbf16>
    %c0_1 = arith.constant 0 : index
    %c0_2 = arith.constant 0 : index
    %1 = vector.load %arg2[%c0_1, %c0_2] : memref<128x32xbf16, #tpu.memory_space<vmem>>, vector<128x32xbf16>
    %c0_3 = arith.constant 0 : index
    %c0_4 = arith.constant 0 : index
    %c0_5 = arith.constant 0 : index
    %2 = vector.load %arg3[%c0_3, %c0_4, %c0_5] : memref<8x16x1xf32, #tpu.memory_space<vmem>>, vector<8x16x1xf32>
    %c0_6 = arith.constant 0 : index
    %c0_7 = arith.constant 0 : index
    %3 = vector.load %arg7[%c0_6, %c0_7] : memref<13x32xf32, #tpu.memory_space<vmem>>, vector<13x32xf32>
    %4 = vector.extract_strided_slice %3 {offsets = [0, 0], sizes = [1, 32], strides = [1, 1]} : vector<13x32xf32> to vector<1x32xf32>
    %5 = vector.extract_strided_slice %3 {offsets = [1, 0], sizes = [1, 32], strides = [1, 1]} : vector<13x32xf32> to vector<1x32xf32>
    %6 = vector.extract_strided_slice %3 {offsets = [2, 0], sizes = [1, 32], strides = [1, 1]} : vector<13x32xf32> to vector<1x32xf32>
    %7 = vector.extract_strided_slice %3 {offsets = [3, 0], sizes = [1, 32], strides = [1, 1]} : vector<13x32xf32> to vector<1x32xf32>
    %8 = vector.extract_strided_slice %3 {offsets = [4, 0], sizes = [1, 32], strides = [1, 1]} : vector<13x32xf32> to vector<1x32xf32>
    %9 = vector.extract_strided_slice %3 {offsets = [5, 0], sizes = [1, 32], strides = [1, 1]} : vector<13x32xf32> to vector<1x32xf32>
    %10 = vector.extract_strided_slice %3 {offsets = [6, 0], sizes = [1, 32], strides = [1, 1]} : vector<13x32xf32> to vector<1x32xf32>
    %11 = vector.extract_strided_slice %3 {offsets = [7, 0], sizes = [1, 32], strides = [1, 1]} : vector<13x32xf32> to vector<1x32xf32>
    %12 = vector.extract_strided_slice %3 {offsets = [8, 0], sizes = [1, 32], strides = [1, 1]} : vector<13x32xf32> to vector<1x32xf32>
    %13 = vector.extract_strided_slice %3 {offsets = [9, 0], sizes = [1, 32], strides = [1, 1]} : vector<13x32xf32> to vector<1x32xf32>
    %14 = tpu.concatenate %11, %12, %13 in 1 : vector<1x32xf32>, vector<1x32xf32>, vector<1x32xf32> -> vector<1x96xf32>
    %15 = vector.extract_strided_slice %3 {offsets = [10, 0], sizes = [1, 32], strides = [1, 1]} : vector<13x32xf32> to vector<1x32xf32>
    %16 = vector.extract_strided_slice %3 {offsets = [11, 0], sizes = [1, 32], strides = [1, 1]} : vector<13x32xf32> to vector<1x32xf32>
    %17 = vector.extract_strided_slice %3 {offsets = [12, 0], sizes = [1, 32], strides = [1, 1]} : vector<13x32xf32> to vector<1x32xf32>
    %18 = tpu.concatenate %15, %16, %17 in 1 : vector<1x32xf32>, vector<1x32xf32>, vector<1x32xf32> -> vector<1x96xf32>
    %c0_8 = arith.constant 0 : index
    %c0_9 = arith.constant 0 : index
    %c0_10 = arith.constant 0 : index
    %19 = vector.load %arg5[%c0_8, %c0_9, %c0_10] : memref<5x32x32xbf16, #tpu.memory_space<vmem>>, vector<1x32x32xbf16>
    %20 = vector.shape_cast %19 : vector<1x32x32xbf16> to vector<32x32xbf16>
    %c1 = arith.constant 1 : index
    %c0_11 = arith.constant 0 : index
    %c0_12 = arith.constant 0 : index
    %21 = vector.load %arg5[%c1, %c0_11, %c0_12] : memref<5x32x32xbf16, #tpu.memory_space<vmem>>, vector<1x32x32xbf16>
    %22 = vector.shape_cast %21 : vector<1x32x32xbf16> to vector<32x32xbf16>
    %cst = arith.constant dense<0.000000e+00> : vector<128x32xf32>
    %23 = tpu.matmul %1, %20, %cst {dimension_numbers = #tpu.dot_dimension_numbers<[1], [0], [0], [1], [0, 0, 1, 1], [], []>} : vector<128x32xbf16>, vector<32x32xbf16>, vector<128x32xf32> -> vector<128x32xf32>
    %24 = arith.truncf %23 : vector<128x32xf32> to vector<128x32xbf16>
    %cst_13 = arith.constant dense<0.000000e+00> : vector<128x32xf32>
    %25 = tpu.matmul %0, %24, %cst_13 {dimension_numbers = #tpu.dot_dimension_numbers<[1], [0], [0], [1], [0, 0, 1, 1], [], []>} : vector<128x128xbf16>, vector<128x32xbf16>, vector<128x32xf32> -> vector<128x32xf32>
    %26 = vector.broadcast %4 : vector<1x32xf32> to vector<128x32xf32>
    %27 = arith.addf %25, %26 : vector<128x32xf32>
    %cst_14 = arith.constant 0.000000e+00 : f32
    %28 = vector.broadcast %cst_14 : f32 to vector<128x32xf32>
    %29 = arith.maximumf %27, %28 : vector<128x32xf32>
    %30 = arith.truncf %29 : vector<128x32xf32> to vector<128x32xbf16>
    %cst_15 = arith.constant dense<0.000000e+00> : vector<128x32xf32>
    %31 = tpu.matmul %30, %22, %cst_15 {dimension_numbers = #tpu.dot_dimension_numbers<[1], [0], [0], [1], [0, 0, 1, 1], [], []>} : vector<128x32xbf16>, vector<32x32xbf16>, vector<128x32xf32> -> vector<128x32xf32>
    %32 = arith.truncf %31 : vector<128x32xf32> to vector<128x32xbf16>
    %cst_16 = arith.constant dense<0.000000e+00> : vector<128x32xf32>
    %33 = tpu.matmul %0, %32, %cst_16 {dimension_numbers = #tpu.dot_dimension_numbers<[1], [0], [0], [1], [0, 0, 1, 1], [], []>} : vector<128x128xbf16>, vector<128x32xbf16>, vector<128x32xf32> -> vector<128x32xf32>
    %34 = vector.broadcast %5 : vector<1x32xf32> to vector<128x32xf32>
    %35 = arith.addf %33, %34 : vector<128x32xf32>
    %cst_17 = arith.constant 0.000000e+00 : f32
    %36 = vector.broadcast %cst_17 : f32 to vector<128x32xf32>
    %37 = arith.maximumf %35, %36 : vector<128x32xf32>
    %38 = vector.shape_cast %37 : vector<128x32xf32> to vector<8x16x32xf32>
    %39 = vector.extract_strided_slice %38 {offsets = [0, 0, 0], sizes = [8, 8, 32], strides = [1, 1, 1]} : vector<8x16x32xf32> to vector<8x8x32xf32>
    %40 = vector.extract_strided_slice %38 {offsets = [0, 8, 0], sizes = [8, 8, 32], strides = [1, 1, 1]} : vector<8x16x32xf32> to vector<8x8x32xf32>
    %41 = vector.extract_strided_slice %2 {offsets = [0, 0, 0], sizes = [8, 8, 1], strides = [1, 1, 1]} : vector<8x16x1xf32> to vector<8x8x1xf32>
    %42 = vector.extract_strided_slice %2 {offsets = [0, 8, 0], sizes = [8, 8, 1], strides = [1, 1, 1]} : vector<8x16x1xf32> to vector<8x8x1xf32>
    %43 = arith.truncf %37 : vector<128x32xf32> to vector<128x32xbf16>
    %c4 = arith.constant 4 : index
    %c0_18 = arith.constant 0 : index
    %c0_19 = arith.constant 0 : index
    %44 = vector.load %arg5[%c4, %c0_18, %c0_19] : memref<5x32x32xbf16, #tpu.memory_space<vmem>>, vector<1x32x32xbf16>
    %45 = vector.shape_cast %44 : vector<1x32x32xbf16> to vector<32x32xbf16>
    %cst_20 = arith.constant dense<0.000000e+00> : vector<128x32xf32>
    %46 = tpu.matmul %43, %45, %cst_20 {dimension_numbers = #tpu.dot_dimension_numbers<[1], [0], [0], [1], [0, 0, 1, 1], [], []>} : vector<128x32xbf16>, vector<32x32xbf16>, vector<128x32xf32> -> vector<128x32xf32>
    %47 = vector.broadcast %10 : vector<1x32xf32> to vector<128x32xf32>
    %48 = arith.addf %46, %47 : vector<128x32xf32>
    %49 = vector.shape_cast %48 : vector<128x32xf32> to vector<8x16x32xf32>
    %50 = vector.extract_strided_slice %49 {offsets = [0, 0, 0], sizes = [8, 8, 32], strides = [1, 1, 1]} : vector<8x16x32xf32> to vector<8x8x32xf32>
    %51 = arith.truncf %50 : vector<8x8x32xf32> to vector<8x8x32xbf16>
    %52 = arith.truncf %40 : vector<8x8x32xf32> to vector<8x8x32xbf16>
    "tpu.trace_start"() <{level = 10 : i32, message = "bnd,bmd->bnm"}> : () -> ()
    %cst_21 = arith.constant dense<0.000000e+00> : vector<8x8x8xf32>
    %53 = tpu.matmul %51, %52, %cst_21 {dimension_numbers = #tpu.dot_dimension_numbers<[2], [2], [1], [1], [0, 0, 0, 1, 1, 1], [0], [0]>} : vector<8x8x32xbf16>, vector<8x8x32xbf16>, vector<8x8x8xf32> -> vector<8x8x8xf32>
    "tpu.trace_stop"() : () -> ()
    %54 = vector.shape_cast %9 : vector<1x32xf32> to vector<1x1x32xf32>
    %55 = vector.broadcast %54 : vector<1x1x32xf32> to vector<8x8x32xf32>
    %56 = arith.mulf %39, %55 : vector<8x8x32xf32>
    %cst_22 = arith.constant dense<0.000000e+00> : vector<8x8xf32>
    %57 = vector.multi_reduction <add>, %56, %cst_22 [2] : vector<8x8x32xf32> to vector<8x8xf32>
    %58 = vector.shape_cast %57 : vector<8x8xf32> to vector<8x8x1xf32>
    %59 = vector.broadcast %58 : vector<8x8x1xf32> to vector<8x8x8xf32>
    %60 = arith.addf %53, %59 : vector<8x8x8xf32>
    %c0_23 = arith.constant 0 : index
    %61 = memref.load %arg10[%c0_23] : memref<1xf32, #tpu.memory_space<smem>>
    %62 = vector.broadcast %61 : f32 to vector<8x8x8xf32>
    %63 = arith.addf %60, %62 : vector<8x8x8xf32>
    %64 = vector.broadcast %41 : vector<8x8x1xf32> to vector<8x8x8xf32>
    %65 = arith.mulf %63, %64 : vector<8x8x8xf32>
    %cst_24 = arith.constant dense<0xFF800000> : vector<8x8xf32>
    %66 = vector.multi_reduction <maximumf>, %65, %cst_24 [1] : vector<8x8x8xf32> to vector<8x8xf32>
    %67 = vector.shape_cast %66 : vector<8x8xf32> to vector<8x1x8xf32>
    %68 = vector.broadcast %67 : vector<8x1x8xf32> to vector<8x8x8xf32>
    %69 = arith.subf %65, %68 : vector<8x8x8xf32>
    %70 = math.exp %69 : vector<8x8x8xf32>
    %cst_25 = arith.constant dense<0.000000e+00> : vector<8x8xf32>
    %71 = vector.multi_reduction <add>, %70, %cst_25 [1] : vector<8x8x8xf32> to vector<8x8xf32>
    %72 = vector.shape_cast %71 : vector<8x8xf32> to vector<8x1x8xf32>
    %73 = vector.broadcast %72 : vector<8x1x8xf32> to vector<8x8x8xf32>
    %74 = arith.divf %70, %73 : vector<8x8x8xf32>
    %75 = vector.broadcast %41 : vector<8x8x1xf32> to vector<8x8x8xf32>
    %76 = arith.mulf %74, %75 : vector<8x8x8xf32>
    %cst_26 = arith.constant dense<0.000000e+00> : vector<8x8xf32>
    %77 = vector.multi_reduction <add>, %76, %cst_26 [1] : vector<8x8x8xf32> to vector<8x8xf32>
    %78 = vector.shape_cast %77 : vector<8x8xf32> to vector<8x1x8xf32>
    %cst_27 = arith.constant 9.99999982E-14 : f32
    %79 = vector.broadcast %cst_27 : f32 to vector<8x1x8xf32>
    %80 = arith.addf %78, %79 : vector<8x1x8xf32>
    %81 = vector.broadcast %80 : vector<8x1x8xf32> to vector<8x8x8xf32>
    %82 = arith.divf %76, %81 : vector<8x8x8xf32>
    %83 = tpu.transpose %82, [0, 2, 1] : vector<8x8x8xf32> -> vector<8x8x8xf32>
    %84 = arith.truncf %83 : vector<8x8x8xf32> to vector<8x8x8xbf16>
    %85 = arith.truncf %39 : vector<8x8x32xf32> to vector<8x8x32xbf16>
    "tpu.trace_start"() <{level = 10 : i32, message = "bmn,bnd->bmd"}> : () -> ()
    %cst_28 = arith.constant dense<0.000000e+00> : vector<8x8x32xf32>
    %86 = tpu.matmul %84, %85, %cst_28 {dimension_numbers = #tpu.dot_dimension_numbers<[2], [1], [1], [2], [0, 0, 0, 1, 1, 2], [0], [0]>} : vector<8x8x8xbf16>, vector<8x8x32xbf16>, vector<8x8x32xf32> -> vector<8x8x32xf32>
    "tpu.trace_stop"() : () -> ()
    %87 = vector.broadcast %42 : vector<8x8x1xf32> to vector<8x8x8xf32>
    %88 = arith.mulf %63, %87 : vector<8x8x8xf32>
    %cst_29 = arith.constant dense<0xFF800000> : vector<8x8xf32>
    %89 = vector.multi_reduction <maximumf>, %88, %cst_29 [1] : vector<8x8x8xf32> to vector<8x8xf32>
    %90 = vector.shape_cast %89 : vector<8x8xf32> to vector<8x1x8xf32>
    %91 = vector.broadcast %90 : vector<8x1x8xf32> to vector<8x8x8xf32>
    %92 = arith.subf %88, %91 : vector<8x8x8xf32>
    %93 = math.exp %92 : vector<8x8x8xf32>
    %cst_30 = arith.constant dense<0.000000e+00> : vector<8x8xf32>
    %94 = vector.multi_reduction <add>, %93, %cst_30 [1] : vector<8x8x8xf32> to vector<8x8xf32>
    %95 = vector.shape_cast %94 : vector<8x8xf32> to vector<8x1x8xf32>
    %96 = vector.broadcast %95 : vector<8x1x8xf32> to vector<8x8x8xf32>
    %97 = arith.divf %93, %96 : vector<8x8x8xf32>
    %98 = vector.broadcast %42 : vector<8x8x1xf32> to vector<8x8x8xf32>
    %99 = arith.mulf %97, %98 : vector<8x8x8xf32>
    %cst_31 = arith.constant dense<0.000000e+00> : vector<8x8xf32>
    %100 = vector.multi_reduction <add>, %99, %cst_31 [1] : vector<8x8x8xf32> to vector<8x8xf32>
    %101 = vector.shape_cast %100 : vector<8x8xf32> to vector<8x1x8xf32>
    %cst_32 = arith.constant 9.99999982E-14 : f32
    %102 = vector.broadcast %cst_32 : f32 to vector<8x1x8xf32>
    %103 = arith.addf %101, %102 : vector<8x1x8xf32>
    %104 = vector.broadcast %103 : vector<8x1x8xf32> to vector<8x8x8xf32>
    %105 = arith.divf %99, %104 : vector<8x8x8xf32>
    %106 = arith.truncf %105 : vector<8x8x8xf32> to vector<8x8x8xbf16>
    %107 = arith.truncf %40 : vector<8x8x32xf32> to vector<8x8x32xbf16>
    "tpu.trace_start"() <{level = 10 : i32, message = "bnm,bmd->bnd"}> : () -> ()
    %cst_33 = arith.constant dense<0.000000e+00> : vector<8x8x32xf32>
    %108 = tpu.matmul %106, %107, %cst_33 {dimension_numbers = #tpu.dot_dimension_numbers<[2], [1], [1], [2], [0, 0, 0, 1, 1, 2], [0], [0]>} : vector<8x8x8xbf16>, vector<8x8x32xbf16>, vector<8x8x32xf32> -> vector<8x8x32xf32>
    "tpu.trace_stop"() : () -> ()
    %109 = tpu.concatenate %108, %86 in 1 : vector<8x8x32xf32>, vector<8x8x32xf32> -> vector<8x16x32xf32>
    %110 = vector.shape_cast %109 : vector<8x16x32xf32> to vector<128x32xf32>
    %111 = arith.mulf %37, %110 : vector<128x32xf32>
    %112 = tpu.concatenate %37, %110, %111 in 1 : vector<128x32xf32>, vector<128x32xf32>, vector<128x32xf32> -> vector<128x96xf32>
    %113 = arith.truncf %112 : vector<128x96xf32> to vector<128x96xbf16>
    %c0_34 = arith.constant 0 : index
    %c0_35 = arith.constant 0 : index
    %114 = vector.load %arg6[%c0_34, %c0_35] : memref<96x32xbf16, #tpu.memory_space<vmem>>, vector<96x32xbf16>
    %cst_36 = arith.constant dense<0.000000e+00> : vector<128x32xf32>
    %115 = tpu.matmul %113, %114, %cst_36 {dimension_numbers = #tpu.dot_dimension_numbers<[1], [0], [0], [1], [0, 0, 1, 1], [], []>} : vector<128x96xbf16>, vector<96x32xbf16>, vector<128x32xf32> -> vector<128x32xf32>
    %116 = vector.broadcast %8 : vector<1x32xf32> to vector<128x32xf32>
    %117 = arith.addf %115, %116 : vector<128x32xf32>
    %cst_37 = arith.constant 0.000000e+00 : f32
    %118 = vector.broadcast %cst_37 : f32 to vector<128x32xf32>
    %119 = arith.maximumf %117, %118 : vector<128x32xf32>
    %c2 = arith.constant 2 : index
    %c0_38 = arith.constant 0 : index
    %c0_39 = arith.constant 0 : index
    %120 = vector.load %arg5[%c2, %c0_38, %c0_39] : memref<5x32x32xbf16, #tpu.memory_space<vmem>>, vector<1x32x32xbf16>
    %121 = vector.shape_cast %120 : vector<1x32x32xbf16> to vector<32x32xbf16>
    %c3 = arith.constant 3 : index
    %c0_40 = arith.constant 0 : index
    %c0_41 = arith.constant 0 : index
    %122 = vector.load %arg5[%c3, %c0_40, %c0_41] : memref<5x32x32xbf16, #tpu.memory_space<vmem>>, vector<1x32x32xbf16>
    %123 = vector.shape_cast %122 : vector<1x32x32xbf16> to vector<32x32xbf16>
    %124 = arith.truncf %119 : vector<128x32xf32> to vector<128x32xbf16>
    %cst_42 = arith.constant dense<0.000000e+00> : vector<128x32xf32>
    %125 = tpu.matmul %124, %121, %cst_42 {dimension_numbers = #tpu.dot_dimension_numbers<[1], [0], [0], [1], [0, 0, 1, 1], [], []>} : vector<128x32xbf16>, vector<32x32xbf16>, vector<128x32xf32> -> vector<128x32xf32>
    %126 = arith.truncf %125 : vector<128x32xf32> to vector<128x32xbf16>
    %cst_43 = arith.constant dense<0.000000e+00> : vector<128x32xf32>
    %127 = tpu.matmul %0, %126, %cst_43 {dimension_numbers = #tpu.dot_dimension_numbers<[1], [0], [0], [1], [0, 0, 1, 1], [], []>} : vector<128x128xbf16>, vector<128x32xbf16>, vector<128x32xf32> -> vector<128x32xf32>
    %128 = vector.broadcast %6 : vector<1x32xf32> to vector<128x32xf32>
    %129 = arith.addf %127, %128 : vector<128x32xf32>
    %cst_44 = arith.constant 0.000000e+00 : f32
    %130 = vector.broadcast %cst_44 : f32 to vector<128x32xf32>
    %131 = arith.maximumf %129, %130 : vector<128x32xf32>
    %132 = arith.truncf %131 : vector<128x32xf32> to vector<128x32xbf16>
    %cst_45 = arith.constant dense<0.000000e+00> : vector<128x32xf32>
    %133 = tpu.matmul %132, %123, %cst_45 {dimension_numbers = #tpu.dot_dimension_numbers<[1], [0], [0], [1], [0, 0, 1, 1], [], []>} : vector<128x32xbf16>, vector<32x32xbf16>, vector<128x32xf32> -> vector<128x32xf32>
    %134 = arith.truncf %133 : vector<128x32xf32> to vector<128x32xbf16>
    %cst_46 = arith.constant dense<0.000000e+00> : vector<128x32xf32>
    %135 = tpu.matmul %0, %134, %cst_46 {dimension_numbers = #tpu.dot_dimension_numbers<[1], [0], [0], [1], [0, 0, 1, 1], [], []>} : vector<128x128xbf16>, vector<128x32xbf16>, vector<128x32xf32> -> vector<128x32xf32>
    %136 = vector.broadcast %7 : vector<1x32xf32> to vector<128x32xf32>
    %137 = arith.addf %135, %136 : vector<128x32xf32>
    %cst_47 = arith.constant 0.000000e+00 : f32
    %138 = vector.broadcast %cst_47 : f32 to vector<128x32xf32>
    %139 = arith.maximumf %137, %138 : vector<128x32xf32>
    %140 = vector.shape_cast %139 : vector<128x32xf32> to vector<8x16x32xf32>
    %141 = vector.extract_strided_slice %140 {offsets = [0, 0, 0], sizes = [8, 8, 32], strides = [1, 1, 1]} : vector<8x16x32xf32> to vector<8x8x32xf32>
    %142 = vector.extract_strided_slice %140 {offsets = [0, 8, 0], sizes = [8, 8, 32], strides = [1, 1, 1]} : vector<8x16x32xf32> to vector<8x8x32xf32>
    %143 = vector.broadcast %41 : vector<8x8x1xf32> to vector<8x8x32xf32>
    %144 = arith.mulf %141, %143 : vector<8x8x32xf32>
    %cst_48 = arith.constant dense<0.000000e+00> : vector<8x32xf32>
    %145 = vector.multi_reduction <add>, %144, %cst_48 [1] : vector<8x8x32xf32> to vector<8x32xf32>
    %cst_49 = arith.constant dense<0.000000e+00> : vector<8x1xf32>
    %146 = vector.multi_reduction <add>, %41, %cst_49 [1] : vector<8x8x1xf32> to vector<8x1xf32>
    %cst_50 = arith.constant 9.99999982E-14 : f32
    %147 = vector.broadcast %cst_50 : f32 to vector<8x1xf32>
    %148 = arith.maximumf %146, %147 : vector<8x1xf32>
    %149 = vector.broadcast %148 : vector<8x1xf32> to vector<8x32xf32>
    %150 = arith.divf %145, %149 : vector<8x32xf32>
    %151 = vector.broadcast %42 : vector<8x8x1xf32> to vector<8x8x32xf32>
    %152 = arith.mulf %142, %151 : vector<8x8x32xf32>
    %cst_51 = arith.constant dense<0.000000e+00> : vector<8x32xf32>
    %153 = vector.multi_reduction <add>, %152, %cst_51 [1] : vector<8x8x32xf32> to vector<8x32xf32>
    %cst_52 = arith.constant dense<0.000000e+00> : vector<8x1xf32>
    %154 = vector.multi_reduction <add>, %42, %cst_52 [1] : vector<8x8x1xf32> to vector<8x1xf32>
    %cst_53 = arith.constant 9.99999982E-14 : f32
    %155 = vector.broadcast %cst_53 : f32 to vector<8x1xf32>
    %156 = arith.maximumf %154, %155 : vector<8x1xf32>
    %157 = vector.broadcast %156 : vector<8x1xf32> to vector<8x32xf32>
    %158 = arith.divf %153, %157 : vector<8x32xf32>
    %c0_54 = arith.constant 0 : index
    %c0_55 = arith.constant 0 : index
    %c0_56 = arith.constant 0 : index
    %159 = vector.load %arg1[%c0_54, %c0_55, %c0_56] : memref<8x1x32xf32, #tpu.memory_space<vmem>>, vector<8x1x32xf32>
    %160 = vector.shape_cast %159 : vector<8x1x32xf32> to vector<8x32xf32>
    %161 = tpu.concatenate %160, %150, %158 in 1 : vector<8x32xf32>, vector<8x32xf32>, vector<8x32xf32> -> vector<8x96xf32>
    %cst_57 = arith.constant dense<0.000000e+00> : vector<8xf32>
    %162 = vector.multi_reduction <add>, %161, %cst_57 [1] : vector<8x96xf32> to vector<8xf32>
    %163 = vector.shape_cast %162 : vector<8xf32> to vector<8x1xf32>
    %cst_58 = arith.constant 9.600000e+01 : f32
    %164 = vector.broadcast %cst_58 : f32 to vector<8x1xf32>
    %165 = arith.divf %163, %164 : vector<8x1xf32>
    %166 = vector.broadcast %165 : vector<8x1xf32> to vector<8x96xf32>
    %167 = arith.subf %161, %166 : vector<8x96xf32>
    %168 = arith.mulf %167, %167 : vector<8x96xf32>
    %cst_59 = arith.constant dense<0.000000e+00> : vector<8xf32>
    %169 = vector.multi_reduction <add>, %168, %cst_59 [1] : vector<8x96xf32> to vector<8xf32>
    %170 = vector.shape_cast %169 : vector<8xf32> to vector<8x1xf32>
    %cst_60 = arith.constant 9.600000e+01 : f32
    %171 = vector.broadcast %cst_60 : f32 to vector<8x1xf32>
    %172 = arith.divf %170, %171 : vector<8x1xf32>
    %173 = vector.broadcast %165 : vector<8x1xf32> to vector<8x96xf32>
    %174 = arith.subf %161, %173 : vector<8x96xf32>
    %cst_61 = arith.constant 9.99999974E-6 : f32
    %175 = vector.broadcast %cst_61 : f32 to vector<8x1xf32>
    %176 = arith.addf %172, %175 : vector<8x1xf32>
    %177 = math.rsqrt %176 : vector<8x1xf32>
    %178 = vector.broadcast %177 : vector<8x1xf32> to vector<8x96xf32>
    %179 = arith.mulf %174, %178 : vector<8x96xf32>
    %180 = vector.broadcast %14 : vector<1x96xf32> to vector<8x96xf32>
    %181 = arith.mulf %179, %180 : vector<8x96xf32>
    %182 = vector.broadcast %18 : vector<1x96xf32> to vector<8x96xf32>
    %183 = arith.addf %181, %182 : vector<8x96xf32>
    %184 = arith.truncf %183 : vector<8x96xf32> to vector<8x96xbf16>
    %c0_62 = arith.constant 0 : index
    %c0_63 = arith.constant 0 : index
    %185 = vector.load %arg8[%c0_62, %c0_63] : memref<96x3xbf16, #tpu.memory_space<vmem>>, vector<96x3xbf16>
    %cst_64 = arith.constant dense<0.000000e+00> : vector<8x3xf32>
    %186 = tpu.matmul %184, %185, %cst_64 {dimension_numbers = #tpu.dot_dimension_numbers<[1], [0], [0], [1], [0, 0, 1, 1], [], []>} : vector<8x96xbf16>, vector<96x3xbf16>, vector<8x3xf32> -> vector<8x3xf32>
    %c0_65 = arith.constant 0 : index
    %c0_66 = arith.constant 0 : index
    %187 = vector.load %arg9[%c0_65, %c0_66] : memref<1x3xf32, #tpu.memory_space<vmem>>, vector<1x3xf32>
    %188 = vector.broadcast %187 : vector<1x3xf32> to vector<8x3xf32>
    %189 = arith.addf %186, %188 : vector<8x3xf32>
    %c0_67 = arith.constant 0 : index
    %c0_68 = arith.constant 0 : index
    %c0_69 = arith.constant 0 : index
    %190 = vector.load %arg11[%c0_67, %c0_68, %c0_69] : memref<8x1x3xf32, #tpu.memory_space<vmem>>, vector<8x1x3xf32>
    %191 = vector.shape_cast %190 : vector<8x1x3xf32> to vector<8x3xf32>
    %192 = vector.shape_cast %189 : vector<8x3xf32> to vector<8x1x3xf32>
    tpu.vector_store %arg11[%c0_67, %c0_68, %c0_69], %192 {strides = array<i32>} : memref<8x1x3xf32, #tpu.memory_space<vmem>>, vector<8x1x3xf32>,
    return
  }
  func.func @transform_0(%arg0: i32) -> (i32, i32, i32) {
    %c0_i32 = arith.constant 0 : i32
    %c0_i32_0 = arith.constant 0 : i32
    %c0_i32_1 = arith.constant 0 : i32
    return %arg0, %c0_i32, %c0_i32_0 : i32, i32, i32
  }
  func.func @transform_1(%arg0: i32) -> (i32, i32) {
    %c0_i32 = arith.constant 0 : i32
    %c0_i32_0 = arith.constant 0 : i32
    return %arg0, %c0_i32 : i32, i32
  }
  func.func @transform_2(%arg0: i32) -> (i32, i32, i32) {
    %c0_i32 = arith.constant 0 : i32
    %c0_i32_0 = arith.constant 0 : i32
    %c0_i32_1 = arith.constant 0 : i32
    return %arg0, %c0_i32, %c0_i32_0 : i32, i32, i32
  }
  func.func @transform_3(%arg0: i32) -> (i32, i32) {
    %c0_i32 = arith.constant 0 : i32
    %c0_i32_0 = arith.constant 0 : i32
    %c0_i32_1 = arith.constant 0 : i32
    return %c0_i32, %c0_i32_0 : i32, i32
  }
  func.func @transform_4(%arg0: i32) -> (i32, i32, i32) {
    %c0_i32 = arith.constant 0 : i32
    %c0_i32_0 = arith.constant 0 : i32
    %c0_i32_1 = arith.constant 0 : i32
    %c0_i32_2 = arith.constant 0 : i32
    return %c0_i32, %c0_i32_0, %c0_i32_1 : i32, i32, i32
  }
  func.func @transform_5(%arg0: i32) -> (i32, i32) {
    %c0_i32 = arith.constant 0 : i32
    %c0_i32_0 = arith.constant 0 : i32
    %c0_i32_1 = arith.constant 0 : i32
    return %c0_i32, %c0_i32_0 : i32, i32
  }
  func.func @transform_6(%arg0: i32) -> (i32, i32) {
    %c0_i32 = arith.constant 0 : i32
    %c0_i32_0 = arith.constant 0 : i32
    %c0_i32_1 = arith.constant 0 : i32
    return %c0_i32, %c0_i32_0 : i32, i32
  }
  func.func @transform_7(%arg0: i32) -> (i32, i32) {
    %c0_i32 = arith.constant 0 : i32
    %c0_i32_0 = arith.constant 0 : i32
    %c0_i32_1 = arith.constant 0 : i32
    return %c0_i32, %c0_i32_0 : i32, i32
  }
  func.func @transform_8(%arg0: i32) -> (i32, i32) {
    %c0_i32 = arith.constant 0 : i32
    %c0_i32_0 = arith.constant 0 : i32
    %c0_i32_1 = arith.constant 0 : i32
    return %c0_i32, %c0_i32_0 : i32, i32
  }
  func.func @transform_9(%arg0: i32) -> i32 {
    %c0_i32 = arith.constant 0 : i32
    %c0_i32_0 = arith.constant 0 : i32
    return %c0_i32 : i32
  }
  func.func @transform_10(%arg0: i32) -> (i32, i32, i32) {
    %c0_i32 = arith.constant 0 : i32
    %c0_i32_0 = arith.constant 0 : i32
    %c0_i32_1 = arith.constant 0 : i32
    return %arg0, %c0_i32, %c0_i32_0 : i32, i32, i32
  }
}

</mosaic_0001>

<llo_original>
// kernel: sentence_level_net_forward.1
$region0: #{sentence_level_net_forward.1}
  #allocation0 [shape = 'u32[]', space=smem, size = 0x4, offset = 0x4, fixed_abs, tag = 'smem constant byte address 0x4 - core index']
  #allocation1 [shape = 'u32[144,128]{1,0:T(1,128)}', space=vmem, size = 0x12000, scoped, tag = 'internal scratch']
  #allocation2 [shape = 'f32[1]{0:T(128)S(6)}', space=smem, size = 0x200, scoped, tag = 'scoped memory for sentence_level_net_forward.1']
  %s0 = inlined_call_operand.vmem [shape: f32[16,1,32], index: 0, kind: input, shape index: {}]
  %s1 = inlined_call_operand.vmem [shape: bf16[256,32], index: 1, kind: input, shape index: {}]
  %s2 = inlined_call_operand.vmem [shape: f32[16,16,1], index: 2, kind: input, shape index: {}]
  %s3 = inlined_call_operand.vmem [shape: bf16[128,128], index: 3, kind: input, shape index: {}]
  %s4 = inlined_call_operand.vmem [shape: bf16[5,32,32], index: 4, kind: input, shape index: {}]
  %s5 = inlined_call_operand.vmem [shape: bf16[96,32], index: 5, kind: input, shape index: {}]
  %s6 = inlined_call_operand.vmem [shape: f32[13,32], index: 6, kind: input, shape index: {}]
  %s7 = inlined_call_operand.vmem [shape: bf16[96,3], index: 7, kind: input, shape index: {}]
  %s8 = inlined_call_operand.vmem [shape: f32[1,3], index: 8, kind: input, shape index: {}]
  %s9 = inlined_call_operand.<no memory space> [shape: f32[1], index: 9, kind: input, shape index: {}]
  %s10 = inlined_call_operand.vmem [shape: f32[16,1,3], index: 10, kind: output, shape index: {}]
  %s11 = sld [smem:[#allocation0]]
  $region73: #{sentence_level_net_forward.1} parent=0
    _
  %s13 = ssub.s32 1, %s11
  %s14 = scalar_select 0, %s13, %s11
  %15 = sst [smem:[#allocation2]] %s9
  loop: start=0, step=1, limit=4
  $region2: #{sentence_level_net_forward.1} parent=0 // loop_pre_header
    _
  $region3: #{sentence_level_net_forward.1} parent=0 // loop_header
    %s17 = sphi 0, %s21
    %p18 = scmp.ge.s32.totalorder %s17, 4
    %s27 = sphi 0, %s29
    %s30 = sphi 0, %s27
    %s31 = sphi 0, %s30
    %s47 = sphi 0, %s31
    %s53 = sphi 0, %s55
    %s56 = sphi 0, %s53
    %s57 = sphi 0, %s56
    %s73 = sphi 0, %s57
    %s79 = sphi 0, %s81
    %s82 = sphi 0, %s79
    %s83 = sphi 0, %s82
    %s99 = sphi 0, %s83
    %s103 = sphi 0, %s103
    %s105 = sphi 0, %s103
    %s106 = sphi 0, %s105
    %s120 = sphi 0, %s106
    %s124 = sphi 0, %s124
    %s126 = sphi 0, %s124
    %s127 = sphi 0, %s126
    %s141 = sphi 0, %s127
    %s145 = sphi 0, %s145
    %s147 = sphi 0, %s145
    %s148 = sphi 0, %s147
    %s162 = sphi 0, %s148
    %s166 = sphi 0, %s166
    %s168 = sphi 0, %s166
    %s169 = sphi 0, %s168
    %s183 = sphi 0, %s169
    %s187 = sphi 0, %s187
    %s189 = sphi 0, %s187
    %s190 = sphi 0, %s189
    %s204 = sphi 0, %s190
    %s208 = sphi 0, %s208
    %s210 = sphi 0, %s208
    %s211 = sphi 0, %s210
    %s225 = sphi 0, %s211
    %s229 = sphi 0, %s229
    %s231 = sphi 0, %s229
    %s232 = sphi 0, %s231
    %s246 = sphi 0, %s232
    %s252 = sphi 0, %s254
    %s255 = sphi 0, %s252
    %s256 = sphi 0, %s255
    %s272 = sphi 0, %s256
  $region4: #{sentence_level_net_forward.1} parent=0 // loop_header_branch
    %20 = sbr.rel (%p18) target = $region8
  $region5: #{sentence_level_net_forward.1} parent=0 // loop_body
    %s22 = ssub.s32 %s17, 1
    %s23 = ssub.s32 %s17, 2
    %s24 = sadd.s32 %s17, 1
    %s25 = ssub.s32 %s17, %s24
    %p26 = scmp.eq.s32.totalorder %s25, 0
    %s28 = sadd.s32 %s27, 1
    %s29 = scalar_select %p26, %s27, %s28
    %p32 = pneg %p26
    %p33 = scmp.eq.s32.totalorder %s17, 1
    %p34 = por %p32, %p33
    %p35 = scmp.ne.s32.totalorder %s27, %s30
    %p36 = scmp.eq.s32.totalorder %s17, 0
    %p37 = por %p35, %p36
    %p38 = scmp.ne.s32.totalorder %s27, %s30
    %p39 = scmp.eq.s32.totalorder %s22, 1
    %p40 = por %p38, %p39
    %p41 = scmp.ne.s32.totalorder %s30, %s31
    %p42 = scmp.eq.s32.totalorder %s22, 0
    %p43 = por %p41, %p42
    %p44 = scmp.ne.s32.totalorder %s30, %s31
    %p45 = scmp.eq.s32.totalorder %s23, 1
    %p46 = por %p44, %p45
    %p48 = scmp.ne.s32.totalorder %s31, %s47
    %p49 = scmp.eq.s32.totalorder %s23, 0
    %p50 = por %p48, %p49
    %s51 = ssub.s32 %s17, %s24
    %p52 = scmp.eq.s32.totalorder %s51, 0
    %s54 = sadd.s32 %s53, 1
    %s55 = scalar_select %p52, %s53, %s54
    %p58 = pneg %p52
    %p59 = scmp.eq.s32.totalorder %s17, 1
    %p60 = por %p58, %p59
    %p61 = scmp.ne.s32.totalorder %s53, %s56
    %p62 = scmp.eq.s32.totalorder %s17, 0
    %p63 = por %p61, %p62
    %p64 = scmp.ne.s32.totalorder %s53, %s56
    %p65 = scmp.eq.s32.totalorder %s22, 1
    %p66 = por %p64, %p65
    %p67 = scmp.ne.s32.totalorder %s56, %s57
    %p68 = scmp.eq.s32.totalorder %s22, 0
    %p69 = por %p67, %p68
    %p70 = scmp.ne.s32.totalorder %s56, %s57
    %p71 = scmp.eq.s32.totalorder %s23, 1
    %p72 = por %p70, %p71
    %p74 = scmp.ne.s32.totalorder %s57, %s73
    %p75 = scmp.eq.s32.totalorder %s23, 0
    %p76 = por %p74, %p75
    %s77 = ssub.s32 %s17, %s24
    %p78 = scmp.eq.s32.totalorder %s77, 0
    %s80 = sadd.s32 %s79, 1
    %s81 = scalar_select %p78, %s79, %s80
    %p84 = pneg %p78
    %p85 = scmp.eq.s32.totalorder %s17, 1
    %p86 = por %p84, %p85
    %p87 = scmp.ne.s32.totalorder %s79, %s82
    %p88 = scmp.eq.s32.totalorder %s17, 0
    %p89 = por %p87, %p88
    %p90 = scmp.ne.s32.totalorder %s79, %s82
    %p91 = scmp.eq.s32.totalorder %s22, 1
    %p92 = por %p90, %p91
    %p93 = scmp.ne.s32.totalorder %s82, %s83
    %p94 = scmp.eq.s32.totalorder %s22, 0
    %p95 = por %p93, %p94
    %p96 = scmp.ne.s32.totalorder %s82, %s83
    %p97 = scmp.eq.s32.totalorder %s23, 1
    %p98 = por %p96, %p97
    %p100 = scmp.ne.s32.totalorder %s83, %s99
    %p101 = scmp.eq.s32.totalorder %s23, 0
    %p102 = por %p100, %p101
    %s104 = sadd.s32 %s103, 1
    %p107 = scmp.eq.s32.totalorder %s17, 1
    %p108 = scmp.ne.s32.totalorder %s103, %s105
    %p109 = scmp.eq.s32.totalorder %s17, 0
    %p110 = por %p108, %p109
    %p111 = scmp.ne.s32.totalorder %s103, %s105
    %p112 = scmp.eq.s32.totalorder %s22, 1
    %p113 = por %p111, %p112
    %p114 = scmp.ne.s32.totalorder %s105, %s106
    %p115 = scmp.eq.s32.totalorder %s22, 0
    %p116 = por %p114, %p115
    %p117 = scmp.ne.s32.totalorder %s105, %s106
    %p118 = scmp.eq.s32.totalorder %s23, 1
    %p119 = por %p117, %p118
    %p121 = scmp.ne.s32.totalorder %s106, %s120
    %p122 = scmp.eq.s32.totalorder %s23, 0
    %p123 = por %p121, %p122
    %s125 = sadd.s32 %s124, 1
    %p128 = scmp.eq.s32.totalorder %s17, 1
    %p129 = scmp.ne.s32.totalorder %s124, %s126
    %p130 = scmp.eq.s32.totalorder %s17, 0
    %p131 = por %p129, %p130
    %p132 = scmp.ne.s32.totalorder %s124, %s126
    %p133 = scmp.eq.s32.totalorder %s22, 1
    %p134 = por %p132, %p133
    %p135 = scmp.ne.s32.totalorder %s126, %s127
    %p136 = scmp.eq.s32.totalorder %s22, 0
    %p137 = por %p135, %p136
    %p138 = scmp.ne.s32.totalorder %s126, %s127
    %p139 = scmp.eq.s32.totalorder %s23, 1
    %p140 = por %p138, %p139
    %p142 = scmp.ne.s32.totalorder %s127, %s141
    %p143 = scmp.eq.s32.totalorder %s23, 0
    %p144 = por %p142, %p143
    %s146 = sadd.s32 %s145, 1
    %p149 = scmp.eq.s32.totalorder %s17, 1
    %p150 = scmp.ne.s32.totalorder %s145, %s147
    %p151 = scmp.eq.s32.totalorder %s17, 0
    %p152 = por %p150, %p151
    %p153 = scmp.ne.s32.totalorder %s145, %s147
    %p154 = scmp.eq.s32.totalorder %s22, 1
    %p155 = por %p153, %p154
    %p156 = scmp.ne.s32.totalorder %s147, %s148
    %p157 = scmp.eq.s32.totalorder %s22, 0
    %p158 = por %p156, %p157
    %p159 = scmp.ne.s32.totalorder %s147, %s148
    %p160 = scmp.eq.s32.totalorder %s23, 1
    %p161 = por %p159, %p160
    %p163 = scmp.ne.s32.totalorder %s148, %s162
    %p164 = scmp.eq.s32.totalorder %s23, 0
    %p165 = por %p163, %p164
    %s167 = sadd.s32 %s166, 1
    %p170 = scmp.eq.s32.totalorder %s17, 1
    %p171 = scmp.ne.s32.totalorder %s166, %s168
    %p172 = scmp.eq.s32.totalorder %s17, 0
    %p173 = por %p171, %p172
    %p174 = scmp.ne.s32.totalorder %s166, %s168
    %p175 = scmp.eq.s32.totalorder %s22, 1
    %p176 = por %p174, %p175
    %p177 = scmp.ne.s32.totalorder %s168, %s169
    %p178 = scmp.eq.s32.totalorder %s22, 0
    %p179 = por %p177, %p178
    %p180 = scmp.ne.s32.totalorder %s168, %s169
    %p181 = scmp.eq.s32.totalorder %s23, 1
    %p182 = por %p180, %p181
    %p184 = scmp.ne.s32.totalorder %s169, %s183
    %p185 = scmp.eq.s32.totalorder %s23, 0
    %p186 = por %p184, %p185
    %s188 = sadd.s32 %s187, 1
    %p191 = scmp.eq.s32.totalorder %s17, 1
    %p192 = scmp.ne.s32.totalorder %s187, %s189
    %p193 = scmp.eq.s32.totalorder %s17, 0
    %p194 = por %p192, %p193
    %p195 = scmp.ne.s32.totalorder %s187, %s189
    %p196 = scmp.eq.s32.totalorder %s22, 1
    %p197 = por %p195, %p196
    %p198 = scmp.ne.s32.totalorder %s189, %s190
    %p199 = scmp.eq.s32.totalorder %s22, 0
    %p200 = por %p198, %p199
    %p201 = scmp.ne.s32.totalorder %s189, %s190
    %p202 = scmp.eq.s32.totalorder %s23, 1
    %p203 = por %p201, %p202
    %p205 = scmp.ne.s32.totalorder %s190, %s204
    %p206 = scmp.eq.s32.totalorder %s23, 0
    %p207 = por %p205, %p206
    %s209 = sadd.s32 %s208, 1
    %p212 = scmp.eq.s32.totalorder %s17, 1
    %p213 = scmp.ne.s32.totalorder %s208, %s210
    %p214 = scmp.eq.s32.totalorder %s17, 0
    %p215 = por %p213, %p214
    %p216 = scmp.ne.s32.totalorder %s208, %s210
    %p217 = scmp.eq.s32.totalorder %s22, 1
    %p218 = por %p216, %p217
    %p219 = scmp.ne.s32.totalorder %s210, %s211
    %p220 = scmp.eq.s32.totalorder %s22, 0
    %p221 = por %p219, %p220
    %p222 = scmp.ne.s32.totalorder %s210, %s211
    %p223 = scmp.eq.s32.totalorder %s23, 1
    %p224 = por %p222, %p223
    %p226 = scmp.ne.s32.totalorder %s211, %s225
    %p227 = scmp.eq.s32.totalorder %s23, 0
    %p228 = por %p226, %p227
    %s230 = sadd.s32 %s229, 1
    %p233 = scmp.eq.s32.totalorder %s17, 1
    %p234 = scmp.ne.s32.totalorder %s229, %s231
    %p235 = scmp.eq.s32.totalorder %s17, 0
    %p236 = por %p234, %p235
    %p237 = scmp.ne.s32.totalorder %s229, %s231
    %p238 = scmp.eq.s32.totalorder %s22, 1
    %p239 = por %p237, %p238
    %p240 = scmp.ne.s32.totalorder %s231, %s232
    %p241 = scmp.eq.s32.totalorder %s22, 0
    %p242 = por %p240, %p241
    %p243 = scmp.ne.s32.totalorder %s231, %s232
    %p244 = scmp.eq.s32.totalorder %s23, 1
    %p245 = por %p243, %p244
    %p247 = scmp.ne.s32.totalorder %s232, %s246
    %p248 = scmp.eq.s32.totalorder %s23, 0
    %p249 = por %p247, %p248
    %s250 = ssub.s32 %s17, %s24
    %p251 = scmp.eq.s32.totalorder %s250, 0
    %s253 = sadd.s32 %s252, 1
    %s254 = scalar_select %p251, %s252, %s253
    %p257 = pneg %p251
    %p258 = scmp.eq.s32.totalorder %s17, 1
    %p259 = por %p257, %p258
    %p260 = scmp.ne.s32.totalorder %s252, %s255
    %p261 = scmp.eq.s32.totalorder %s17, 0
    %p262 = por %p260, %p261
    %p263 = scmp.ne.s32.totalorder %s252, %s255
    %p264 = scmp.eq.s32.totalorder %s22, 1
    %p265 = por %p263, %p264
    %p266 = scmp.ne.s32.totalorder %s255, %s256
    %p267 = scmp.eq.s32.totalorder %s22, 0
    %p268 = por %p266, %p267
    %p269 = scmp.ne.s32.totalorder %s255, %s256
    %p270 = scmp.eq.s32.totalorder %s23, 1
    %p271 = por %p269, %p270
    %p273 = scmp.ne.s32.totalorder %s256, %s272
    %p274 = scmp.eq.s32.totalorder %s23, 0
    %p275 = por %p273, %p274
    %p276 = scmp.le.s32.totalorder 1, %s17
    %p277 = scmp.lt.s32.totalorder %s17, 3
    %p278 = pnand %p276, %p277
    %p279 = pneg %p278
    // Predicated region
    $region9: #{sentence_level_net_forward.1} parent=5 // pred_check
      _
    $region10: #{sentence_level_net_forward.1} parent=5 // pred_check_branch
      %281 = sbr.rel (%p278) target = $region12
    $region11: #{sentence_level_net_forward.1} parent=5 // pred_region
      %s282 = ssub.s32 %s17, 1
      // Predicated region
      $region13: #{sentence_level_net_forward.1} parent=11 // pred_check
        %p283 = pneg %p116
      $region14: #{sentence_level_net_forward.1} parent=11 // pred_check_branch
        %285 = sbr.rel (%p283) target = $region16
      $region15: #{sentence_level_net_forward.1} parent=11 // pred_region
        _
      $region16: #{sentence_level_net_forward.1} parent=11 // pred_fallthru
        _
      // Predicated region
      $region17: #{sentence_level_net_forward.1} parent=11 // pred_check
        %p286 = pneg %p137
      $region18: #{sentence_level_net_forward.1} parent=11 // pred_check_branch
        %288 = sbr.rel (%p286) target = $region20
      $region19: #{sentence_level_net_forward.1} parent=11 // pred_region
        _
      $region20: #{sentence_level_net_forward.1} parent=11 // pred_fallthru
        _
      // Predicated region
      $region21: #{sentence_level_net_forward.1} parent=11 // pred_check
        %p289 = pneg %p158
      $region22: #{sentence_level_net_forward.1} parent=11 // pred_check_branch
        %291 = sbr.rel (%p289) target = $region24
      $region23: #{sentence_level_net_forward.1} parent=11 // pred_region
        _
      $region24: #{sentence_level_net_forward.1} parent=11 // pred_fallthru
        _
      // Predicated region
      $region25: #{sentence_level_net_forward.1} parent=11 // pred_check
        %p292 = pneg %p179
      $region26: #{sentence_level_net_forward.1} parent=11 // pred_check_branch
        %294 = sbr.rel (%p292) target = $region28
      $region27: #{sentence_level_net_forward.1} parent=11 // pred_region
        _
      $region28: #{sentence_level_net_forward.1} parent=11 // pred_fallthru
        _
      // Predicated region
      $region29: #{sentence_level_net_forward.1} parent=11 // pred_check
        %p295 = pneg %p200
      $region30: #{sentence_level_net_forward.1} parent=11 // pred_check_branch
        %297 = sbr.rel (%p295) target = $region32
      $region31: #{sentence_level_net_forward.1} parent=11 // pred_region
        _
      $region32: #{sentence_level_net_forward.1} parent=11 // pred_fallthru
        _
      // Predicated region
      $region33: #{sentence_level_net_forward.1} parent=11 // pred_check
        %p298 = pneg %p221
      $region34: #{sentence_level_net_forward.1} parent=11 // pred_check_branch
        %300 = sbr.rel (%p298) target = $region36
      $region35: #{sentence_level_net_forward.1} parent=11 // pred_region
        _
      $region36: #{sentence_level_net_forward.1} parent=11 // pred_fallthru
        _
      // Predicated region
      $region37: #{sentence_level_net_forward.1} parent=11 // pred_check
        %p301 = pneg %p242
      $region38: #{sentence_level_net_forward.1} parent=11 // pred_check_branch
        %303 = sbr.rel (%p301) target = $region40
      $region39: #{sentence_level_net_forward.1} parent=11 // pred_region
        _
      $region40: #{sentence_level_net_forward.1} parent=11 // pred_fallthru
        _
    $region12: #{sentence_level_net_forward.1} parent=5 // pred_fallthru
      _
    %p304 = scmp.lt.s32.totalorder %s17, 2
    // Predicated region
    $region41: #{sentence_level_net_forward.1} parent=5 // pred_check
      %p305 = pneg %p304
    $region42: #{sentence_level_net_forward.1} parent=5 // pred_check_branch
      %307 = sbr.rel (%p305) target = $region44
    $region43: #{sentence_level_net_forward.1} parent=5 // pred_region
      // Predicated region
      $region45: #{sentence_level_net_forward.1} parent=43 // pred_check
        %p308 = pneg %p37
      $region46: #{sentence_level_net_forward.1} parent=43 // pred_check_branch
        %310 = sbr.rel (%p308) target = $region48
      $region47: #{sentence_level_net_forward.1} parent=43 // pred_region
        %s311 = smul.u32 8, %s17
        %p312 = scmp.lt.s32.totalorder %s311, 15
        %s313 = scalar_select %p312, %s311, 15
        %s314 = scalar_lea.vmem %s0, %s313
        %s315 = smul.u32 8, %s17
      $region48: #{sentence_level_net_forward.1} parent=43 // pred_fallthru
        _
      // Predicated region
      $region49: #{sentence_level_net_forward.1} parent=43 // pred_check
        %p316 = pneg %p63
      $region50: #{sentence_level_net_forward.1} parent=43 // pred_check_branch
        %318 = sbr.rel (%p316) target = $region52
      $region51: #{sentence_level_net_forward.1} parent=43 // pred_region
        %s319 = smul.u32 16, %s17
        %p320 = scmp.lt.s32.totalorder %s319, 31
        %s321 = scalar_select %p320, %s319, 31
        %s322 = smul.addr %s321, 4
        %s323 = scalar_lea.vmem %s1, %s322
        %s324 = smul.u32 16, %s17
      $region52: #{sentence_level_net_forward.1} parent=43 // pred_fallthru
        _
      // Predicated region
      $region53: #{sentence_level_net_forward.1} parent=43 // pred_check
        %p325 = pneg %p89
      $region54: #{sentence_level_net_forward.1} parent=43 // pred_check_branch
        %327 = sbr.rel (%p325) target = $region56
      $region55: #{sentence_level_net_forward.1} parent=43 // pred_region
        %s328 = smul.u32 8, %s17
        %p329 = scmp.lt.s32.totalorder %s328, 15
        %s330 = scalar_select %p329, %s328, 15
        %s331 = smul.addr %s330, 2
        %s332 = smul.addr %s331, 8
        %s333 = scalar_lea.vmem %s2, %s332
        %s334 = smul.u32 8, %s17
      $region56: #{sentence_level_net_forward.1} parent=43 // pred_fallthru
        _
    $region44: #{sentence_level_net_forward.1} parent=5 // pred_fallthru
      _
    %p335 = scmp.le.s32.totalorder 1, %s17
    %p336 = scmp.lt.s32.totalorder %s17, 3
    %p337 = pnand %p335, %p336
    %p338 = pneg %p337
    // Predicated region
    $region57: #{sentence_level_net_forward.1} parent=5 // pred_check
      _
    $region58: #{sentence_level_net_forward.1} parent=5 // pred_check_branch
      %340 = sbr.rel (%p337) target = $region60
    $region59: #{sentence_level_net_forward.1} parent=5 // pred_region
      %s341 = ssub.s32 %s17, 1
      %s342 = smul.u32 8, %s22
      %p343 = scmp.lt.s32.totalorder %s342, 15
      %s344 = scalar_select %p343, %s342, 15
      %s345 = scalar_lea.vmem %s0, %s344
      %p346 = pneg %p43
      %p347 = pneg %p40
      %s348 = smul.u32 16, %s22
      %p349 = scmp.lt.s32.totalorder %s348, 31
      %s350 = scalar_select %p349, %s348, 31
      %s351 = smul.addr %s350, 4
      %s352 = scalar_lea.vmem %s1, %s351
      %p353 = pneg %p69
      %p354 = pneg %p66
      %s355 = smul.u32 8, %s22
      %p356 = scmp.lt.s32.totalorder %s355, 15
      %s357 = scalar_select %p356, %s355, 15
      %s358 = smul.addr %s357, 2
      %s359 = smul.addr %s358, 8
      %s360 = scalar_lea.vmem %s2, %s359
      %p361 = pneg %p95
      %p362 = pneg %p92
      %p363 = pneg %p116
      %p364 = pneg %p113
      %p365 = pneg %p137
      %p366 = pneg %p134
      %p367 = pneg %p158
      %p368 = pneg %p155
      %p369 = pneg %p179
      %p370 = pneg %p176
      %p371 = pneg %p200
      %p372 = pneg %p197
      %p373 = pneg %p221
      %p374 = pneg %p218
      %p375 = pneg %p242
      %p376 = pneg %p239
      %p377 = pneg %p268
      %p378 = pneg %p265
      %s379 = smul.u32 8, %s22
      %p380 = scmp.lt.s32.totalorder %s379, 15
      %s381 = scalar_select %p380, %s379, 15
      %s382 = scalar_lea.vmem %s10, %s381
      %s383 = smul.u32 8, %s22
      %p384 = scmp.lt.s32.totalorder %s383, 15
      %s385 = scalar_select %p384, %s383, 15
      %s386 = scalar_lea.vmem %s0, %s385
      %s387 = smul.u32 8, %s22
      %s388 = smul.u32 16, %s22
      %p389 = scmp.lt.s32.totalorder %s388, 31
      %s390 = scalar_select %p389, %s388, 31
      %s391 = smul.addr %s390, 4
      %s392 = scalar_lea.vmem %s1, %s391
      %s393 = smul.u32 16, %s22
      %s394 = smul.u32 8, %s22
      %p395 = scmp.lt.s32.totalorder %s394, 15
      %s396 = scalar_select %p395, %s394, 15
      %s397 = smul.addr %s396, 2
      %s398 = smul.addr %s397, 8
      %s399 = scalar_lea.vmem %s2, %s398
      %s400 = smul.u32 8, %s22
      %s401 = smul.u32 8, %s22
      %p402 = scmp.lt.s32.totalorder %s401, 15
      %s403 = scalar_select %p402, %s401, 15
      %s404 = scalar_lea.vmem %s10, %s403
      %s405 = smul.u32 8, %s22
      %v407 = vld [vmem:[%s3] sm:$0xf]
      %v408 = vld [vmem:[%s3 + $0x4] sm:$0xf]
      %v409 = vld [vmem:[%s3 + $0x8] sm:$0xf]
      %v410 = vld [vmem:[%s3 + $0xc] sm:$0xf]
      %v411 = vld [vmem:[%s3 + $0x10] sm:$0xf]
      %v412 = vld [vmem:[%s3 + $0x14] sm:$0xf]
      %v413 = vld [vmem:[%s3 + $0x18] sm:$0xf]
      %v414 = vld [vmem:[%s3 + $0x1c] sm:$0xf]
      %v415 = vld [vmem:[%s3 + $0x20] sm:$0xf]
      %v416 = vld [vmem:[%s3 + $0x24] sm:$0xf]
      %v417 = vld [vmem:[%s3 + $0x28] sm:$0xf]
      %v418 = vld [vmem:[%s3 + $0x2c] sm:$0xf]
      %v419 = vld [vmem:[%s3 + $0x30] sm:$0xf]
      %v420 = vld [vmem:[%s3 + $0x34] sm:$0xf]
      %v421 = vld [vmem:[%s3 + $0x38] sm:$0xf]
      %v422 = vld [vmem:[%s3 + $0x3c] sm:$0xf]
      %v423 = vld [vmem:[%s392] sm:$0xf]
      %v424 = vld [vmem:[%s392 + $0x4] sm:$0xf]
      %v425 = vld [vmem:[%s392 + $0x8] sm:$0xf]
      %v426 = vld [vmem:[%s392 + $0xc] sm:$0xf]
      %v427 = vld [vmem:[%s392 + $0x10] sm:$0xf]
      %v428 = vld [vmem:[%s392 + $0x14] sm:$0xf]
      %v429 = vld [vmem:[%s392 + $0x18] sm:$0xf]
      %v430 = vld [vmem:[%s392 + $0x1c] sm:$0xf]
      %v431 = vld [vmem:[%s392 + $0x20] sm:$0xf]
      %v432 = vld [vmem:[%s392 + $0x24] sm:$0xf]
      %v433 = vld [vmem:[%s392 + $0x28] sm:$0xf]
      %v434 = vld [vmem:[%s392 + $0x2c] sm:$0xf]
      %v435 = vld [vmem:[%s392 + $0x30] sm:$0xf]
      %v436 = vld [vmem:[%s392 + $0x34] sm:$0xf]
      %v437 = vld [vmem:[%s392 + $0x38] sm:$0xf]
      %v438 = vld [vmem:[%s392 + $0x3c] sm:$0xf]
      %v439 = vld [vmem:[%s399] sm:$0xff]
      %v440 = vld [vmem:[%s399 + $0x8] sm:$0xff]
      %v441 = vld [vmem:[%s399 + $0x10] sm:$0xff]
      %v442 = vld [vmem:[%s399 + $0x18] sm:$0xff]
      %v443 = vld [vmem:[%s399 + $0x20] sm:$0xff]
      %v444 = vld [vmem:[%s399 + $0x28] sm:$0xff]
      %v445 = vld [vmem:[%s399 + $0x30] sm:$0xff]
      %v446 = vld [vmem:[%s399 + $0x38] sm:$0xff]
      %v447 = vld [vmem:[%s399 + $0x40] sm:$0xff]
      %v448 = vld [vmem:[%s399 + $0x48] sm:$0xff]
      %v449 = vld [vmem:[%s399 + $0x50] sm:$0xff]
      %v450 = vld [vmem:[%s399 + $0x58] sm:$0xff]
      %v451 = vld [vmem:[%s399 + $0x60] sm:$0xff]
      %v452 = vld [vmem:[%s399 + $0x68] sm:$0xff]
      %v453 = vld [vmem:[%s399 + $0x70] sm:$0xff]
      %v454 = vld [vmem:[%s399 + $0x78] sm:$0xff]
      %v455 = vld [vmem:[%s6] sm:$0xff]
      %v456 = vld [vmem:[%s6 + $0x8] sm:$0x1f]
      %v458 = vrot.slane %v456, 1
      %459 = vrot.lane.b32.xlu0 %v458, 32
      %v460 = vpop.permute.xlu0 %459
      %v462 = vrot.slane %v456, 2
      %463 = vrot.lane.b32.xlu0 %v462, 64
      %v464 = vpop.permute.xlu0 %463
      %vm466 = vcmask 261120
      %v467 = vsel %vm466, %v455, %v460
      %vm468 = vcmask 523264
      %v469 = vsel %vm468, %v467, %v464
      %v470 = vsel %vm466, %v456, %v460
      %v471 = vsel %vm468, %v470, %v464
      %v472 = vld [vmem:[%s4] sm:$0xf]
      %v473 = vld [vmem:[%s4 + $0x4] sm:$0xf]
      %v474 = vld [vmem:[%s4 + $0x8] sm:$0xf]
      %v475 = vld [vmem:[%s4 + $0xc] sm:$0xf]
      %s476 = scalar_lea.vmem %s4, 16
      %v477 = vld [vmem:[%s476] sm:$0xf]
      %v478 = vld [vmem:[%s476 + $0x4] sm:$0xf]
      %v479 = vld [vmem:[%s476 + $0x8] sm:$0xf]
      %v480 = vld [vmem:[%s476 + $0xc] sm:$0xf]
      %v497 = vunpack.c.l.b16 %v423
      %v498 = vunpack.c.l.b16 %v424
      %v499 = vunpack.c.l.b16 %v425
      %v500 = vunpack.c.l.b16 %v426
      %v501 = vunpack.c.l.b16 %v427
      %v502 = vunpack.c.l.b16 %v428
      %v503 = vunpack.c.l.b16 %v429
      %v504 = vunpack.c.l.b16 %v430
      %v505 = vunpack.c.l.b16 %v431
      %v506 = vunpack.c.l.b16 %v432
      %v507 = vunpack.c.l.b16 %v433
      %v508 = vunpack.c.l.b16 %v434
      %v509 = vunpack.c.l.b16 %v435
      %v510 = vunpack.c.l.b16 %v436
      %v511 = vunpack.c.l.b16 %v437
      %v512 = vunpack.c.l.b16 %v438
      %v513 = vpack.c.b16 %v498, %v497
      %v514 = vpack.c.b16 %v500, %v499
      %v515 = vpack.c.b16 %v502, %v501
      %v516 = vpack.c.b16 %v504, %v503
      %v517 = vpack.c.b16 %v506, %v505
      %v518 = vpack.c.b16 %v508, %v507
      %v519 = vpack.c.b16 %v510, %v509
      %v520 = vpack.c.b16 %v512, %v511
      %v525 = vunpack.c.l.b16 %v472
      %v526 = vunpack.c.l.b16 %v473
      %v527 = vunpack.c.l.b16 %v474
      %v528 = vunpack.c.l.b16 %v475
      %v529 = vpack.c.b16 %v526, %v525
      %v530 = vpack.c.b16 %v528, %v527
      %v534 = vsel %vm466, %v513, 0
      %v537 = vsel %vm466, %v514, 0
      %v540 = vsel %vm466, %v515, 0
      %v543 = vsel %vm466, %v516, 0
      %v546 = vsel %vm466, %v517, 0
      %v549 = vsel %vm466, %v518, 0
      %v552 = vsel %vm466, %v519, 0
      %v555 = vsel %vm466, %v520, 0
      %557 = vmatprep.subr.bf16.mxu0 0
      %558 = vmatpush1.bf16.msra.mxu0 0
      %559 = vmatprep.subr.bf16.mxu0 0
      %560 = vmatpush1.bf16.msra.mxu0 0
      %561 = vmatprep.subr.bf16.mxu0 0
      %562 = vmatpush1.bf16.msra.mxu0 0
      %563 = vmatprep.subr.bf16.mxu0 0
      %564 = vmatpush1.bf16.msra.mxu0 0
      %565 = vmatprep.subr.bf16.mxu0 0
      %566 = vmatpush1.bf16.msra.mxu0 0
      %567 = vmatprep.subr.bf16.mxu0 0
      %568 = vmatpush1.bf16.msra.mxu0 0
      %569 = vmatprep.subr.bf16.mxu0 0
      %570 = vmatpush1.bf16.msra.mxu0 %v530
      %571 = vmatprep.subr.bf16.mxu0 0
      %572 = vmatpush1.bf16.msra.mxu0 %v529
      %573 = vmatprep.subr.bf16.mxu0 0
      %574 = vmatpush2.bf16.msra.mxu0 0
      %575 = vmatprep.subr.bf16.mxu0 0
      %576 = vmatpush2.bf16.msra.mxu0 0
      %577 = vmatprep.subr.bf16.mxu0 0
      %578 = vmatpush2.bf16.msra.mxu0 0
      %579 = vmatprep.subr.bf16.mxu0 0
      %580 = vmatpush2.bf16.msra.mxu0 0
      %581 = vmatprep.subr.bf16.mxu0 0
      %582 = vmatpush2.bf16.msra.mxu0 0
      %583 = vmatprep.subr.bf16.mxu0 0
      %584 = vmatpush2.bf16.msra.mxu0 0
      %585 = vmatprep.subr.bf16.mxu0 0
      %586 = vmatpush2.bf16.msra.mxu0 0
      %587 = vmatprep.subr.bf16.mxu0 0
      %588 = vmatpush2.bf16.msra.mxu0 0
      %589 = vmatprep.mubr.bf16.mxu0 0
      %590 = vmatmul.mubr.bf16.gmra.mxu0 %v534
      %v591 = vpop.f32.mrf.mxu0
      %v592 = vadd.f32 0.0, %v591
      %v593 = vpop.f32.mrf.mxu0
      %v594 = vpop.f32.mrf.mxu0
      %v595 = vadd.f32 0.0, %v594
      %v596 = vpop.f32.mrf.mxu0
      %597 = vmatprep.mubr.bf16.mxu0 0
      %598 = vmatmul.mubr.bf16.gmra.mxu0 %v537
      %v599 = vpop.f32.mrf.mxu0
      %v600 = vadd.f32 0.0, %v599
      %v601 = vpop.f32.mrf.mxu0
      %v602 = vpop.f32.mrf.mxu0
      %v603 = vadd.f32 0.0, %v602
      %v604 = vpop.f32.mrf.mxu0
      %605 = vmatprep.mubr.bf16.mxu0 0
      %606 = vmatmul.mubr.bf16.gmra.mxu0 %v540
      %v607 = vpop.f32.mrf.mxu0
      %v608 = vadd.f32 0.0, %v607
      %v609 = vpop.f32.mrf.mxu0
      %v610 = vpop.f32.mrf.mxu0
      %v611 = vadd.f32 0.0, %v610
      %v612 = vpop.f32.mrf.mxu0
      %613 = vmatprep.mubr.bf16.mxu0 0
      %614 = vmatmul.mubr.bf16.gmra.mxu0 %v543
      %v615 = vpop.f32.mrf.mxu0
      %v616 = vadd.f32 0.0, %v615
      %v617 = vpop.f32.mrf.mxu0
      %v618 = vpop.f32.mrf.mxu0
      %v619 = vadd.f32 0.0, %v618
      %v620 = vpop.f32.mrf.mxu0
      %621 = vmatprep.mubr.bf16.mxu0 0
      %622 = vmatmul.mubr.bf16.gmra.mxu0 %v546
      %v623 = vpop.f32.mrf.mxu0
      %v624 = vadd.f32 0.0, %v623
      %v625 = vpop.f32.mrf.mxu0
      %v626 = vpop.f32.mrf.mxu0
      %v627 = vadd.f32 0.0, %v626
      %v628 = vpop.f32.mrf.mxu0
      %629 = vmatprep.mubr.bf16.mxu0 0
      %630 = vmatmul.mubr.bf16.gmra.mxu0 %v549
      %v631 = vpop.f32.mrf.mxu0
      %v632 = vadd.f32 0.0, %v631
      %v633 = vpop.f32.mrf.mxu0
      %v634 = vpop.f32.mrf.mxu0
      %v635 = vadd.f32 0.0, %v634
      %v636 = vpop.f32.mrf.mxu0
      %637 = vmatprep.mubr.bf16.mxu0 0
      %638 = vmatmul.mubr.bf16.gmra.mxu0 %v552
      %v639 = vpop.f32.mrf.mxu0
      %v640 = vadd.f32 0.0, %v639
      %v641 = vpop.f32.mrf.mxu0
      %v642 = vpop.f32.mrf.mxu0
      %v643 = vadd.f32 0.0, %v642
      %v644 = vpop.f32.mrf.mxu0
      %645 = vmatprep.mubr.bf16.mxu0 0
      %646 = vmatmul.mubr.bf16.gmra.mxu0 %v555
      %v647 = vpop.f32.mrf.mxu0
      %v648 = vadd.f32 0.0, %v647
      %v649 = vpop.f32.mrf.mxu0
      %v650 = vpop.f32.mrf.mxu0
      %v651 = vadd.f32 0.0, %v650
      %v652 = vpop.f32.mrf.mxu0
      %653 = vdwg.mxu0
      %v654 = vpack.c.bf16 %v595, %v592
      %v655 = vpack.c.bf16 %v603, %v600
      %v656 = vpack.c.bf16 %v611, %v608
      %v657 = vpack.c.bf16 %v619, %v616
      %v658 = vpack.c.bf16 %v627, %v624
      %v659 = vpack.c.bf16 %v635, %v632
      %v660 = vpack.c.bf16 %v643, %v640
      %v661 = vpack.c.bf16 %v651, %v648
      %v662 = vlaneseq
      %v663 = vshrl.u32 %v662, 7
      %v664 = vsub.s32 0, %v663
      %v665 = vrot.slane %v455, %v664
      %v682 = vunpack.c.l.b16 %v407
      %v683 = vunpack.c.l.b16 %v408
      %v684 = vunpack.c.l.b16 %v409
      %v685 = vunpack.c.l.b16 %v410
      %v686 = vunpack.c.l.b16 %v411
      %v687 = vunpack.c.l.b16 %v412
      %v688 = vunpack.c.l.b16 %v413
      %v689 = vunpack.c.l.b16 %v414
      %v690 = vunpack.c.l.b16 %v415
      %v691 = vunpack.c.l.b16 %v416
      %v692 = vunpack.c.l.b16 %v417
      %v693 = vunpack.c.l.b16 %v418
      %v694 = vunpack.c.l.b16 %v419
      %v695 = vunpack.c.l.b16 %v420
      %v696 = vunpack.c.l.b16 %v421
      %v697 = vunpack.c.l.b16 %v422
      %v698 = vpack.c.b16 %v683, %v682
      %v699 = vpack.c.b16 %v685, %v684
      %v700 = vpack.c.b16 %v687, %v686
      %v701 = vpack.c.b16 %v689, %v688
      %v702 = vpack.c.b16 %v691, %v690
      %v703 = vpack.c.b16 %v693, %v692
      %v704 = vpack.c.b16 %v695, %v694
      %v705 = vpack.c.b16 %v697, %v696
      %714 = vmatprep.subr.bf16.mxu0 0
      %715 = vmatpush1.bf16.msra.mxu0 %v661
      %716 = vmatprep.subr.bf16.mxu0 0
      %717 = vmatpush1.bf16.msra.mxu0 %v660
      %718 = vmatprep.subr.bf16.mxu0 0
      %719 = vmatpush1.bf16.msra.mxu0 %v659
      %720 = vmatprep.subr.bf16.mxu0 0
      %721 = vmatpush1.bf16.msra.mxu0 %v658
      %722 = vmatprep.subr.bf16.mxu0 0
      %723 = vmatpush1.bf16.msra.mxu0 %v657
      %724 = vmatprep.subr.bf16.mxu0 0
      %725 = vmatpush1.bf16.msra.mxu0 %v656
      %726 = vmatprep.subr.bf16.mxu0 0
      %727 = vmatpush1.bf16.msra.mxu0 %v655
      %728 = vmatprep.subr.bf16.mxu0 0
      %729 = vmatpush1.bf16.msra.mxu0 %v654
      %730 = vmatprep.subr.bf16.mxu0 0
      %731 = vmatpush2.bf16.msra.mxu0 0
      %732 = vmatprep.subr.bf16.mxu0 0
      %733 = vmatpush2.bf16.msra.mxu0 0
      %734 = vmatprep.subr.bf16.mxu0 0
      %735 = vmatpush2.bf16.msra.mxu0 0
      %736 = vmatprep.subr.bf16.mxu0 0
      %737 = vmatpush2.bf16.msra.mxu0 0
      %738 = vmatprep.subr.bf16.mxu0 0
      %739 = vmatpush2.bf16.msra.mxu0 0
      %740 = vmatprep.subr.bf16.mxu0 0
      %741 = vmatpush2.bf16.msra.mxu0 0
      %742 = vmatprep.subr.bf16.mxu0 0
      %743 = vmatpush2.bf16.msra.mxu0 0
      %744 = vmatprep.subr.bf16.mxu0 0
      %745 = vmatpush2.bf16.msra.mxu0 0
      %746 = vmatprep.mubr.bf16.mxu0 0
      %747 = vmatmul.mubr.bf16.gmra.mxu0 %v698
      %v748 = vpop.f32.mrf.mxu0
      %v749 = vadd.f32 %v665, %v748
      %v750 = vpop.f32.mrf.mxu0
      %v751 = vpop.f32.mrf.mxu0
      %v752 = vadd.f32 %v665, %v751
      %v753 = vpop.f32.mrf.mxu0
      %754 = vmatprep.mubr.bf16.mxu0 0
      %755 = vmatmul.mubr.bf16.gmra.mxu0 %v699
      %v756 = vpop.f32.mrf.mxu0
      %v757 = vadd.f32 %v665, %v756
      %v758 = vpop.f32.mrf.mxu0
      %v759 = vpop.f32.mrf.mxu0
      %v760 = vadd.f32 %v665, %v759
      %v761 = vpop.f32.mrf.mxu0
      %762 = vmatprep.mubr.bf16.mxu0 0
      %763 = vmatmul.mubr.bf16.gmra.mxu0 %v700
      %v764 = vpop.f32.mrf.mxu0
      %v765 = vadd.f32 %v665, %v764
      %v766 = vpop.f32.mrf.mxu0
      %v767 = vpop.f32.mrf.mxu0
      %v768 = vadd.f32 %v665, %v767
      %v769 = vpop.f32.mrf.mxu0
      %770 = vmatprep.mubr.bf16.mxu0 0
      %771 = vmatmul.mubr.bf16.gmra.mxu0 %v701
      %v772 = vpop.f32.mrf.mxu0
      %v773 = vadd.f32 %v665, %v772
      %v774 = vpop.f32.mrf.mxu0
      %v775 = vpop.f32.mrf.mxu0
      %v776 = vadd.f32 %v665, %v775
      %v777 = vpop.f32.mrf.mxu0
      %778 = vmatprep.mubr.bf16.mxu0 0
      %779 = vmatmul.mubr.bf16.gmra.mxu0 %v702
      %v780 = vpop.f32.mrf.mxu0
      %v781 = vadd.f32 %v665, %v780
      %v782 = vpop.f32.mrf.mxu0
      %v783 = vpop.f32.mrf.mxu0
      %v784 = vadd.f32 %v665, %v783
      %v785 = vpop.f32.mrf.mxu0
      %786 = vmatprep.mubr.bf16.mxu0 0
      %787 = vmatmul.mubr.bf16.gmra.mxu0 %v703
      %v788 = vpop.f32.mrf.mxu0
      %v789 = vadd.f32 %v665, %v788
      %v790 = vpop.f32.mrf.mxu0
      %v791 = vpop.f32.mrf.mxu0
      %v792 = vadd.f32 %v665, %v791
      %v793 = vpop.f32.mrf.mxu0
      %794 = vmatprep.mubr.bf16.mxu0 0
      %795 = vmatmul.mubr.bf16.gmra.mxu0 %v704
      %v796 = vpop.f32.mrf.mxu0
      %v797 = vadd.f32 %v665, %v796
      %v798 = vpop.f32.mrf.mxu0
      %v799 = vpop.f32.mrf.mxu0
      %v800 = vadd.f32 %v665, %v799
      %v801 = vpop.f32.mrf.mxu0
      %802 = vmatprep.mubr.bf16.mxu0 0
      %803 = vmatmul.mubr.bf16.gmra.mxu0 %v705
      %v804 = vpop.f32.mrf.mxu0
      %v805 = vadd.f32 %v665, %v804
      %v806 = vpop.f32.mrf.mxu0
      %v807 = vpop.f32.mrf.mxu0
      %v808 = vadd.f32 %v665, %v807
      %v809 = vpop.f32.mrf.mxu0
      %810 = vdwg.mxu0
      %v811 = vmax.f32 %v749, 0.0
      %v812 = vmax.f32 %v752, 0.0
      %v813 = vmax.f32 %v757, 0.0
      %v814 = vmax.f32 %v760, 0.0
      %v815 = vmax.f32 %v765, 0.0
      %v816 = vmax.f32 %v768, 0.0
      %v817 = vmax.f32 %v773, 0.0
      %v818 = vmax.f32 %v776, 0.0
      %v819 = vmax.f32 %v781, 0.0
      %v820 = vmax.f32 %v784, 0.0
      %v821 = vmax.f32 %v789, 0.0
      %v822 = vmax.f32 %v792, 0.0
      %v823 = vmax.f32 %v797, 0.0
      %v824 = vmax.f32 %v800, 0.0
      %v825 = vmax.f32 %v805, 0.0
      %v826 = vmax.f32 %v808, 0.0
      %v827 = vpack.c.bf16 %v812, %v811
      %v828 = vpack.c.bf16 %v814, %v813
      %v829 = vpack.c.bf16 %v816, %v815
      %v830 = vpack.c.bf16 %v818, %v817
      %v831 = vpack.c.bf16 %v820, %v819
      %v832 = vpack.c.bf16 %v822, %v821
      %v833 = vpack.c.bf16 %v824, %v823
      %v834 = vpack.c.bf16 %v826, %v825
      %v839 = vunpack.c.l.b16 %v477
      %v840 = vunpack.c.l.b16 %v478
      %v841 = vunpack.c.l.b16 %v479
      %v842 = vunpack.c.l.b16 %v480
      %v843 = vpack.c.b16 %v840, %v839
      %v844 = vpack.c.b16 %v842, %v841
      %v848 = vsel %vm466, %v827, 0
      %v851 = vsel %vm466, %v828, 0
      %v854 = vsel %vm466, %v829, 0
      %v857 = vsel %vm466, %v830, 0
      %v860 = vsel %vm466, %v831, 0
      %v863 = vsel %vm466, %v832, 0
      %v866 = vsel %vm466, %v833, 0
      %v869 = vsel %vm466, %v834, 0
      %871 = vmatprep.subr.bf16.mxu0 0
      %872 = vmatpush1.bf16.msra.mxu0 0
      %873 = vmatprep.subr.bf16.mxu0 0
      %874 = vmatpush1.bf16.msra.mxu0 0
      %875 = vmatprep.subr.bf16.mxu0 0
      %876 = vmatpush1.bf16.msra.mxu0 0
      %877 = vmatprep.subr.bf16.mxu0 0
      %878 = vmatpush1.bf16.msra.mxu0 0
      %879 = vmatprep.subr.bf16.mxu0 0
      %880 = vmatpush1.bf16.msra.mxu0 0
      %881 = vmatprep.subr.bf16.mxu0 0
      %882 = vmatpush1.bf16.msra.mxu0 0
      %883 = vmatprep.subr.bf16.mxu0 0
      %884 = vmatpush1.bf16.msra.mxu0 %v844
      %885 = vmatprep.subr.bf16.mxu0 0
      %886 = vmatpush1.bf16.msra.mxu0 %v843
      %887 = vmatprep.subr.bf16.mxu0 0
      %888 = vmatpush2.bf16.msra.mxu0 0
      %889 = vmatprep.subr.bf16.mxu0 0
      %890 = vmatpush2.bf16.msra.mxu0 0
      %891 = vmatprep.subr.bf16.mxu0 0
      %892 = vmatpush2.bf16.msra.mxu0 0
      %893 = vmatprep.subr.bf16.mxu0 0
      %894 = vmatpush2.bf16.msra.mxu0 0
      %895 = vmatprep.subr.bf16.mxu0 0
      %896 = vmatpush2.bf16.msra.mxu0 0
      %897 = vmatprep.subr.bf16.mxu0 0
      %898 = vmatpush2.bf16.msra.mxu0 0
      %899 = vmatprep.subr.bf16.mxu0 0
      %900 = vmatpush2.bf16.msra.mxu0 0
      %901 = vmatprep.subr.bf16.mxu0 0
      %902 = vmatpush2.bf16.msra.mxu0 0
      %903 = vmatprep.mubr.bf16.mxu0 0
      %904 = vmatmul.mubr.bf16.gmra.mxu0 %v848
      %v905 = vpop.f32.mrf.mxu0
      %v906 = vadd.f32 0.0, %v905
      %v907 = vpop.f32.mrf.mxu0
      %v908 = vpop.f32.mrf.mxu0
      %v909 = vadd.f32 0.0, %v908
      %v910 = vpop.f32.mrf.mxu0
      %911 = vmatprep.mubr.bf16.mxu0 0
      %912 = vmatmul.mubr.bf16.gmra.mxu0 %v851
      %v913 = vpop.f32.mrf.mxu0
      %v914 = vadd.f32 0.0, %v913
      %v915 = vpop.f32.mrf.mxu0
      %v916 = vpop.f32.mrf.mxu0
      %v917 = vadd.f32 0.0, %v916
      %v918 = vpop.f32.mrf.mxu0
      %919 = vmatprep.mubr.bf16.mxu0 0
      %920 = vmatmul.mubr.bf16.gmra.mxu0 %v854
      %v921 = vpop.f32.mrf.mxu0
      %v922 = vadd.f32 0.0, %v921
      %v923 = vpop.f32.mrf.mxu0
      %v924 = vpop.f32.mrf.mxu0
      %v925 = vadd.f32 0.0, %v924
      %v926 = vpop.f32.mrf.mxu0
      %927 = vmatprep.mubr.bf16.mxu0 0
      %928 = vmatmul.mubr.bf16.gmra.mxu0 %v857
      %v929 = vpop.f32.mrf.mxu0
      %v930 = vadd.f32 0.0, %v929
      %v931 = vpop.f32.mrf.mxu0
      %v932 = vpop.f32.mrf.mxu0
      %v933 = vadd.f32 0.0, %v932
      %v934 = vpop.f32.mrf.mxu0
      %935 = vmatprep.mubr.bf16.mxu0 0
      %936 = vmatmul.mubr.bf16.gmra.mxu0 %v860
      %v937 = vpop.f32.mrf.mxu0
      %v938 = vadd.f32 0.0, %v937
      %v939 = vpop.f32.mrf.mxu0
      %v940 = vpop.f32.mrf.mxu0
      %v941 = vadd.f32 0.0, %v940
      %v942 = vpop.f32.mrf.mxu0
      %943 = vmatprep.mubr.bf16.mxu0 0
      %944 = vmatmul.mubr.bf16.gmra.mxu0 %v863
      %v945 = vpop.f32.mrf.mxu0
      %v946 = vadd.f32 0.0, %v945
      %v947 = vpop.f32.mrf.mxu0
      %v948 = vpop.f32.mrf.mxu0
      %v949 = vadd.f32 0.0, %v948
      %v950 = vpop.f32.mrf.mxu0
      %951 = vmatprep.mubr.bf16.mxu0 0
      %952 = vmatmul.mubr.bf16.gmra.mxu0 %v866
      %v953 = vpop.f32.mrf.mxu0
      %v954 = vadd.f32 0.0, %v953
      %v955 = vpop.f32.mrf.mxu0
      %v956 = vpop.f32.mrf.mxu0
      %v957 = vadd.f32 0.0, %v956
      %v958 = vpop.f32.mrf.mxu0
      %959 = vmatprep.mubr.bf16.mxu0 0
      %960 = vmatmul.mubr.bf16.gmra.mxu0 %v869
      %v961 = vpop.f32.mrf.mxu0
      %v962 = vadd.f32 0.0, %v961
      %v963 = vpop.f32.mrf.mxu0
      %v964 = vpop.f32.mrf.mxu0
      %v965 = vadd.f32 0.0, %v964
      %v966 = vpop.f32.mrf.mxu0
      %967 = vdwg.mxu0
      %v968 = vpack.c.bf16 %v909, %v906
      %v969 = vpack.c.bf16 %v917, %v914
      %v970 = vpack.c.bf16 %v925, %v922
      %v971 = vpack.c.bf16 %v933, %v930
      %v972 = vpack.c.bf16 %v941, %v938
      %v973 = vpack.c.bf16 %v949, %v946
      %v974 = vpack.c.bf16 %v957, %v954
      %v975 = vpack.c.bf16 %v965, %v962
      %v976 = vlaneseq
      %v977 = vshrl.u32 %v976, 7
      %v978 = vsub.s32 1, %v977
      %v979 = vrot.slane %v455, %v978
      %980 = vmatprep.subr.bf16.mxu0 0
      %981 = vmatpush1.bf16.msra.mxu0 %v975
      %982 = vmatprep.subr.bf16.mxu0 0
      %983 = vmatpush1.bf16.msra.mxu0 %v974
      %984 = vmatprep.subr.bf16.mxu0 0
      %985 = vmatpush1.bf16.msra.mxu0 %v973
      %986 = vmatprep.subr.bf16.mxu0 0
      %987 = vmatpush1.bf16.msra.mxu0 %v972
      %988 = vmatprep.subr.bf16.mxu0 0
      %989 = vmatpush1.bf16.msra.mxu0 %v971
      %990 = vmatprep.subr.bf16.mxu0 0
      %991 = vmatpush1.bf16.msra.mxu0 %v970
      %992 = vmatprep.subr.bf16.mxu0 0
      %993 = vmatpush1.bf16.msra.mxu0 %v969
      %994 = vmatprep.subr.bf16.mxu0 0
      %995 = vmatpush1.bf16.msra.mxu0 %v968
      %996 = vmatprep.subr.bf16.mxu0 0
      %997 = vmatpush2.bf16.msra.mxu0 0
      %998 = vmatprep.subr.bf16.mxu0 0
      %999 = vmatpush2.bf16.msra.mxu0 0
      %1000 = vmatprep.subr.bf16.mxu0 0
      %1001 = vmatpush2.bf16.msra.mxu0 0
      %1002 = vmatprep.subr.bf16.mxu0 0
      %1003 = vmatpush2.bf16.msra.mxu0 0
      %1004 = vmatprep.subr.bf16.mxu0 0
      %1005 = vmatpush2.bf16.msra.mxu0 0
      %1006 = vmatprep.subr.bf16.mxu0 0
      %1007 = vmatpush2.bf16.msra.mxu0 0
      %1008 = vmatprep.subr.bf16.mxu0 0
      %1009 = vmatpush2.bf16.msra.mxu0 0
      %1010 = vmatprep.subr.bf16.mxu0 0
      %1011 = vmatpush2.bf16.msra.mxu0 0
      %1012 = vmatprep.mubr.bf16.mxu0 0
      %1013 = vmatmul.mubr.bf16.gmra.mxu0 %v698
      %v1014 = vpop.f32.mrf.mxu0
      %v1015 = vadd.f32 %v979, %v1014
      %v1016 = vpop.f32.mrf.mxu0
      %v1017 = vpop.f32.mrf.mxu0
      %v1018 = vadd.f32 %v979, %v1017
      %v1019 = vpop.f32.mrf.mxu0
      %1020 = vmatprep.mubr.bf16.mxu0 0
      %1021 = vmatmul.mubr.bf16.gmra.mxu0 %v699
      %v1022 = vpop.f32.mrf.mxu0
      %v1023 = vadd.f32 %v979, %v1022
      %v1024 = vpop.f32.mrf.mxu0
      %v1025 = vpop.f32.mrf.mxu0
      %v1026 = vadd.f32 %v979, %v1025
      %v1027 = vpop.f32.mrf.mxu0
      %1028 = vmatprep.mubr.bf16.mxu0 0
      %1029 = vmatmul.mubr.bf16.gmra.mxu0 %v700
      %v1030 = vpop.f32.mrf.mxu0
      %v1031 = vadd.f32 %v979, %v1030
      %v1032 = vpop.f32.mrf.mxu0
      %v1033 = vpop.f32.mrf.mxu0
      %v1034 = vadd.f32 %v979, %v1033
      %v1035 = vpop.f32.mrf.mxu0
      %1036 = vmatprep.mubr.bf16.mxu0 0
      %1037 = vmatmul.mubr.bf16.gmra.mxu0 %v701
      %v1038 = vpop.f32.mrf.mxu0
      %v1039 = vadd.f32 %v979, %v1038
      %v1040 = vpop.f32.mrf.mxu0
      %v1041 = vpop.f32.mrf.mxu0
      %v1042 = vadd.f32 %v979, %v1041
      %v1043 = vpop.f32.mrf.mxu0
      %1044 = vmatprep.mubr.bf16.mxu0 0
      %1045 = vmatmul.mubr.bf16.gmra.mxu0 %v702
      %v1046 = vpop.f32.mrf.mxu0
      %v1047 = vadd.f32 %v979, %v1046
      %v1048 = vpop.f32.mrf.mxu0
      %v1049 = vpop.f32.mrf.mxu0
      %v1050 = vadd.f32 %v979, %v1049
      %v1051 = vpop.f32.mrf.mxu0
      %1052 = vmatprep.mubr.bf16.mxu0 0
      %1053 = vmatmul.mubr.bf16.gmra.mxu0 %v703
      %v1054 = vpop.f32.mrf.mxu0
      %v1055 = vadd.f32 %v979, %v1054
      %v1056 = vpop.f32.mrf.mxu0
      %v1057 = vpop.f32.mrf.mxu0
      %v1058 = vadd.f32 %v979, %v1057
      %v1059 = vpop.f32.mrf.mxu0
      %1060 = vmatprep.mubr.bf16.mxu0 0
      %1061 = vmatmul.mubr.bf16.gmra.mxu0 %v704
      %v1062 = vpop.f32.mrf.mxu0
      %v1063 = vadd.f32 %v979, %v1062
      %v1064 = vpop.f32.mrf.mxu0
      %v1065 = vpop.f32.mrf.mxu0
      %v1066 = vadd.f32 %v979, %v1065
      %v1067 = vpop.f32.mrf.mxu0
      %1068 = vmatprep.mubr.bf16.mxu0 0
      %1069 = vmatmul.mubr.bf16.gmra.mxu0 %v705
      %v1070 = vpop.f32.mrf.mxu0
      %v1071 = vadd.f32 %v979, %v1070
      %v1072 = vpop.f32.mrf.mxu0
      %v1073 = vpop.f32.mrf.mxu0
      %v1074 = vadd.f32 %v979, %v1073
      %v1075 = vpop.f32.mrf.mxu0
      %1076 = vdwg.mxu0
      %v1077 = vmax.f32 %v1015, 0.0
      %v1078 = vmax.f32 %v1018, 0.0
      %v1079 = vmax.f32 %v1023, 0.0
      %v1080 = vmax.f32 %v1026, 0.0
      %v1081 = vmax.f32 %v1031, 0.0
      %v1082 = vmax.f32 %v1034, 0.0
      %v1083 = vmax.f32 %v1039, 0.0
      %v1084 = vmax.f32 %v1042, 0.0
      %v1085 = vmax.f32 %v1047, 0.0
      %v1086 = vmax.f32 %v1050, 0.0
      %v1087 = vmax.f32 %v1055, 0.0
      %v1088 = vmax.f32 %v1058, 0.0
      %v1089 = vmax.f32 %v1063, 0.0
      %v1090 = vmax.f32 %v1066, 0.0
      %v1091 = vmax.f32 %v1071, 0.0
      %v1092 = vmax.f32 %v1074, 0.0
      %v1093 = vpack.c.bf16 %v1078, %v1077
      %v1094 = vpack.c.bf16 %v1080, %v1079
      %v1095 = vpack.c.bf16 %v1082, %v1081
      %v1096 = vpack.c.bf16 %v1084, %v1083
      %v1097 = vpack.c.bf16 %v1086, %v1085
      %v1098 = vpack.c.bf16 %v1088, %v1087
      %v1099 = vpack.c.bf16 %v1090, %v1089
      %v1100 = vpack.c.bf16 %v1092, %v1091
      %s1101 = scalar_lea.vmem %s4, 64
      %v1102 = vld [vmem:[%s1101] sm:$0xf]
      %v1103 = vld [vmem:[%s1101 + $0x4] sm:$0xf]
      %v1104 = vld [vmem:[%s1101 + $0x8] sm:$0xf]
      %v1105 = vld [vmem:[%s1101 + $0xc] sm:$0xf]
      %v1106 = vlaneseq
      %v1107 = vshrl.u32 %v1106, 7
      %v1108 = vsub.s32 6, %v1107
      %v1109 = vrot.slane %v455, %v1108
      %v1114 = vunpack.c.l.b16 %v1102
      %v1115 = vunpack.c.l.b16 %v1103
      %v1116 = vunpack.c.l.b16 %v1104
      %v1117 = vunpack.c.l.b16 %v1105
      %v1118 = vpack.c.b16 %v1115, %v1114
      %v1119 = vpack.c.b16 %v1117, %v1116
      %v1123 = vsel %vm466, %v1093, 0
      %v1126 = vsel %vm466, %v1094, 0
      %v1129 = vsel %vm466, %v1095, 0
      %v1132 = vsel %vm466, %v1096, 0
      %v1135 = vsel %vm466, %v1097, 0
      %v1138 = vsel %vm466, %v1098, 0
      %v1141 = vsel %vm466, %v1099, 0
      %v1144 = vsel %vm466, %v1100, 0
      %1146 = vmatprep.subr.bf16.mxu0 0
      %1147 = vmatpush1.bf16.msra.mxu0 0
      %1148 = vmatprep.subr.bf16.mxu0 0
      %1149 = vmatpush1.bf16.msra.mxu0 0
      %1150 = vmatprep.subr.bf16.mxu0 0
      %1151 = vmatpush1.bf16.msra.mxu0 0
      %1152 = vmatprep.subr.bf16.mxu0 0
      %1153 = vmatpush1.bf16.msra.mxu0 0
      %1154 = vmatprep.subr.bf16.mxu0 0
      %1155 = vmatpush1.bf16.msra.mxu0 0
      %1156 = vmatprep.subr.bf16.mxu0 0
      %1157 = vmatpush1.bf16.msra.mxu0 0
      %1158 = vmatprep.subr.bf16.mxu0 0
      %1159 = vmatpush1.bf16.msra.mxu0 %v1119
      %1160 = vmatprep.subr.bf16.mxu0 0
      %1161 = vmatpush1.bf16.msra.mxu0 %v1118
      %1162 = vmatprep.subr.bf16.mxu0 0
      %1163 = vmatpush2.bf16.msra.mxu0 0
      %1164 = vmatprep.subr.bf16.mxu0 0
      %1165 = vmatpush2.bf16.msra.mxu0 0
      %1166 = vmatprep.subr.bf16.mxu0 0
      %1167 = vmatpush2.bf16.msra.mxu0 0
      %1168 = vmatprep.subr.bf16.mxu0 0
      %1169 = vmatpush2.bf16.msra.mxu0 0
      %1170 = vmatprep.subr.bf16.mxu0 0
      %1171 = vmatpush2.bf16.msra.mxu0 0
      %1172 = vmatprep.subr.bf16.mxu0 0
      %1173 = vmatpush2.bf16.msra.mxu0 0
      %1174 = vmatprep.subr.bf16.mxu0 0
      %1175 = vmatpush2.bf16.msra.mxu0 0
      %1176 = vmatprep.subr.bf16.mxu0 0
      %1177 = vmatpush2.bf16.msra.mxu0 0
      %1178 = vmatprep.mubr.bf16.mxu0 0
      %1179 = vmatmul.mubr.bf16.gmra.mxu0 %v1123
      %v1180 = vpop.f32.mrf.mxu0
      %v1181 = vadd.f32 %v1109, %v1180
      %v1182 = vpop.f32.mrf.mxu0
      %v1183 = vpop.f32.mrf.mxu0
      %v1184 = vpop.f32.mrf.mxu0
      %1185 = vmatprep.mubr.bf16.mxu0 0
      %1186 = vmatmul.mubr.bf16.gmra.mxu0 %v1126
      %v1187 = vpop.f32.mrf.mxu0
      %v1188 = vadd.f32 %v1109, %v1187
      %v1189 = vpop.f32.mrf.mxu0
      %v1190 = vpop.f32.mrf.mxu0
      %v1191 = vpop.f32.mrf.mxu0
      %1192 = vmatprep.mubr.bf16.mxu0 0
      %1193 = vmatmul.mubr.bf16.gmra.mxu0 %v1129
      %v1194 = vpop.f32.mrf.mxu0
      %v1195 = vadd.f32 %v1109, %v1194
      %v1196 = vpop.f32.mrf.mxu0
      %v1197 = vpop.f32.mrf.mxu0
      %v1198 = vpop.f32.mrf.mxu0
      %1199 = vmatprep.mubr.bf16.mxu0 0
      %1200 = vmatmul.mubr.bf16.gmra.mxu0 %v1132
      %v1201 = vpop.f32.mrf.mxu0
      %v1202 = vadd.f32 %v1109, %v1201
      %v1203 = vpop.f32.mrf.mxu0
      %v1204 = vpop.f32.mrf.mxu0
      %v1205 = vpop.f32.mrf.mxu0
      %1206 = vmatprep.mubr.bf16.mxu0 0
      %1207 = vmatmul.mubr.bf16.gmra.mxu0 %v1135
      %v1208 = vpop.f32.mrf.mxu0
      %v1209 = vadd.f32 %v1109, %v1208
      %v1210 = vpop.f32.mrf.mxu0
      %v1211 = vpop.f32.mrf.mxu0
      %v1212 = vpop.f32.mrf.mxu0
      %1213 = vmatprep.mubr.bf16.mxu0 0
      %1214 = vmatmul.mubr.bf16.gmra.mxu0 %v1138
      %v1215 = vpop.f32.mrf.mxu0
      %v1216 = vadd.f32 %v1109, %v1215
      %v1217 = vpop.f32.mrf.mxu0
      %v1218 = vpop.f32.mrf.mxu0
      %v1219 = vpop.f32.mrf.mxu0
      %1220 = vmatprep.mubr.bf16.mxu0 0
      %1221 = vmatmul.mubr.bf16.gmra.mxu0 %v1141
      %v1222 = vpop.f32.mrf.mxu0
      %v1223 = vadd.f32 %v1109, %v1222
      %v1224 = vpop.f32.mrf.mxu0
      %v1225 = vpop.f32.mrf.mxu0
      %v1226 = vpop.f32.mrf.mxu0
      %1227 = vmatprep.mubr.bf16.mxu0 0
      %1228 = vmatmul.mubr.bf16.gmra.mxu0 %v1144
      %v1229 = vpop.f32.mrf.mxu0
      %v1230 = vadd.f32 %v1109, %v1229
      %v1231 = vpop.f32.mrf.mxu0
      %v1232 = vpop.f32.mrf.mxu0
      %v1233 = vpop.f32.mrf.mxu0
      %1234 = vdwg.mxu0
      %v1235 = vpack.c.bf16 %v1181, %v1181
      %v1236 = vpack.c.bf16 %v1188, %v1188
      %v1237 = vpack.c.bf16 %v1195, %v1195
      %v1238 = vpack.c.bf16 %v1202, %v1202
      %v1239 = vpack.c.bf16 %v1209, %v1209
      %v1240 = vpack.c.bf16 %v1216, %v1216
      %v1241 = vpack.c.bf16 %v1223, %v1223
      %v1242 = vpack.c.bf16 %v1230, %v1230
      %v1243 = vpack.c.bf16 %v1078, %v1078
      %v1244 = vpack.c.bf16 %v1080, %v1080
      %v1245 = vpack.c.bf16 %v1082, %v1082
      %v1246 = vpack.c.bf16 %v1084, %v1084
      %v1247 = vpack.c.bf16 %v1086, %v1086
      %v1248 = vpack.c.bf16 %v1088, %v1088
      %v1249 = vpack.c.bf16 %v1090, %v1090
      %v1250 = vpack.c.bf16 %v1092, %v1092
      %v1251 = vlaneseq
      %v1252 = vshrl.u32 %v1251, 7
      %v1253 = vsub.s32 5, %v1252
      %v1254 = vrot.slane %v455, %v1253
      %v1255 = vmul.f32 %v1077, %v1254
      %v1256 = vmul.f32 %v1079, %v1254
      %v1257 = vmul.f32 %v1081, %v1254
      %v1258 = vmul.f32 %v1083, %v1254
      %v1259 = vmul.f32 %v1085, %v1254
      %v1260 = vmul.f32 %v1087, %v1254
      %v1261 = vmul.f32 %v1089, %v1254
      %v1262 = vmul.f32 %v1091, %v1254
      %v1263 = vsel %vm466, %v1255, 0.0
      %1264 = vadd.xlane.f32.xlu0 %v1263
      %v1265 = vpop.xlane.xlu0 %1264
      %v1266 = vsel %vm466, %v1256, 0.0
      %1267 = vadd.xlane.f32.xlu0 %v1266
      %v1268 = vpop.xlane.xlu0 %1267
      %v1269 = vsel %vm466, %v1257, 0.0
      %1270 = vadd.xlane.f32.xlu0 %v1269
      %v1271 = vpop.xlane.xlu0 %1270
      %v1272 = vsel %vm466, %v1258, 0.0
      %1273 = vadd.xlane.f32.xlu0 %v1272
      %v1274 = vpop.xlane.xlu0 %1273
      %v1275 = vsel %vm466, %v1259, 0.0
      %1276 = vadd.xlane.f32.xlu0 %v1275
      %v1277 = vpop.xlane.xlu0 %1276
      %v1278 = vsel %vm466, %v1260, 0.0
      %1279 = vadd.xlane.f32.xlu0 %v1278
      %v1280 = vpop.xlane.xlu0 %1279
      %v1281 = vsel %vm466, %v1261, 0.0
      %1282 = vadd.xlane.f32.xlu0 %v1281
      %v1283 = vpop.xlane.xlu0 %1282
      %v1284 = vsel %vm466, %v1262, 0.0
      %1285 = vadd.xlane.f32.xlu0 %v1284
      %v1286 = vpop.xlane.xlu0 %1285
      %v1288 = vsel %vm466, %v1235, 0
      %v1291 = vsel %vm466, %v1243, 0
      %1293 = vmatprep.subr.bf16.mxu0 0
      %1294 = vmatpush1.bf16.xpose.msra.mxu0 0
      %1295 = vmatprep.subr.bf16.mxu0 0
      %1296 = vmatpush1.bf16.xpose.msra.mxu0 0
      %1297 = vmatprep.subr.bf16.mxu0 0
      %1298 = vmatpush1.bf16.xpose.msra.mxu0 0
      %1299 = vmatprep.subr.bf16.mxu0 0
      %1300 = vmatpush1.bf16.xpose.msra.mxu0 0
      %1301 = vmatprep.subr.bf16.mxu0 0
      %1302 = vmatpush1.bf16.xpose.msra.mxu0 0
      %1303 = vmatprep.subr.bf16.mxu0 0
      %1304 = vmatpush1.bf16.xpose.msra.mxu0 0
      %1305 = vmatprep.subr.bf16.mxu0 0
      %1306 = vmatpush1.bf16.xpose.msra.mxu0 0
      %1307 = vmatprep.subr.bf16.mxu0 0
      %1308 = vmatpush1.bf16.xpose.msra.mxu0 %v1291
      %1309 = vmatprep.subr.bf16.mxu0 0
      %1310 = vmatpush2.bf16.xpose.msra.mxu0 0
      %1311 = vmatprep.subr.bf16.mxu0 0
      %1312 = vmatpush2.bf16.xpose.msra.mxu0 0
      %1313 = vmatprep.subr.bf16.mxu0 0
      %1314 = vmatpush2.bf16.xpose.msra.mxu0 0
      %1315 = vmatprep.subr.bf16.mxu0 0
      %1316 = vmatpush2.bf16.xpose.msra.mxu0 0
      %1317 = vmatprep.subr.bf16.mxu0 0
      %1318 = vmatpush2.bf16.xpose.msra.mxu0 0
      %1319 = vmatprep.subr.bf16.mxu0 0
      %1320 = vmatpush2.bf16.xpose.msra.mxu0 0
      %1321 = vmatprep.subr.bf16.mxu0 0
      %1322 = vmatpush2.bf16.xpose.msra.mxu0 0
      %1323 = vmatprep.subr.bf16.mxu0 0
      %1324 = vmatpush2.bf16.xpose.msra.mxu0 0
      %1325 = vmatprep.mubr.bf16.mxu0 0
      %1326 = vmatmul.mubr.bf16.gmra.mxu0 %v1288
      %v1327 = vpop.f32.mrf.mxu0
      %v1328 = vadd.f32 %v1265, %v1327
      %v1329 = vpop.f32.mrf.mxu0
      %v1330 = vpop.f32.mrf.mxu0
      %v1331 = vpop.f32.mrf.mxu0
      %1332 = vdwg.mxu0
      %v1334 = vsel %vm466, %v1236, 0
      %v1337 = vsel %vm466, %v1244, 0
      %1339 = vmatprep.subr.bf16.mxu0 0
      %1340 = vmatpush1.bf16.xpose.msra.mxu0 0
      %1341 = vmatprep.subr.bf16.mxu0 0
      %1342 = vmatpush1.bf16.xpose.msra.mxu0 0
      %1343 = vmatprep.subr.bf16.mxu0 0
      %1344 = vmatpush1.bf16.xpose.msra.mxu0 0
      %1345 = vmatprep.subr.bf16.mxu0 0
      %1346 = vmatpush1.bf16.xpose.msra.mxu0 0
      %1347 = vmatprep.subr.bf16.mxu0 0
      %1348 = vmatpush1.bf16.xpose.msra.mxu0 0
      %1349 = vmatprep.subr.bf16.mxu0 0
      %1350 = vmatpush1.bf16.xpose.msra.mxu0 0
      %1351 = vmatprep.subr.bf16.mxu0 0
      %1352 = vmatpush1.bf16.xpose.msra.mxu0 0
      %1353 = vmatprep.subr.bf16.mxu0 0
      %1354 = vmatpush1.bf16.xpose.msra.mxu0 %v1337
      %1355 = vmatprep.subr.bf16.mxu0 0
      %1356 = vmatpush2.bf16.xpose.msra.mxu0 0
      %1357 = vmatprep.subr.bf16.mxu0 0
      %1358 = vmatpush2.bf16.xpose.msra.mxu0 0
      %1359 = vmatprep.subr.bf16.mxu0 0
      %1360 = vmatpush2.bf16.xpose.msra.mxu0 0
      %1361 = vmatprep.subr.bf16.mxu0 0
      %1362 = vmatpush2.bf16.xpose.msra.mxu0 0
      %1363 = vmatprep.subr.bf16.mxu0 0
      %1364 = vmatpush2.bf16.xpose.msra.mxu0 0
      %1365 = vmatprep.subr.bf16.mxu0 0
      %1366 = vmatpush2.bf16.xpose.msra.mxu0 0
      %1367 = vmatprep.subr.bf16.mxu0 0
      %1368 = vmatpush2.bf16.xpose.msra.mxu0 0
      %1369 = vmatprep.subr.bf16.mxu0 0
      %1370 = vmatpush2.bf16.xpose.msra.mxu0 0
      %1371 = vmatprep.mubr.bf16.mxu0 0
      %1372 = vmatmul.mubr.bf16.gmra.mxu0 %v1334
      %v1373 = vpop.f32.mrf.mxu0
      %v1374 = vadd.f32 %v1268, %v1373
      %v1375 = vpop.f32.mrf.mxu0
      %v1376 = vpop.f32.mrf.mxu0
      %v1377 = vpop.f32.mrf.mxu0
      %1378 = vdwg.mxu0
      %v1380 = vsel %vm466, %v1237, 0
      %v1383 = vsel %vm466, %v1245, 0
      %1385 = vmatprep.subr.bf16.mxu0 0
      %1386 = vmatpush1.bf16.xpose.msra.mxu0 0
      %1387 = vmatprep.subr.bf16.mxu0 0
      %1388 = vmatpush1.bf16.xpose.msra.mxu0 0
      %1389 = vmatprep.subr.bf16.mxu0 0
      %1390 = vmatpush1.bf16.xpose.msra.mxu0 0
      %1391 = vmatprep.subr.bf16.mxu0 0
      %1392 = vmatpush1.bf16.xpose.msra.mxu0 0
      %1393 = vmatprep.subr.bf16.mxu0 0
      %1394 = vmatpush1.bf16.xpose.msra.mxu0 0
      %1395 = vmatprep.subr.bf16.mxu0 0
      %1396 = vmatpush1.bf16.xpose.msra.mxu0 0
      %1397 = vmatprep.subr.bf16.mxu0 0
      %1398 = vmatpush1.bf16.xpose.msra.mxu0 0
      %1399 = vmatprep.subr.bf16.mxu0 0
      %1400 = vmatpush1.bf16.xpose.msra.mxu0 %v1383
      %1401 = vmatprep.subr.bf16.mxu0 0
      %1402 = vmatpush2.bf16.xpose.msra.mxu0 0
      %1403 = vmatprep.subr.bf16.mxu0 0
      %1404 = vmatpush2.bf16.xpose.msra.mxu0 0
      %1405 = vmatprep.subr.bf16.mxu0 0
      %1406 = vmatpush2.bf16.xpose.msra.mxu0 0
      %1407 = vmatprep.subr.bf16.mxu0 0
      %1408 = vmatpush2.bf16.xpose.msra.mxu0 0
      %1409 = vmatprep.subr.bf16.mxu0 0
      %1410 = vmatpush2.bf16.xpose.msra.mxu0 0
      %1411 = vmatprep.subr.bf16.mxu0 0
      %1412 = vmatpush2.bf16.xpose.msra.mxu0 0
      %1413 = vmatprep.subr.bf16.mxu0 0
      %1414 = vmatpush2.bf16.xpose.msra.mxu0 0
      %1415 = vmatprep.subr.bf16.mxu0 0
      %1416 = vmatpush2.bf16.xpose.msra.mxu0 0
      %1417 = vmatprep.mubr.bf16.mxu0 0
      %1418 = vmatmul.mubr.bf16.gmra.mxu0 %v1380
      %v1419 = vpop.f32.mrf.mxu0
      %v1420 = vadd.f32 %v1271, %v1419
      %v1421 = vpop.f32.mrf.mxu0
      %v1422 = vpop.f32.mrf.mxu0
      %v1423 = vpop.f32.mrf.mxu0
      %1424 = vdwg.mxu0
      %v1426 = vsel %vm466, %v1238, 0
      %v1429 = vsel %vm466, %v1246, 0
      %1431 = vmatprep.subr.bf16.mxu0 0
      %1432 = vmatpush1.bf16.xpose.msra.mxu0 0
      %1433 = vmatprep.subr.bf16.mxu0 0
      %1434 = vmatpush1.bf16.xpose.msra.mxu0 0
      %1435 = vmatprep.subr.bf16.mxu0 0
      %1436 = vmatpush1.bf16.xpose.msra.mxu0 0
      %1437 = vmatprep.subr.bf16.mxu0 0
      %1438 = vmatpush1.bf16.xpose.msra.mxu0 0
      %1439 = vmatprep.subr.bf16.mxu0 0
      %1440 = vmatpush1.bf16.xpose.msra.mxu0 0
      %1441 = vmatprep.subr.bf16.mxu0 0
      %1442 = vmatpush1.bf16.xpose.msra.mxu0 0
      %1443 = vmatprep.subr.bf16.mxu0 0
      %1444 = vmatpush1.bf16.xpose.msra.mxu0 0
      %1445 = vmatprep.subr.bf16.mxu0 0
      %1446 = vmatpush1.bf16.xpose.msra.mxu0 %v1429
      %1447 = vmatprep.subr.bf16.mxu0 0
      %1448 = vmatpush2.bf16.xpose.msra.mxu0 0
      %1449 = vmatprep.subr.bf16.mxu0 0
      %1450 = vmatpush2.bf16.xpose.msra.mxu0 0
      %1451 = vmatprep.subr.bf16.mxu0 0
      %1452 = vmatpush2.bf16.xpose.msra.mxu0 0
      %1453 = vmatprep.subr.bf16.mxu0 0
      %1454 = vmatpush2.bf16.xpose.msra.mxu0 0
      %1455 = vmatprep.subr.bf16.mxu0 0
      %1456 = vmatpush2.bf16.xpose.msra.mxu0 0
      %1457 = vmatprep.subr.bf16.mxu0 0
      %1458 = vmatpush2.bf16.xpose.msra.mxu0 0
      %1459 = vmatprep.subr.bf16.mxu0 0
      %1460 = vmatpush2.bf16.xpose.msra.mxu0 0
      %1461 = vmatprep.subr.bf16.mxu0 0
      %1462 = vmatpush2.bf16.xpose.msra.mxu0 0
      %1463 = vmatprep.mubr.bf16.mxu0 0
      %1464 = vmatmul.mubr.bf16.gmra.mxu0 %v1426
      %v1465 = vpop.f32.mrf.mxu0
      %v1466 = vadd.f32 %v1274, %v1465
      %v1467 = vpop.f32.mrf.mxu0
      %v1468 = vpop.f32.mrf.mxu0
      %v1469 = vpop.f32.mrf.mxu0
      %1470 = vdwg.mxu0
      %v1472 = vsel %vm466, %v1239, 0
      %v1475 = vsel %vm466, %v1247, 0
      %1477 = vmatprep.subr.bf16.mxu0 0
      %1478 = vmatpush1.bf16.xpose.msra.mxu0 0
      %1479 = vmatprep.subr.bf16.mxu0 0
      %1480 = vmatpush1.bf16.xpose.msra.mxu0 0
      %1481 = vmatprep.subr.bf16.mxu0 0
      %1482 = vmatpush1.bf16.xpose.msra.mxu0 0
      %1483 = vmatprep.subr.bf16.mxu0 0
      %1484 = vmatpush1.bf16.xpose.msra.mxu0 0
      %1485 = vmatprep.subr.bf16.mxu0 0
      %1486 = vmatpush1.bf16.xpose.msra.mxu0 0
      %1487 = vmatprep.subr.bf16.mxu0 0
      %1488 = vmatpush1.bf16.xpose.msra.mxu0 0
      %1489 = vmatprep.subr.bf16.mxu0 0
      %1490 = vmatpush1.bf16.xpose.msra.mxu0 0
      %1491 = vmatprep.subr.bf16.mxu0 0
      %1492 = vmatpush1.bf16.xpose.msra.mxu0 %v1475
      %1493 = vmatprep.subr.bf16.mxu0 0
      %1494 = vmatpush2.bf16.xpose.msra.mxu0 0
      %1495 = vmatprep.subr.bf16.mxu0 0
      %1496 = vmatpush2.bf16.xpose.msra.mxu0 0
      %1497 = vmatprep.subr.bf16.mxu0 0
      %1498 = vmatpush2.bf16.xpose.msra.mxu0 0
      %1499 = vmatprep.subr.bf16.mxu0 0
      %1500 = vmatpush2.bf16.xpose.msra.mxu0 0
      %1501 = vmatprep.subr.bf16.mxu0 0
      %1502 = vmatpush2.bf16.xpose.msra.mxu0 0
      %1503 = vmatprep.subr.bf16.mxu0 0
      %1504 = vmatpush2.bf16.xpose.msra.mxu0 0
      %1505 = vmatprep.subr.bf16.mxu0 0
      %1506 = vmatpush2.bf16.xpose.msra.mxu0 0
      %1507 = vmatprep.subr.bf16.mxu0 0
      %1508 = vmatpush2.bf16.xpose.msra.mxu0 0
      %1509 = vmatprep.mubr.bf16.mxu0 0
      %1510 = vmatmul.mubr.bf16.gmra.mxu0 %v1472
      %v1511 = vpop.f32.mrf.mxu0
      %v1512 = vadd.f32 %v1277, %v1511
      %v1513 = vpop.f32.mrf.mxu0
      %v1514 = vpop.f32.mrf.mxu0
      %v1515 = vpop.f32.mrf.mxu0
      %1516 = vdwg.mxu0
      %v1518 = vsel %vm466, %v1240, 0
      %v1521 = vsel %vm466, %v1248, 0
      %1523 = vmatprep.subr.bf16.mxu0 0
      %1524 = vmatpush1.bf16.xpose.msra.mxu0 0
      %1525 = vmatprep.subr.bf16.mxu0 0
      %1526 = vmatpush1.bf16.xpose.msra.mxu0 0
      %1527 = vmatprep.subr.bf16.mxu0 0
      %1528 = vmatpush1.bf16.xpose.msra.mxu0 0
      %1529 = vmatprep.subr.bf16.mxu0 0
      %1530 = vmatpush1.bf16.xpose.msra.mxu0 0
      %1531 = vmatprep.subr.bf16.mxu0 0
      %1532 = vmatpush1.bf16.xpose.msra.mxu0 0
      %1533 = vmatprep.subr.bf16.mxu0 0
      %1534 = vmatpush1.bf16.xpose.msra.mxu0 0
      %1535 = vmatprep.subr.bf16.mxu0 0
      %1536 = vmatpush1.bf16.xpose.msra.mxu0 0
      %1537 = vmatprep.subr.bf16.mxu0 0
      %1538 = vmatpush1.bf16.xpose.msra.mxu0 %v1521
      %1539 = vmatprep.subr.bf16.mxu0 0
      %1540 = vmatpush2.bf16.xpose.msra.mxu0 0
      %1541 = vmatprep.subr.bf16.mxu0 0
      %1542 = vmatpush2.bf16.xpose.msra.mxu0 0
      %1543 = vmatprep.subr.bf16.mxu0 0
      %1544 = vmatpush2.bf16.xpose.msra.mxu0 0
      %1545 = vmatprep.subr.bf16.mxu0 0
      %1546 = vmatpush2.bf16.xpose.msra.mxu0 0
      %1547 = vmatprep.subr.bf16.mxu0 0
      %1548 = vmatpush2.bf16.xpose.msra.mxu0 0
      %1549 = vmatprep.subr.bf16.mxu0 0
      %1550 = vmatpush2.bf16.xpose.msra.mxu0 0
      %1551 = vmatprep.subr.bf16.mxu0 0
      %1552 = vmatpush2.bf16.xpose.msra.mxu0 0
      %1553 = vmatprep.subr.bf16.mxu0 0
      %1554 = vmatpush2.bf16.xpose.msra.mxu0 0
      %1555 = vmatprep.mubr.bf16.mxu0 0
      %1556 = vmatmul.mubr.bf16.gmra.mxu0 %v1518
      %v1557 = vpop.f32.mrf.mxu0
      %v1558 = vadd.f32 %v1280, %v1557
      %v1559 = vpop.f32.mrf.mxu0
      %v1560 = vpop.f32.mrf.mxu0
      %v1561 = vpop.f32.mrf.mxu0
      %1562 = vdwg.mxu0
      %v1564 = vsel %vm466, %v1241, 0
      %v1567 = vsel %vm466, %v1249, 0
      %1569 = vmatprep.subr.bf16.mxu0 0
      %1570 = vmatpush1.bf16.xpose.msra.mxu0 0
      %1571 = vmatprep.subr.bf16.mxu0 0
      %1572 = vmatpush1.bf16.xpose.msra.mxu0 0
      %1573 = vmatprep.subr.bf16.mxu0 0
      %1574 = vmatpush1.bf16.xpose.msra.mxu0 0
      %1575 = vmatprep.subr.bf16.mxu0 0
      %1576 = vmatpush1.bf16.xpose.msra.mxu0 0
      %1577 = vmatprep.subr.bf16.mxu0 0
      %1578 = vmatpush1.bf16.xpose.msra.mxu0 0
      %1579 = vmatprep.subr.bf16.mxu0 0
      %1580 = vmatpush1.bf16.xpose.msra.mxu0 0
      %1581 = vmatprep.subr.bf16.mxu0 0
      %1582 = vmatpush1.bf16.xpose.msra.mxu0 0
      %1583 = vmatprep.subr.bf16.mxu0 0
      %1584 = vmatpush1.bf16.xpose.msra.mxu0 %v1567
      %1585 = vmatprep.subr.bf16.mxu0 0
      %1586 = vmatpush2.bf16.xpose.msra.mxu0 0
      %1587 = vmatprep.subr.bf16.mxu0 0
      %1588 = vmatpush2.bf16.xpose.msra.mxu0 0
      %1589 = vmatprep.subr.bf16.mxu0 0
      %1590 = vmatpush2.bf16.xpose.msra.mxu0 0
      %1591 = vmatprep.subr.bf16.mxu0 0
      %1592 = vmatpush2.bf16.xpose.msra.mxu0 0
      %1593 = vmatprep.subr.bf16.mxu0 0
      %1594 = vmatpush2.bf16.xpose.msra.mxu0 0
      %1595 = vmatprep.subr.bf16.mxu0 0
      %1596 = vmatpush2.bf16.xpose.msra.mxu0 0
      %1597 = vmatprep.subr.bf16.mxu0 0
      %1598 = vmatpush2.bf16.xpose.msra.mxu0 0
      %1599 = vmatprep.subr.bf16.mxu0 0
      %1600 = vmatpush2.bf16.xpose.msra.mxu0 0
      %1601 = vmatprep.mubr.bf16.mxu0 0
      %1602 = vmatmul.mubr.bf16.gmra.mxu0 %v1564
      %v1603 = vpop.f32.mrf.mxu0
      %v1604 = vadd.f32 %v1283, %v1603
      %v1605 = vpop.f32.mrf.mxu0
      %v1606 = vpop.f32.mrf.mxu0
      %v1607 = vpop.f32.mrf.mxu0
      %1608 = vdwg.mxu0
      %v1610 = vsel %vm466, %v1242, 0
      %v1613 = vsel %vm466, %v1250, 0
      %1615 = vmatprep.subr.bf16.mxu0 0
      %1616 = vmatpush1.bf16.xpose.msra.mxu0 0
      %1617 = vmatprep.subr.bf16.mxu0 0
      %1618 = vmatpush1.bf16.xpose.msra.mxu0 0
      %1619 = vmatprep.subr.bf16.mxu0 0
      %1620 = vmatpush1.bf16.xpose.msra.mxu0 0
      %1621 = vmatprep.subr.bf16.mxu0 0
      %1622 = vmatpush1.bf16.xpose.msra.mxu0 0
      %1623 = vmatprep.subr.bf16.mxu0 0
      %1624 = vmatpush1.bf16.xpose.msra.mxu0 0
      %1625 = vmatprep.subr.bf16.mxu0 0
      %1626 = vmatpush1.bf16.xpose.msra.mxu0 0
      %1627 = vmatprep.subr.bf16.mxu0 0
      %1628 = vmatpush1.bf16.xpose.msra.mxu0 0
      %1629 = vmatprep.subr.bf16.mxu0 0
      %1630 = vmatpush1.bf16.xpose.msra.mxu0 %v1613
      %1631 = vmatprep.subr.bf16.mxu0 0
      %1632 = vmatpush2.bf16.xpose.msra.mxu0 0
      %1633 = vmatprep.subr.bf16.mxu0 0
      %1634 = vmatpush2.bf16.xpose.msra.mxu0 0
      %1635 = vmatprep.subr.bf16.mxu0 0
      %1636 = vmatpush2.bf16.xpose.msra.mxu0 0
      %1637 = vmatprep.subr.bf16.mxu0 0
      %1638 = vmatpush2.bf16.xpose.msra.mxu0 0
      %1639 = vmatprep.subr.bf16.mxu0 0
      %1640 = vmatpush2.bf16.xpose.msra.mxu0 0
      %1641 = vmatprep.subr.bf16.mxu0 0
      %1642 = vmatpush2.bf16.xpose.msra.mxu0 0
      %1643 = vmatprep.subr.bf16.mxu0 0
      %1644 = vmatpush2.bf16.xpose.msra.mxu0 0
      %1645 = vmatprep.subr.bf16.mxu0 0
      %1646 = vmatpush2.bf16.xpose.msra.mxu0 0
      %1647 = vmatprep.mubr.bf16.mxu0 0
      %1648 = vmatmul.mubr.bf16.gmra.mxu0 %v1610
      %v1649 = vpop.f32.mrf.mxu0
      %v1650 = vadd.f32 %v1286, %v1649
      %v1651 = vpop.f32.mrf.mxu0
      %v1652 = vpop.f32.mrf.mxu0
      %v1653 = vpop.f32.mrf.mxu0
      %1654 = vdwg.mxu0
      %s1655 = sld [smem:[#allocation2]]
      %v1656 = vstv %s1655
      %v1657 = vadd.f32 %v1328, %v1656
      %v1658 = vadd.f32 %v1374, %v1656
      %v1659 = vadd.f32 %v1420, %v1656
      %v1660 = vadd.f32 %v1466, %v1656
      %v1661 = vadd.f32 %v1512, %v1656
      %v1662 = vadd.f32 %v1558, %v1656
      %v1663 = vadd.f32 %v1604, %v1656
      %v1664 = vadd.f32 %v1650, %v1656
      %1666 = vset.pattern.permute.xlu0 0
      %1667 = vperm.xlu0 %1666, %v439
      %v1668 = vpop.permute.xlu0 %1667
      %1671 = vset.pattern.permute.xlu0 0
      %1672 = vperm.xlu0 %1671, %v441
      %v1673 = vpop.permute.xlu0 %1672
      %1676 = vset.pattern.permute.xlu0 0
      %1677 = vperm.xlu0 %1676, %v443
      %v1678 = vpop.permute.xlu0 %1677
      %1681 = vset.pattern.permute.xlu0 0
      %1682 = vperm.xlu0 %1681, %v445
      %v1683 = vpop.permute.xlu0 %1682
      %1686 = vset.pattern.permute.xlu0 0
      %1687 = vperm.xlu0 %1686, %v447
      %v1688 = vpop.permute.xlu0 %1687
      %1691 = vset.pattern.permute.xlu0 0
      %1692 = vperm.xlu0 %1691, %v449
      %v1693 = vpop.permute.xlu0 %1692
      %1696 = vset.pattern.permute.xlu0 0
      %1697 = vperm.xlu0 %1696, %v451
      %v1698 = vpop.permute.xlu0 %1697
      %1701 = vset.pattern.permute.xlu0 0
      %1702 = vperm.xlu0 %1701, %v453
      %v1703 = vpop.permute.xlu0 %1702
      %v1705 = vmul.f32 %v1657, %v1668
      %v1706 = vmul.f32 %v1658, %v1673
      %v1707 = vmul.f32 %v1659, %v1678
      %v1708 = vmul.f32 %v1660, %v1683
      %v1709 = vmul.f32 %v1661, %v1688
      %v1710 = vmul.f32 %v1662, %v1693
      %v1711 = vmul.f32 %v1663, %v1698
      %v1712 = vmul.f32 %v1664, %v1703
      %vm1713 = vcmask 64512
      %v1714 = vsel %vm1713, %v1705, -inf
      %v1715 = vrot.slane %v1714, 4
      %v1716 = vmax.f32 %v1714, %v1715
      %v1717 = vrot.slane %v1716, 2
      %v1718 = vmax.f32 %v1716, %v1717
      %v1719 = vrot.slane %v1718, 1
      %v1720 = vmax.f32 %v1718, %v1719
      %v1721 = vsel %vm1713, %v1706, -inf
      %v1722 = vrot.slane %v1721, 4
      %v1723 = vmax.f32 %v1721, %v1722
      %v1724 = vrot.slane %v1723, 2
      %v1725 = vmax.f32 %v1723, %v1724
      %v1726 = vrot.slane %v1725, 1
      %v1727 = vmax.f32 %v1725, %v1726
      %v1728 = vsel %vm1713, %v1707, -inf
      %v1729 = vrot.slane %v1728, 4
      %v1730 = vmax.f32 %v1728, %v1729
      %v1731 = vrot.slane %v1730, 2
      %v1732 = vmax.f32 %v1730, %v1731
      %v1733 = vrot.slane %v1732, 1
      %v1734 = vmax.f32 %v1732, %v1733
      %v1735 = vsel %vm1713, %v1708, -inf
      %v1736 = vrot.slane %v1735, 4
      %v1737 = vmax.f32 %v1735, %v1736
      %v1738 = vrot.slane %v1737, 2
      %v1739 = vmax.f32 %v1737, %v1738
      %v1740 = vrot.slane %v1739, 1
      %v1741 = vmax.f32 %v1739, %v1740
      %v1742 = vsel %vm1713, %v1709, -inf
      %v1743 = vrot.slane %v1742, 4
      %v1744 = vmax.f32 %v1742, %v1743
      %v1745 = vrot.slane %v1744, 2
      %v1746 = vmax.f32 %v1744, %v1745
      %v1747 = vrot.slane %v1746, 1
      %v1748 = vmax.f32 %v1746, %v1747
      %v1749 = vsel %vm1713, %v1710, -inf
      %v1750 = vrot.slane %v1749, 4
      %v1751 = vmax.f32 %v1749, %v1750
      %v1752 = vrot.slane %v1751, 2
      %v1753 = vmax.f32 %v1751, %v1752
      %v1754 = vrot.slane %v1753, 1
      %v1755 = vmax.f32 %v1753, %v1754
      %v1756 = vsel %vm1713, %v1711, -inf
      %v1757 = vrot.slane %v1756, 4
      %v1758 = vmax.f32 %v1756, %v1757
      %v1759 = vrot.slane %v1758, 2
      %v1760 = vmax.f32 %v1758, %v1759
      %v1761 = vrot.slane %v1760, 1
      %v1762 = vmax.f32 %v1760, %v1761
      %v1763 = vsel %vm1713, %v1712, -inf
      %v1764 = vrot.slane %v1763, 4
      %v1765 = vmax.f32 %v1763, %v1764
      %v1766 = vrot.slane %v1765, 2
      %v1767 = vmax.f32 %v1765, %v1766
      %v1768 = vrot.slane %v1767, 1
      %v1769 = vmax.f32 %v1767, %v1768
      %v1770 = vsub.f32 %v1705, %v1720
      %v1771 = vsub.f32 %v1706, %v1727
      %v1772 = vsub.f32 %v1707, %v1734
      %v1773 = vsub.f32 %v1708, %v1741
      %v1774 = vsub.f32 %v1709, %v1748
      %v1775 = vsub.f32 %v1710, %v1755
      %v1776 = vsub.f32 %v1711, %v1762
      %v1777 = vsub.f32 %v1712, %v1769
      %v1778 = vmul.f32 %v1770, 1.442695
      %v1779 = vpow.pop %v1778
      %v1780 = vmul.f32 %v1771, 1.442695
      %v1781 = vpow.pop %v1780
      %v1782 = vmul.f32 %v1772, 1.442695
      %v1783 = vpow.pop %v1782
      %v1784 = vmul.f32 %v1773, 1.442695
      %v1785 = vpow.pop %v1784
      %v1786 = vmul.f32 %v1774, 1.442695
      %v1787 = vpow.pop %v1786
      %v1788 = vmul.f32 %v1775, 1.442695
      %v1789 = vpow.pop %v1788
      %v1790 = vmul.f32 %v1776, 1.442695
      %v1791 = vpow.pop %v1790
      %v1792 = vmul.f32 %v1777, 1.442695
      %v1793 = vpow.pop %v1792
      %v1794 = vsel %vm1713, %v1779, 0.0
      %v1795 = vrot.slane %v1794, 4
      %v1796 = vadd.f32 %v1794, %v1795
      %v1797 = vrot.slane %v1796, 2
      %v1798 = vadd.f32 %v1796, %v1797
      %v1799 = vrot.slane %v1798, 1
      %v1800 = vadd.f32 %v1798, %v1799
      %v1801 = vsel %vm1713, %v1781, 0.0
      %v1802 = vrot.slane %v1801, 4
      %v1803 = vadd.f32 %v1801, %v1802
      %v1804 = vrot.slane %v1803, 2
      %v1805 = vadd.f32 %v1803, %v1804
      %v1806 = vrot.slane %v1805, 1
      %v1807 = vadd.f32 %v1805, %v1806
      %v1808 = vsel %vm1713, %v1783, 0.0
      %v1809 = vrot.slane %v1808, 4
      %v1810 = vadd.f32 %v1808, %v1809
      %v1811 = vrot.slane %v1810, 2
      %v1812 = vadd.f32 %v1810, %v1811
      %v1813 = vrot.slane %v1812, 1
      %v1814 = vadd.f32 %v1812, %v1813
      %v1815 = vsel %vm1713, %v1785, 0.0
      %v1816 = vrot.slane %v1815, 4
      %v1817 = vadd.f32 %v1815, %v1816
      %v1818 = vrot.slane %v1817, 2
      %v1819 = vadd.f32 %v1817, %v1818
      %v1820 = vrot.slane %v1819, 1
      %v1821 = vadd.f32 %v1819, %v1820
      %v1822 = vsel %vm1713, %v1787, 0.0
      %v1823 = vrot.slane %v1822, 4
      %v1824 = vadd.f32 %v1822, %v1823
      %v1825 = vrot.slane %v1824, 2
      %v1826 = vadd.f32 %v1824, %v1825
      %v1827 = vrot.slane %v1826, 1
      %v1828 = vadd.f32 %v1826, %v1827
      %v1829 = vsel %vm1713, %v1789, 0.0
      %v1830 = vrot.slane %v1829, 4
      %v1831 = vadd.f32 %v1829, %v1830
      %v1832 = vrot.slane %v1831, 2
      %v1833 = vadd.f32 %v1831, %v1832
      %v1834 = vrot.slane %v1833, 1
      %v1835 = vadd.f32 %v1833, %v1834
      %v1836 = vsel %vm1713, %v1791, 0.0
      %v1837 = vrot.slane %v1836, 4
      %v1838 = vadd.f32 %v1836, %v1837
      %v1839 = vrot.slane %v1838, 2
      %v1840 = vadd.f32 %v1838, %v1839
      %v1841 = vrot.slane %v1840, 1
      %v1842 = vadd.f32 %v1840, %v1841
      %v1843 = vsel %vm1713, %v1793, 0.0
      %v1844 = vrot.slane %v1843, 4
      %v1845 = vadd.f32 %v1843, %v1844
      %v1846 = vrot.slane %v1845, 2
      %v1847 = vadd.f32 %v1845, %v1846
      %v1848 = vrot.slane %v1847, 1
      %v1849 = vadd.f32 %v1847, %v1848
      %v1850 = vrcp.pop %v1800
      %v1851 = vmul.f32 %v1779, %v1850
      %v1852 = vrcp.pop %v1807
      %v1853 = vmul.f32 %v1781, %v1852
      %v1854 = vrcp.pop %v1814
      %v1855 = vmul.f32 %v1783, %v1854
      %v1856 = vrcp.pop %v1821
      %v1857 = vmul.f32 %v1785, %v1856
      %v1858 = vrcp.pop %v1828
      %v1859 = vmul.f32 %v1787, %v1858
      %v1860 = vrcp.pop %v1835
      %v1861 = vmul.f32 %v1789, %v1860
      %v1862 = vrcp.pop %v1842
      %v1863 = vmul.f32 %v1791, %v1862
      %v1864 = vrcp.pop %v1849
      %v1865 = vmul.f32 %v1793, %v1864
      %v1866 = vmul.f32 %v1851, %v1668
      %v1867 = vmul.f32 %v1853, %v1673
      %v1868 = vmul.f32 %v1855, %v1678
      %v1869 = vmul.f32 %v1857, %v1683
      %v1870 = vmul.f32 %v1859, %v1688
      %v1871 = vmul.f32 %v1861, %v1693
      %v1872 = vmul.f32 %v1863, %v1698
      %v1873 = vmul.f32 %v1865, %v1703
      %v1874 = vsel %vm1713, %v1866, 0.0
      %v1875 = vrot.slane %v1874, 4
      %v1876 = vadd.f32 %v1874, %v1875
      %v1877 = vrot.slane %v1876, 2
      %v1878 = vadd.f32 %v1876, %v1877
      %v1879 = vrot.slane %v1878, 1
      %v1880 = vadd.f32 %v1878, %v1879
      %v1881 = vsel %vm1713, %v1867, 0.0
      %v1882 = vrot.slane %v1881, 4
      %v1883 = vadd.f32 %v1881, %v1882
      %v1884 = vrot.slane %v1883, 2
      %v1885 = vadd.f32 %v1883, %v1884
      %v1886 = vrot.slane %v1885, 1
      %v1887 = vadd.f32 %v1885, %v1886
      %v1888 = vsel %vm1713, %v1868, 0.0
      %v1889 = vrot.slane %v1888, 4
      %v1890 = vadd.f32 %v1888, %v1889
      %v1891 = vrot.slane %v1890, 2
      %v1892 = vadd.f32 %v1890, %v1891
      %v1893 = vrot.slane %v1892, 1
      %v1894 = vadd.f32 %v1892, %v1893
      %v1895 = vsel %vm1713, %v1869, 0.0
      %v1896 = vrot.slane %v1895, 4
      %v1897 = vadd.f32 %v1895, %v1896
      %v1898 = vrot.slane %v1897, 2
      %v1899 = vadd.f32 %v1897, %v1898
      %v1900 = vrot.slane %v1899, 1
      %v1901 = vadd.f32 %v1899, %v1900
      %v1902 = vsel %vm1713, %v1870, 0.0
      %v1903 = vrot.slane %v1902, 4
      %v1904 = vadd.f32 %v1902, %v1903
      %v1905 = vrot.slane %v1904, 2
      %v1906 = vadd.f32 %v1904, %v1905
      %v1907 = vrot.slane %v1906, 1
      %v1908 = vadd.f32 %v1906, %v1907
      %v1909 = vsel %vm1713, %v1871, 0.0
      %v1910 = vrot.slane %v1909, 4
      %v1911 = vadd.f32 %v1909, %v1910
      %v1912 = vrot.slane %v1911, 2
      %v1913 = vadd.f32 %v1911, %v1912
      %v1914 = vrot.slane %v1913, 1
      %v1915 = vadd.f32 %v1913, %v1914
      %v1916 = vsel %vm1713, %v1872, 0.0
      %v1917 = vrot.slane %v1916, 4
      %v1918 = vadd.f32 %v1916, %v1917
      %v1919 = vrot.slane %v1918, 2
      %v1920 = vadd.f32 %v1918, %v1919
      %v1921 = vrot.slane %v1920, 1
      %v1922 = vadd.f32 %v1920, %v1921
      %v1923 = vsel %vm1713, %v1873, 0.0
      %v1924 = vrot.slane %v1923, 4
      %v1925 = vadd.f32 %v1923, %v1924
      %v1926 = vrot.slane %v1925, 2
      %v1927 = vadd.f32 %v1925, %v1926
      %v1928 = vrot.slane %v1927, 1
      %v1929 = vadd.f32 %v1927, %v1928
      %v1930 = vadd.f32 %v1880, 1e-13
      %v1931 = vadd.f32 %v1887, 1e-13
      %v1932 = vadd.f32 %v1894, 1e-13
      %v1933 = vadd.f32 %v1901, 1e-13
      %v1934 = vadd.f32 %v1908, 1e-13
      %v1935 = vadd.f32 %v1915, 1e-13
      %v1936 = vadd.f32 %v1922, 1e-13
      %v1937 = vadd.f32 %v1929, 1e-13
      %v1938 = vrcp.pop %v1930
      %v1939 = vmul.f32 %v1866, %v1938
      %v1940 = vrcp.pop %v1931
      %v1941 = vmul.f32 %v1867, %v1940
      %v1942 = vrcp.pop %v1932
      %v1943 = vmul.f32 %v1868, %v1942
      %v1944 = vrcp.pop %v1933
      %v1945 = vmul.f32 %v1869, %v1944
      %v1946 = vrcp.pop %v1934
      %v1947 = vmul.f32 %v1870, %v1946
      %v1948 = vrcp.pop %v1935
      %v1949 = vmul.f32 %v1871, %v1948
      %v1950 = vrcp.pop %v1936
      %v1951 = vmul.f32 %v1872, %v1950
      %v1952 = vrcp.pop %v1937
      %v1953 = vmul.f32 %v1873, %v1952
      %1954 = vxpose.xlu0.b32.start [1/16] %v1939, 128
      %1955 = vxpose.xlu0.b32.cont [2/16] 0.0, 128
      %1956 = vxpose.xlu0.b32.cont [3/16] 0.0, 128
      %1957 = vxpose.xlu0.b32.cont [4/16] 0.0, 128
      %1958 = vxpose.xlu0.b32.cont [5/16] 0.0, 128
      %1959 = vxpose.xlu0.b32.cont [6/16] 0.0, 128
      %1960 = vxpose.xlu0.b32.cont [7/16] 0.0, 128
      %1961 = vxpose.xlu0.b32.cont [8/16] 0.0, 128
      %1962 = vxpose.xlu0.b32.cont [9/16] 0.0, 128
      %1963 = vxpose.xlu0.b32.cont [10/16] 0.0, 128
      %1964 = vxpose.xlu0.b32.cont [11/16] 0.0, 128
      %1965 = vxpose.xlu0.b32.cont [12/16] 0.0, 128
      %1966 = vxpose.xlu0.b32.cont [13/16] 0.0, 128
      %1967 = vxpose.xlu0.b32.cont [14/16] 0.0, 128
      %1968 = vxpose.xlu0.b32.cont [15/16] 0.0, 128
      %1969 = vxpose.xlu0.b32.end [16/16] 0.0, 128
      %v1970 = vpop.trf.xlu0
      %v1971 = vpop.trf.xlu0
      %v1972 = vpop.trf.xlu0
      %v1973 = vpop.trf.xlu0
      %v1974 = vpop.trf.xlu0
      %v1975 = vpop.trf.xlu0
      %v1976 = vpop.trf.xlu0
      %v1977 = vpop.trf.xlu0
      %v1978 = vpop.trf.xlu0
      %v1979 = vpop.trf.xlu0
      %v1980 = vpop.trf.xlu0
      %v1981 = vpop.trf.xlu0
      %v1982 = vpop.trf.xlu0
      %v1983 = vpop.trf.xlu0
      %v1984 = vpop.trf.xlu0
      %v1985 = vpop.trf.xlu0
      %1986 = vxpose.xlu0.b32.start [1/16] %v1941, 128
      %1987 = vxpose.xlu0.b32.cont [2/16] 0.0, 128
      %1988 = vxpose.xlu0.b32.cont [3/16] 0.0, 128
      %1989 = vxpose.xlu0.b32.cont [4/16] 0.0, 128
      %1990 = vxpose.xlu0.b32.cont [5/16] 0.0, 128
      %1991 = vxpose.xlu0.b32.cont [6/16] 0.0, 128
      %1992 = vxpose.xlu0.b32.cont [7/16] 0.0, 128
      %1993 = vxpose.xlu0.b32.cont [8/16] 0.0, 128
      %1994 = vxpose.xlu0.b32.cont [9/16] 0.0, 128
      %1995 = vxpose.xlu0.b32.cont [10/16] 0.0, 128
      %1996 = vxpose.xlu0.b32.cont [11/16] 0.0, 128
      %1997 = vxpose.xlu0.b32.cont [12/16] 0.0, 128
      %1998 = vxpose.xlu0.b32.cont [13/16] 0.0, 128
      %1999 = vxpose.xlu0.b32.cont [14/16] 0.0, 128
      %2000 = vxpose.xlu0.b32.cont [15/16] 0.0, 128
      %2001 = vxpose.xlu0.b32.end [16/16] 0.0, 128
      %v2002 = vpop.trf.xlu0
      %v2003 = vpop.trf.xlu0
      %v2004 = vpop.trf.xlu0
      %v2005 = vpop.trf.xlu0
      %v2006 = vpop.trf.xlu0
      %v2007 = vpop.trf.xlu0
      %v2008 = vpop.trf.xlu0
      %v2009 = vpop.trf.xlu0
      %v2010 = vpop.trf.xlu0
      %v2011 = vpop.trf.xlu0
      %v2012 = vpop.trf.xlu0
      %v2013 = vpop.trf.xlu0
      %v2014 = vpop.trf.xlu0
      %v2015 = vpop.trf.xlu0
      %v2016 = vpop.trf.xlu0
      %v2017 = vpop.trf.xlu0
      %2018 = vxpose.xlu0.b32.start [1/16] %v1943, 128
      %2019 = vxpose.xlu0.b32.cont [2/16] 0.0, 128
      %2020 = vxpose.xlu0.b32.cont [3/16] 0.0, 128
      %2021 = vxpose.xlu0.b32.cont [4/16] 0.0, 128
      %2022 = vxpose.xlu0.b32.cont [5/16] 0.0, 128
      %2023 = vxpose.xlu0.b32.cont [6/16] 0.0, 128
      %2024 = vxpose.xlu0.b32.cont [7/16] 0.0, 128
      %2025 = vxpose.xlu0.b32.cont [8/16] 0.0, 128
      %2026 = vxpose.xlu0.b32.cont [9/16] 0.0, 128
      %2027 = vxpose.xlu0.b32.cont [10/16] 0.0, 128
      %2028 = vxpose.xlu0.b32.cont [11/16] 0.0, 128
      %2029 = vxpose.xlu0.b32.cont [12/16] 0.0, 128
      %2030 = vxpose.xlu0.b32.cont [13/16] 0.0, 128
      %2031 = vxpose.xlu0.b32.cont [14/16] 0.0, 128
      %2032 = vxpose.xlu0.b32.cont [15/16] 0.0, 128
      %2033 = vxpose.xlu0.b32.end [16/16] 0.0, 128
      %v2034 = vpop.trf.xlu0
      %v2035 = vpop.trf.xlu0
      %v2036 = vpop.trf.xlu0
      %v2037 = vpop.trf.xlu0
      %v2038 = vpop.trf.xlu0
      %v2039 = vpop.trf.xlu0
      %v2040 = vpop.trf.xlu0
      %v2041 = vpop.trf.xlu0
      %v2042 = vpop.trf.xlu0
      %v2043 = vpop.trf.xlu0
      %v2044 = vpop.trf.xlu0
      %v2045 = vpop.trf.xlu0
      %v2046 = vpop.trf.xlu0
      %v2047 = vpop.trf.xlu0
      %v2048 = vpop.trf.xlu0
      %v2049 = vpop.trf.xlu0
      %2050 = vxpose.xlu0.b32.start [1/16] %v1945, 128
      %2051 = vxpose.xlu0.b32.cont [2/16] 0.0, 128
      %2052 = vxpose.xlu0.b32.cont [3/16] 0.0, 128
      %2053 = vxpose.xlu0.b32.cont [4/16] 0.0, 128
      %2054 = vxpose.xlu0.b32.cont [5/16] 0.0, 128
      %2055 = vxpose.xlu0.b32.cont [6/16] 0.0, 128
      %2056 = vxpose.xlu0.b32.cont [7/16] 0.0, 128
      %2057 = vxpose.xlu0.b32.cont [8/16] 0.0, 128
      %2058 = vxpose.xlu0.b32.cont [9/16] 0.0, 128
      %2059 = vxpose.xlu0.b32.cont [10/16] 0.0, 128
      %2060 = vxpose.xlu0.b32.cont [11/16] 0.0, 128
      %2061 = vxpose.xlu0.b32.cont [12/16] 0.0, 128
      %2062 = vxpose.xlu0.b32.cont [13/16] 0.0, 128
      %2063 = vxpose.xlu0.b32.cont [14/16] 0.0, 128
      %2064 = vxpose.xlu0.b32.cont [15/16] 0.0, 128
      %2065 = vxpose.xlu0.b32.end [16/16] 0.0, 128
      %v2066 = vpop.trf.xlu0
      %v2067 = vpop.trf.xlu0
      %v2068 = vpop.trf.xlu0
      %v2069 = vpop.trf.xlu0
      %v2070 = vpop.trf.xlu0
      %v2071 = vpop.trf.xlu0
      %v2072 = vpop.trf.xlu0
      %v2073 = vpop.trf.xlu0
      %v2074 = vpop.trf.xlu0
      %v2075 = vpop.trf.xlu0
      %v2076 = vpop.trf.xlu0
      %v2077 = vpop.trf.xlu0
      %v2078 = vpop.trf.xlu0
      %v2079 = vpop.trf.xlu0
      %v2080 = vpop.trf.xlu0
      %v2081 = vpop.trf.xlu0
      %2082 = vxpose.xlu0.b32.start [1/16] %v1947, 128
      %2083 = vxpose.xlu0.b32.cont [2/16] 0.0, 128
      %2084 = vxpose.xlu0.b32.cont [3/16] 0.0, 128
      %2085 = vxpose.xlu0.b32.cont [4/16] 0.0, 128
      %2086 = vxpose.xlu0.b32.cont [5/16] 0.0, 128
      %2087 = vxpose.xlu0.b32.cont [6/16] 0.0, 128
      %2088 = vxpose.xlu0.b32.cont [7/16] 0.0, 128
      %2089 = vxpose.xlu0.b32.cont [8/16] 0.0, 128
      %2090 = vxpose.xlu0.b32.cont [9/16] 0.0, 128
      %2091 = vxpose.xlu0.b32.cont [10/16] 0.0, 128
      %2092 = vxpose.xlu0.b32.cont [11/16] 0.0, 128
      %2093 = vxpose.xlu0.b32.cont [12/16] 0.0, 128
      %2094 = vxpose.xlu0.b32.cont [13/16] 0.0, 128
      %2095 = vxpose.xlu0.b32.cont [14/16] 0.0, 128
      %2096 = vxpose.xlu0.b32.cont [15/16] 0.0, 128
      %2097 = vxpose.xlu0.b32.end [16/16] 0.0, 128
      %v2098 = vpop.trf.xlu0
      %v2099 = vpop.trf.xlu0
      %v2100 = vpop.trf.xlu0
      %v2101 = vpop.trf.xlu0
      %v2102 = vpop.trf.xlu0
      %v2103 = vpop.trf.xlu0
      %v2104 = vpop.trf.xlu0
      %v2105 = vpop.trf.xlu0
      %v2106 = vpop.trf.xlu0
      %v2107 = vpop.trf.xlu0
      %v2108 = vpop.trf.xlu0
      %v2109 = vpop.trf.xlu0
      %v2110 = vpop.trf.xlu0
      %v2111 = vpop.trf.xlu0
      %v2112 = vpop.trf.xlu0
      %v2113 = vpop.trf.xlu0
      %2114 = vxpose.xlu0.b32.start [1/16] %v1949, 128
      %2115 = vxpose.xlu0.b32.cont [2/16] 0.0, 128
      %2116 = vxpose.xlu0.b32.cont [3/16] 0.0, 128
      %2117 = vxpose.xlu0.b32.cont [4/16] 0.0, 128
      %2118 = vxpose.xlu0.b32.cont [5/16] 0.0, 128
      %2119 = vxpose.xlu0.b32.cont [6/16] 0.0, 128
      %2120 = vxpose.xlu0.b32.cont [7/16] 0.0, 128
      %2121 = vxpose.xlu0.b32.cont [8/16] 0.0, 128
      %2122 = vxpose.xlu0.b32.cont [9/16] 0.0, 128
      %2123 = vxpose.xlu0.b32.cont [10/16] 0.0, 128
      %2124 = vxpose.xlu0.b32.cont [11/16] 0.0, 128
      %2125 = vxpose.xlu0.b32.cont [12/16] 0.0, 128
      %2126 = vxpose.xlu0.b32.cont [13/16] 0.0, 128
      %2127 = vxpose.xlu0.b32.cont [14/16] 0.0, 128
      %2128 = vxpose.xlu0.b32.cont [15/16] 0.0, 128
      %2129 = vxpose.xlu0.b32.end [16/16] 0.0, 128
      %v2130 = vpop.trf.xlu0
      %v2131 = vpop.trf.xlu0
      %v2132 = vpop.trf.xlu0
      %v2133 = vpop.trf.xlu0
      %v2134 = vpop.trf.xlu0
      %v2135 = vpop.trf.xlu0
      %v2136 = vpop.trf.xlu0
      %v2137 = vpop.trf.xlu0
      %v2138 = vpop.trf.xlu0
      %v2139 = vpop.trf.xlu0
      %v2140 = vpop.trf.xlu0
      %v2141 = vpop.trf.xlu0
      %v2142 = vpop.trf.xlu0
      %v2143 = vpop.trf.xlu0
      %v2144 = vpop.trf.xlu0
      %v2145 = vpop.trf.xlu0
      %2146 = vxpose.xlu0.b32.start [1/16] %v1951, 128
      %2147 = vxpose.xlu0.b32.cont [2/16] 0.0, 128
      %2148 = vxpose.xlu0.b32.cont [3/16] 0.0, 128
      %2149 = vxpose.xlu0.b32.cont [4/16] 0.0, 128
      %2150 = vxpose.xlu0.b32.cont [5/16] 0.0, 128
      %2151 = vxpose.xlu0.b32.cont [6/16] 0.0, 128
      %2152 = vxpose.xlu0.b32.cont [7/16] 0.0, 128
      %2153 = vxpose.xlu0.b32.cont [8/16] 0.0, 128
      %2154 = vxpose.xlu0.b32.cont [9/16] 0.0, 128
      %2155 = vxpose.xlu0.b32.cont [10/16] 0.0, 128
      %2156 = vxpose.xlu0.b32.cont [11/16] 0.0, 128
      %2157 = vxpose.xlu0.b32.cont [12/16] 0.0, 128
      %2158 = vxpose.xlu0.b32.cont [13/16] 0.0, 128
      %2159 = vxpose.xlu0.b32.cont [14/16] 0.0, 128
      %2160 = vxpose.xlu0.b32.cont [15/16] 0.0, 128
      %2161 = vxpose.xlu0.b32.end [16/16] 0.0, 128
      %v2162 = vpop.trf.xlu0
      %v2163 = vpop.trf.xlu0
      %v2164 = vpop.trf.xlu0
      %v2165 = vpop.trf.xlu0
      %v2166 = vpop.trf.xlu0
      %v2167 = vpop.trf.xlu0
      %v2168 = vpop.trf.xlu0
      %v2169 = vpop.trf.xlu0
      %v2170 = vpop.trf.xlu0
      %v2171 = vpop.trf.xlu0
      %v2172 = vpop.trf.xlu0
      %v2173 = vpop.trf.xlu0
      %v2174 = vpop.trf.xlu0
      %v2175 = vpop.trf.xlu0
      %v2176 = vpop.trf.xlu0
      %v2177 = vpop.trf.xlu0
      %2178 = vxpose.xlu0.b32.start [1/16] %v1953, 128
      %2179 = vxpose.xlu0.b32.cont [2/16] 0.0, 128
      %2180 = vxpose.xlu0.b32.cont [3/16] 0.0, 128
      %2181 = vxpose.xlu0.b32.cont [4/16] 0.0, 128
      %2182 = vxpose.xlu0.b32.cont [5/16] 0.0, 128
      %2183 = vxpose.xlu0.b32.cont [6/16] 0.0, 128
      %2184 = vxpose.xlu0.b32.cont [7/16] 0.0, 128
      %2185 = vxpose.xlu0.b32.cont [8/16] 0.0, 128
      %2186 = vxpose.xlu0.b32.cont [9/16] 0.0, 128
      %2187 = vxpose.xlu0.b32.cont [10/16] 0.0, 128
      %2188 = vxpose.xlu0.b32.cont [11/16] 0.0, 128
      %2189 = vxpose.xlu0.b32.cont [12/16] 0.0, 128
      %2190 = vxpose.xlu0.b32.cont [13/16] 0.0, 128
      %2191 = vxpose.xlu0.b32.cont [14/16] 0.0, 128
      %2192 = vxpose.xlu0.b32.cont [15/16] 0.0, 128
      %2193 = vxpose.xlu0.b32.end [16/16] 0.0, 128
      %v2194 = vpop.trf.xlu0
      %v2195 = vpop.trf.xlu0
      %v2196 = vpop.trf.xlu0
      %v2197 = vpop.trf.xlu0
      %v2198 = vpop.trf.xlu0
      %v2199 = vpop.trf.xlu0
      %v2200 = vpop.trf.xlu0
      %v2201 = vpop.trf.xlu0
      %v2202 = vpop.trf.xlu0
      %v2203 = vpop.trf.xlu0
      %v2204 = vpop.trf.xlu0
      %v2205 = vpop.trf.xlu0
      %v2206 = vpop.trf.xlu0
      %v2207 = vpop.trf.xlu0
      %v2208 = vpop.trf.xlu0
      %v2209 = vpop.trf.xlu0
      %v2210 = vpack.c.bf16 %v1970, %v1970
      %v2211 = vpack.c.bf16 %v2002, %v2002
      %v2212 = vpack.c.bf16 %v2034, %v2034
      %v2213 = vpack.c.bf16 %v2066, %v2066
      %v2214 = vpack.c.bf16 %v2098, %v2098
      %v2215 = vpack.c.bf16 %v2130, %v2130
      %v2216 = vpack.c.bf16 %v2162, %v2162
      %v2217 = vpack.c.bf16 %v2194, %v2194
      %v2218 = vpack.c.bf16 %v1077, %v1077
      %v2219 = vpack.c.bf16 %v1079, %v1079
      %v2220 = vpack.c.bf16 %v1081, %v1081
      %v2221 = vpack.c.bf16 %v1083, %v1083
      %v2222 = vpack.c.bf16 %v1085, %v1085
      %v2223 = vpack.c.bf16 %v1087, %v1087
      %v2224 = vpack.c.bf16 %v1089, %v1089
      %v2225 = vpack.c.bf16 %v1091, %v1091
      %v2227 = vsel %vm1713, %v2210, 0
      %vm2229 = vcmask 1043456
      %v2231 = vsel %vm2229, %v2218, 0
      %2233 = vmatprep.subr.bf16.mxu0 0
      %2234 = vmatpush1.bf16.msra.mxu0 0
      %2235 = vmatprep.subr.bf16.mxu0 0
      %2236 = vmatpush1.bf16.msra.mxu0 0
      %2237 = vmatprep.subr.bf16.mxu0 0
      %2238 = vmatpush1.bf16.msra.mxu0 0
      %2239 = vmatprep.subr.bf16.mxu0 0
      %2240 = vmatpush1.bf16.msra.mxu0 0
      %2241 = vmatprep.subr.bf16.mxu0 0
      %2242 = vmatpush1.bf16.msra.mxu0 0
      %2243 = vmatprep.subr.bf16.mxu0 0
      %2244 = vmatpush1.bf16.msra.mxu0 0
      %2245 = vmatprep.subr.bf16.mxu0 0
      %2246 = vmatpush1.bf16.msra.mxu0 0
      %2247 = vmatprep.subr.bf16.mxu0 0
      %2248 = vmatpush1.bf16.msra.mxu0 %v2231
      %2249 = vmatprep.subr.bf16.mxu0 0
      %2250 = vmatpush2.bf16.msra.mxu0 0
      %2251 = vmatprep.subr.bf16.mxu0 0
      %2252 = vmatpush2.bf16.msra.mxu0 0
      %2253 = vmatprep.subr.bf16.mxu0 0
      %2254 = vmatpush2.bf16.msra.mxu0 0
      %2255 = vmatprep.subr.bf16.mxu0 0
      %2256 = vmatpush2.bf16.msra.mxu0 0
      %2257 = vmatprep.subr.bf16.mxu0 0
      %2258 = vmatpush2.bf16.msra.mxu0 0
      %2259 = vmatprep.subr.bf16.mxu0 0
      %2260 = vmatpush2.bf16.msra.mxu0 0
      %2261 = vmatprep.subr.bf16.mxu0 0
      %2262 = vmatpush2.bf16.msra.mxu0 0
      %2263 = vmatprep.subr.bf16.mxu0 0
      %2264 = vmatpush2.bf16.msra.mxu0 0
      %2265 = vmatprep.mubr.bf16.mxu0 0
      %2266 = vmatmul.mubr.bf16.gmra.mxu0 %v2227
      %v2267 = vpop.f32.mrf.mxu0
      %v2268 = vadd.f32 0.0, %v2267
      %v2269 = vpop.f32.mrf.mxu0
      %v2270 = vpop.f32.mrf.mxu0
      %v2271 = vpop.f32.mrf.mxu0
      %2272 = vdwg.mxu0
      %v2274 = vsel %vm1713, %v2211, 0
      %v2277 = vsel %vm2229, %v2219, 0
      %2279 = vmatprep.subr.bf16.mxu0 0
      %2280 = vmatpush1.bf16.msra.mxu0 0
      %2281 = vmatprep.subr.bf16.mxu0 0
      %2282 = vmatpush1.bf16.msra.mxu0 0
      %2283 = vmatprep.subr.bf16.mxu0 0
      %2284 = vmatpush1.bf16.msra.mxu0 0
      %2285 = vmatprep.subr.bf16.mxu0 0
      %2286 = vmatpush1.bf16.msra.mxu0 0
      %2287 = vmatprep.subr.bf16.mxu0 0
      %2288 = vmatpush1.bf16.msra.mxu0 0
      %2289 = vmatprep.subr.bf16.mxu0 0
      %2290 = vmatpush1.bf16.msra.mxu0 0
      %2291 = vmatprep.subr.bf16.mxu0 0
      %2292 = vmatpush1.bf16.msra.mxu0 0
      %2293 = vmatprep.subr.bf16.mxu0 0
      %2294 = vmatpush1.bf16.msra.mxu0 %v2277
      %2295 = vmatprep.subr.bf16.mxu0 0
      %2296 = vmatpush2.bf16.msra.mxu0 0
      %2297 = vmatprep.subr.bf16.mxu0 0
      %2298 = vmatpush2.bf16.msra.mxu0 0
      %2299 = vmatprep.subr.bf16.mxu0 0
      %2300 = vmatpush2.bf16.msra.mxu0 0
      %2301 = vmatprep.subr.bf16.mxu0 0
      %2302 = vmatpush2.bf16.msra.mxu0 0
      %2303 = vmatprep.subr.bf16.mxu0 0
      %2304 = vmatpush2.bf16.msra.mxu0 0
      %2305 = vmatprep.subr.bf16.mxu0 0
      %2306 = vmatpush2.bf16.msra.mxu0 0
      %2307 = vmatprep.subr.bf16.mxu0 0
      %2308 = vmatpush2.bf16.msra.mxu0 0
      %2309 = vmatprep.subr.bf16.mxu0 0
      %2310 = vmatpush2.bf16.msra.mxu0 0
      %2311 = vmatprep.mubr.bf16.mxu0 0
      %2312 = vmatmul.mubr.bf16.gmra.mxu0 %v2274
      %v2313 = vpop.f32.mrf.mxu0
      %v2314 = vadd.f32 0.0, %v2313
      %v2315 = vpop.f32.mrf.mxu0
      %v2316 = vpop.f32.mrf.mxu0
      %v2317 = vpop.f32.mrf.mxu0
      %2318 = vdwg.mxu0
      %v2320 = vsel %vm1713, %v2212, 0
      %v2323 = vsel %vm2229, %v2220, 0
      %2325 = vmatprep.subr.bf16.mxu0 0
      %2326 = vmatpush1.bf16.msra.mxu0 0
      %2327 = vmatprep.subr.bf16.mxu0 0
      %2328 = vmatpush1.bf16.msra.mxu0 0
      %2329 = vmatprep.subr.bf16.mxu0 0
      %2330 = vmatpush1.bf16.msra.mxu0 0
      %2331 = vmatprep.subr.bf16.mxu0 0
      %2332 = vmatpush1.bf16.msra.mxu0 0
      %2333 = vmatprep.subr.bf16.mxu0 0
      %2334 = vmatpush1.bf16.msra.mxu0 0
      %2335 = vmatprep.subr.bf16.mxu0 0
      %2336 = vmatpush1.bf16.msra.mxu0 0
      %2337 = vmatprep.subr.bf16.mxu0 0
      %2338 = vmatpush1.bf16.msra.mxu0 0
      %2339 = vmatprep.subr.bf16.mxu0 0
      %2340 = vmatpush1.bf16.msra.mxu0 %v2323
      %2341 = vmatprep.subr.bf16.mxu0 0
      %2342 = vmatpush2.bf16.msra.mxu0 0
      %2343 = vmatprep.subr.bf16.mxu0 0
      %2344 = vmatpush2.bf16.msra.mxu0 0
      %2345 = vmatprep.subr.bf16.mxu0 0
      %2346 = vmatpush2.bf16.msra.mxu0 0
      %2347 = vmatprep.subr.bf16.mxu0 0
      %2348 = vmatpush2.bf16.msra.mxu0 0
      %2349 = vmatprep.subr.bf16.mxu0 0
      %2350 = vmatpush2.bf16.msra.mxu0 0
      %2351 = vmatprep.subr.bf16.mxu0 0
      %2352 = vmatpush2.bf16.msra.mxu0 0
      %2353 = vmatprep.subr.bf16.mxu0 0
      %2354 = vmatpush2.bf16.msra.mxu0 0
      %2355 = vmatprep.subr.bf16.mxu0 0
      %2356 = vmatpush2.bf16.msra.mxu0 0
      %2357 = vmatprep.mubr.bf16.mxu0 0
      %2358 = vmatmul.mubr.bf16.gmra.mxu0 %v2320
      %v2359 = vpop.f32.mrf.mxu0
      %v2360 = vadd.f32 0.0, %v2359
      %v2361 = vpop.f32.mrf.mxu0
      %v2362 = vpop.f32.mrf.mxu0
      %v2363 = vpop.f32.mrf.mxu0
      %2364 = vdwg.mxu0
      %v2366 = vsel %vm1713, %v2213, 0
      %v2369 = vsel %vm2229, %v2221, 0
      %2371 = vmatprep.subr.bf16.mxu0 0
      %2372 = vmatpush1.bf16.msra.mxu0 0
      %2373 = vmatprep.subr.bf16.mxu0 0
      %2374 = vmatpush1.bf16.msra.mxu0 0
      %2375 = vmatprep.subr.bf16.mxu0 0
      %2376 = vmatpush1.bf16.msra.mxu0 0
      %2377 = vmatprep.subr.bf16.mxu0 0
      %2378 = vmatpush1.bf16.msra.mxu0 0
      %2379 = vmatprep.subr.bf16.mxu0 0
      %2380 = vmatpush1.bf16.msra.mxu0 0
      %2381 = vmatprep.subr.bf16.mxu0 0
      %2382 = vmatpush1.bf16.msra.mxu0 0
      %2383 = vmatprep.subr.bf16.mxu0 0
      %2384 = vmatpush1.bf16.msra.mxu0 0
      %2385 = vmatprep.subr.bf16.mxu0 0
      %2386 = vmatpush1.bf16.msra.mxu0 %v2369
      %2387 = vmatprep.subr.bf16.mxu0 0
      %2388 = vmatpush2.bf16.msra.mxu0 0
      %2389 = vmatprep.subr.bf16.mxu0 0
      %2390 = vmatpush2.bf16.msra.mxu0 0
      %2391 = vmatprep.subr.bf16.mxu0 0
      %2392 = vmatpush2.bf16.msra.mxu0 0
      %2393 = vmatprep.subr.bf16.mxu0 0
      %2394 = vmatpush2.bf16.msra.mxu0 0
      %2395 = vmatprep.subr.bf16.mxu0 0
      %2396 = vmatpush2.bf16.msra.mxu0 0
      %2397 = vmatprep.subr.bf16.mxu0 0
      %2398 = vmatpush2.bf16.msra.mxu0 0
      %2399 = vmatprep.subr.bf16.mxu0 0
      %2400 = vmatpush2.bf16.msra.mxu0 0
      %2401 = vmatprep.subr.bf16.mxu0 0
      %2402 = vmatpush2.bf16.msra.mxu0 0
      %2403 = vmatprep.mubr.bf16.mxu0 0
      %2404 = vmatmul.mubr.bf16.gmra.mxu0 %v2366
      %v2405 = vpop.f32.mrf.mxu0
      %v2406 = vadd.f32 0.0, %v2405
      %v2407 = vpop.f32.mrf.mxu0
      %v2408 = vpop.f32.mrf.mxu0
      %v2409 = vpop.f32.mrf.mxu0
      %2410 = vdwg.mxu0
      %v2412 = vsel %vm1713, %v2214, 0
      %v2415 = vsel %vm2229, %v2222, 0
      %2417 = vmatprep.subr.bf16.mxu0 0
      %2418 = vmatpush1.bf16.msra.mxu0 0
      %2419 = vmatprep.subr.bf16.mxu0 0
      %2420 = vmatpush1.bf16.msra.mxu0 0
      %2421 = vmatprep.subr.bf16.mxu0 0
      %2422 = vmatpush1.bf16.msra.mxu0 0
      %2423 = vmatprep.subr.bf16.mxu0 0
      %2424 = vmatpush1.bf16.msra.mxu0 0
      %2425 = vmatprep.subr.bf16.mxu0 0
      %2426 = vmatpush1.bf16.msra.mxu0 0
      %2427 = vmatprep.subr.bf16.mxu0 0
      %2428 = vmatpush1.bf16.msra.mxu0 0
      %2429 = vmatprep.subr.bf16.mxu0 0
      %2430 = vmatpush1.bf16.msra.mxu0 0
      %2431 = vmatprep.subr.bf16.mxu0 0
      %2432 = vmatpush1.bf16.msra.mxu0 %v2415
      %2433 = vmatprep.subr.bf16.mxu0 0
      %2434 = vmatpush2.bf16.msra.mxu0 0
      %2435 = vmatprep.subr.bf16.mxu0 0
      %2436 = vmatpush2.bf16.msra.mxu0 0
      %2437 = vmatprep.subr.bf16.mxu0 0
      %2438 = vmatpush2.bf16.msra.mxu0 0
      %2439 = vmatprep.subr.bf16.mxu0 0
      %2440 = vmatpush2.bf16.msra.mxu0 0
      %2441 = vmatprep.subr.bf16.mxu0 0
      %2442 = vmatpush2.bf16.msra.mxu0 0
      %2443 = vmatprep.subr.bf16.mxu0 0
      %2444 = vmatpush2.bf16.msra.mxu0 0
      %2445 = vmatprep.subr.bf16.mxu0 0
      %2446 = vmatpush2.bf16.msra.mxu0 0
      %2447 = vmatprep.subr.bf16.mxu0 0
      %2448 = vmatpush2.bf16.msra.mxu0 0
      %2449 = vmatprep.mubr.bf16.mxu0 0
      %2450 = vmatmul.mubr.bf16.gmra.mxu0 %v2412
      %v2451 = vpop.f32.mrf.mxu0
      %v2452 = vadd.f32 0.0, %v2451
      %v2453 = vpop.f32.mrf.mxu0
      %v2454 = vpop.f32.mrf.mxu0
      %v2455 = vpop.f32.mrf.mxu0
      %2456 = vdwg.mxu0
      %v2458 = vsel %vm1713, %v2215, 0
      %v2461 = vsel %vm2229, %v2223, 0
      %2463 = vmatprep.subr.bf16.mxu0 0
      %2464 = vmatpush1.bf16.msra.mxu0 0
      %2465 = vmatprep.subr.bf16.mxu0 0
      %2466 = vmatpush1.bf16.msra.mxu0 0
      %2467 = vmatprep.subr.bf16.mxu0 0
      %2468 = vmatpush1.bf16.msra.mxu0 0
      %2469 = vmatprep.subr.bf16.mxu0 0
      %2470 = vmatpush1.bf16.msra.mxu0 0
      %2471 = vmatprep.subr.bf16.mxu0 0
      %2472 = vmatpush1.bf16.msra.mxu0 0
      %2473 = vmatprep.subr.bf16.mxu0 0
      %2474 = vmatpush1.bf16.msra.mxu0 0
      %2475 = vmatprep.subr.bf16.mxu0 0
      %2476 = vmatpush1.bf16.msra.mxu0 0
      %2477 = vmatprep.subr.bf16.mxu0 0
      %2478 = vmatpush1.bf16.msra.mxu0 %v2461
      %2479 = vmatprep.subr.bf16.mxu0 0
      %2480 = vmatpush2.bf16.msra.mxu0 0
      %2481 = vmatprep.subr.bf16.mxu0 0
      %2482 = vmatpush2.bf16.msra.mxu0 0
      %2483 = vmatprep.subr.bf16.mxu0 0
      %2484 = vmatpush2.bf16.msra.mxu0 0
      %2485 = vmatprep.subr.bf16.mxu0 0
      %2486 = vmatpush2.bf16.msra.mxu0 0
      %2487 = vmatprep.subr.bf16.mxu0 0
      %2488 = vmatpush2.bf16.msra.mxu0 0
      %2489 = vmatprep.subr.bf16.mxu0 0
      %2490 = vmatpush2.bf16.msra.mxu0 0
      %2491 = vmatprep.subr.bf16.mxu0 0
      %2492 = vmatpush2.bf16.msra.mxu0 0
      %2493 = vmatprep.subr.bf16.mxu0 0
      %2494 = vmatpush2.bf16.msra.mxu0 0
      %2495 = vmatprep.mubr.bf16.mxu0 0
      %2496 = vmatmul.mubr.bf16.gmra.mxu0 %v2458
      %v2497 = vpop.f32.mrf.mxu0
      %v2498 = vadd.f32 0.0, %v2497
      %v2499 = vpop.f32.mrf.mxu0
      %v2500 = vpop.f32.mrf.mxu0
      %v2501 = vpop.f32.mrf.mxu0
      %2502 = vdwg.mxu0
      %v2504 = vsel %vm1713, %v2216, 0
      %v2507 = vsel %vm2229, %v2224, 0
      %2509 = vmatprep.subr.bf16.mxu0 0
      %2510 = vmatpush1.bf16.msra.mxu0 0
      %2511 = vmatprep.subr.bf16.mxu0 0
      %2512 = vmatpush1.bf16.msra.mxu0 0
      %2513 = vmatprep.subr.bf16.mxu0 0
      %2514 = vmatpush1.bf16.msra.mxu0 0
      %2515 = vmatprep.subr.bf16.mxu0 0
      %2516 = vmatpush1.bf16.msra.mxu0 0
      %2517 = vmatprep.subr.bf16.mxu0 0
      %2518 = vmatpush1.bf16.msra.mxu0 0
      %2519 = vmatprep.subr.bf16.mxu0 0
      %2520 = vmatpush1.bf16.msra.mxu0 0
      %2521 = vmatprep.subr.bf16.mxu0 0
      %2522 = vmatpush1.bf16.msra.mxu0 0
      %2523 = vmatprep.subr.bf16.mxu0 0
      %2524 = vmatpush1.bf16.msra.mxu0 %v2507
      %2525 = vmatprep.subr.bf16.mxu0 0
      %2526 = vmatpush2.bf16.msra.mxu0 0
      %2527 = vmatprep.subr.bf16.mxu0 0
      %2528 = vmatpush2.bf16.msra.mxu0 0
      %2529 = vmatprep.subr.bf16.mxu0 0
      %2530 = vmatpush2.bf16.msra.mxu0 0
      %2531 = vmatprep.subr.bf16.mxu0 0
      %2532 = vmatpush2.bf16.msra.mxu0 0
      %2533 = vmatprep.subr.bf16.mxu0 0
      %2534 = vmatpush2.bf16.msra.mxu0 0
      %2535 = vmatprep.subr.bf16.mxu0 0
      %2536 = vmatpush2.bf16.msra.mxu0 0
      %2537 = vmatprep.subr.bf16.mxu0 0
      %2538 = vmatpush2.bf16.msra.mxu0 0
      %2539 = vmatprep.subr.bf16.mxu0 0
      %2540 = vmatpush2.bf16.msra.mxu0 0
      %2541 = vmatprep.mubr.bf16.mxu0 0
      %2542 = vmatmul.mubr.bf16.gmra.mxu0 %v2504
      %v2543 = vpop.f32.mrf.mxu0
      %v2544 = vadd.f32 0.0, %v2543
      %v2545 = vpop.f32.mrf.mxu0
      %v2546 = vpop.f32.mrf.mxu0
      %v2547 = vpop.f32.mrf.mxu0
      %2548 = vdwg.mxu0
      %v2550 = vsel %vm1713, %v2217, 0
      %v2553 = vsel %vm2229, %v2225, 0
      %2555 = vmatprep.subr.bf16.mxu0 0
      %2556 = vmatpush1.bf16.msra.mxu0 0
      %2557 = vmatprep.subr.bf16.mxu0 0
      %2558 = vmatpush1.bf16.msra.mxu0 0
      %2559 = vmatprep.subr.bf16.mxu0 0
      %2560 = vmatpush1.bf16.msra.mxu0 0
      %2561 = vmatprep.subr.bf16.mxu0 0
      %2562 = vmatpush1.bf16.msra.mxu0 0
      %2563 = vmatprep.subr.bf16.mxu0 0
      %2564 = vmatpush1.bf16.msra.mxu0 0
      %2565 = vmatprep.subr.bf16.mxu0 0
      %2566 = vmatpush1.bf16.msra.mxu0 0
      %2567 = vmatprep.subr.bf16.mxu0 0
      %2568 = vmatpush1.bf16.msra.mxu0 0
      %2569 = vmatprep.subr.bf16.mxu0 0
      %2570 = vmatpush1.bf16.msra.mxu0 %v2553
      %2571 = vmatprep.subr.bf16.mxu0 0
      %2572 = vmatpush2.bf16.msra.mxu0 0
      %2573 = vmatprep.subr.bf16.mxu0 0
      %2574 = vmatpush2.bf16.msra.mxu0 0
      %2575 = vmatprep.subr.bf16.mxu0 0
      %2576 = vmatpush2.bf16.msra.mxu0 0
      %2577 = vmatprep.subr.bf16.mxu0 0
      %2578 = vmatpush2.bf16.msra.mxu0 0
      %2579 = vmatprep.subr.bf16.mxu0 0
      %2580 = vmatpush2.bf16.msra.mxu0 0
      %2581 = vmatprep.subr.bf16.mxu0 0
      %2582 = vmatpush2.bf16.msra.mxu0 0
      %2583 = vmatprep.subr.bf16.mxu0 0
      %2584 = vmatpush2.bf16.msra.mxu0 0
      %2585 = vmatprep.subr.bf16.mxu0 0
      %2586 = vmatpush2.bf16.msra.mxu0 0
      %2587 = vmatprep.mubr.bf16.mxu0 0
      %2588 = vmatmul.mubr.bf16.gmra.mxu0 %v2550
      %v2589 = vpop.f32.mrf.mxu0
      %v2590 = vadd.f32 0.0, %v2589
      %v2591 = vpop.f32.mrf.mxu0
      %v2592 = vpop.f32.mrf.mxu0
      %v2593 = vpop.f32.mrf.mxu0
      %2594 = vdwg.mxu0
      %2596 = vset.pattern.permute.xlu0 0
      %2597 = vperm.xlu0 %2596, %v440
      %v2598 = vpop.permute.xlu0 %2597
      %2601 = vset.pattern.permute.xlu0 0
      %2602 = vperm.xlu0 %2601, %v442
      %v2603 = vpop.permute.xlu0 %2602
      %2606 = vset.pattern.permute.xlu0 0
      %2607 = vperm.xlu0 %2606, %v444
      %v2608 = vpop.permute.xlu0 %2607
      %2611 = vset.pattern.permute.xlu0 0
      %2612 = vperm.xlu0 %2611, %v446
      %v2613 = vpop.permute.xlu0 %2612
      %2616 = vset.pattern.permute.xlu0 0
      %2617 = vperm.xlu0 %2616, %v448
      %v2618 = vpop.permute.xlu0 %2617
      %2621 = vset.pattern.permute.xlu0 0
      %2622 = vperm.xlu0 %2621, %v450
      %v2623 = vpop.permute.xlu0 %2622
      %2626 = vset.pattern.permute.xlu0 0
      %2627 = vperm.xlu0 %2626, %v452
      %v2628 = vpop.permute.xlu0 %2627
      %2631 = vset.pattern.permute.xlu0 0
      %2632 = vperm.xlu0 %2631, %v454
      %v2633 = vpop.permute.xlu0 %2632
      %v2635 = vmul.f32 %v1657, %v2598
      %v2636 = vmul.f32 %v1658, %v2603
      %v2637 = vmul.f32 %v1659, %v2608
      %v2638 = vmul.f32 %v1660, %v2613
      %v2639 = vmul.f32 %v1661, %v2618
      %v2640 = vmul.f32 %v1662, %v2623
      %v2641 = vmul.f32 %v1663, %v2628
      %v2642 = vmul.f32 %v1664, %v2633
      %v2643 = vsel %vm1713, %v2635, -inf
      %v2644 = vrot.slane %v2643, 4
      %v2645 = vmax.f32 %v2643, %v2644
      %v2646 = vrot.slane %v2645, 2
      %v2647 = vmax.f32 %v2645, %v2646
      %v2648 = vrot.slane %v2647, 1
      %v2649 = vmax.f32 %v2647, %v2648
      %v2650 = vsel %vm1713, %v2636, -inf
      %v2651 = vrot.slane %v2650, 4
      %v2652 = vmax.f32 %v2650, %v2651
      %v2653 = vrot.slane %v2652, 2
      %v2654 = vmax.f32 %v2652, %v2653
      %v2655 = vrot.slane %v2654, 1
      %v2656 = vmax.f32 %v2654, %v2655
      %v2657 = vsel %vm1713, %v2637, -inf
      %v2658 = vrot.slane %v2657, 4
      %v2659 = vmax.f32 %v2657, %v2658
      %v2660 = vrot.slane %v2659, 2
      %v2661 = vmax.f32 %v2659, %v2660
      %v2662 = vrot.slane %v2661, 1
      %v2663 = vmax.f32 %v2661, %v2662
      %v2664 = vsel %vm1713, %v2638, -inf
      %v2665 = vrot.slane %v2664, 4
      %v2666 = vmax.f32 %v2664, %v2665
      %v2667 = vrot.slane %v2666, 2
      %v2668 = vmax.f32 %v2666, %v2667
      %v2669 = vrot.slane %v2668, 1
      %v2670 = vmax.f32 %v2668, %v2669
      %v2671 = vsel %vm1713, %v2639, -inf
      %v2672 = vrot.slane %v2671, 4
      %v2673 = vmax.f32 %v2671, %v2672
      %v2674 = vrot.slane %v2673, 2
      %v2675 = vmax.f32 %v2673, %v2674
      %v2676 = vrot.slane %v2675, 1
      %v2677 = vmax.f32 %v2675, %v2676
      %v2678 = vsel %vm1713, %v2640, -inf
      %v2679 = vrot.slane %v2678, 4
      %v2680 = vmax.f32 %v2678, %v2679
      %v2681 = vrot.slane %v2680, 2
      %v2682 = vmax.f32 %v2680, %v2681
      %v2683 = vrot.slane %v2682, 1
      %v2684 = vmax.f32 %v2682, %v2683
      %v2685 = vsel %vm1713, %v2641, -inf
      %v2686 = vrot.slane %v2685, 4
      %v2687 = vmax.f32 %v2685, %v2686
      %v2688 = vrot.slane %v2687, 2
      %v2689 = vmax.f32 %v2687, %v2688
      %v2690 = vrot.slane %v2689, 1
      %v2691 = vmax.f32 %v2689, %v2690
      %v2692 = vsel %vm1713, %v2642, -inf
      %v2693 = vrot.slane %v2692, 4
      %v2694 = vmax.f32 %v2692, %v2693
      %v2695 = vrot.slane %v2694, 2
      %v2696 = vmax.f32 %v2694, %v2695
      %v2697 = vrot.slane %v2696, 1
      %v2698 = vmax.f32 %v2696, %v2697
      %v2699 = vsub.f32 %v2635, %v2649
      %v2700 = vsub.f32 %v2636, %v2656
      %v2701 = vsub.f32 %v2637, %v2663
      %v2702 = vsub.f32 %v2638, %v2670
      %v2703 = vsub.f32 %v2639, %v2677
      %v2704 = vsub.f32 %v2640, %v2684
      %v2705 = vsub.f32 %v2641, %v2691
      %v2706 = vsub.f32 %v2642, %v2698
      %v2707 = vmul.f32 %v2699, 1.442695
      %v2708 = vpow.pop %v2707
      %v2709 = vmul.f32 %v2700, 1.442695
      %v2710 = vpow.pop %v2709
      %v2711 = vmul.f32 %v2701, 1.442695
      %v2712 = vpow.pop %v2711
      %v2713 = vmul.f32 %v2702, 1.442695
      %v2714 = vpow.pop %v2713
      %v2715 = vmul.f32 %v2703, 1.442695
      %v2716 = vpow.pop %v2715
      %v2717 = vmul.f32 %v2704, 1.442695
      %v2718 = vpow.pop %v2717
      %v2719 = vmul.f32 %v2705, 1.442695
      %v2720 = vpow.pop %v2719
      %v2721 = vmul.f32 %v2706, 1.442695
      %v2722 = vpow.pop %v2721
      %v2723 = vsel %vm1713, %v2708, 0.0
      %v2724 = vrot.slane %v2723, 4
      %v2725 = vadd.f32 %v2723, %v2724
      %v2726 = vrot.slane %v2725, 2
      %v2727 = vadd.f32 %v2725, %v2726
      %v2728 = vrot.slane %v2727, 1
      %v2729 = vadd.f32 %v2727, %v2728
      %v2730 = vsel %vm1713, %v2710, 0.0
      %v2731 = vrot.slane %v2730, 4
      %v2732 = vadd.f32 %v2730, %v2731
      %v2733 = vrot.slane %v2732, 2
      %v2734 = vadd.f32 %v2732, %v2733
      %v2735 = vrot.slane %v2734, 1
      %v2736 = vadd.f32 %v2734, %v2735
      %v2737 = vsel %vm1713, %v2712, 0.0
      %v2738 = vrot.slane %v2737, 4
      %v2739 = vadd.f32 %v2737, %v2738
      %v2740 = vrot.slane %v2739, 2
      %v2741 = vadd.f32 %v2739, %v2740
      %v2742 = vrot.slane %v2741, 1
      %v2743 = vadd.f32 %v2741, %v2742
      %v2744 = vsel %vm1713, %v2714, 0.0
      %v2745 = vrot.slane %v2744, 4
      %v2746 = vadd.f32 %v2744, %v2745
      %v2747 = vrot.slane %v2746, 2
      %v2748 = vadd.f32 %v2746, %v2747
      %v2749 = vrot.slane %v2748, 1
      %v2750 = vadd.f32 %v2748, %v2749
      %v2751 = vsel %vm1713, %v2716, 0.0
      %v2752 = vrot.slane %v2751, 4
      %v2753 = vadd.f32 %v2751, %v2752
      %v2754 = vrot.slane %v2753, 2
      %v2755 = vadd.f32 %v2753, %v2754
      %v2756 = vrot.slane %v2755, 1
      %v2757 = vadd.f32 %v2755, %v2756
      %v2758 = vsel %vm1713, %v2718, 0.0
      %v2759 = vrot.slane %v2758, 4
      %v2760 = vadd.f32 %v2758, %v2759
      %v2761 = vrot.slane %v2760, 2
      %v2762 = vadd.f32 %v2760, %v2761
      %v2763 = vrot.slane %v2762, 1
      %v2764 = vadd.f32 %v2762, %v2763
      %v2765 = vsel %vm1713, %v2720, 0.0
      %v2766 = vrot.slane %v2765, 4
      %v2767 = vadd.f32 %v2765, %v2766
      %v2768 = vrot.slane %v2767, 2
      %v2769 = vadd.f32 %v2767, %v2768
      %v2770 = vrot.slane %v2769, 1
      %v2771 = vadd.f32 %v2769, %v2770
      %v2772 = vsel %vm1713, %v2722, 0.0
      %v2773 = vrot.slane %v2772, 4
      %v2774 = vadd.f32 %v2772, %v2773
      %v2775 = vrot.slane %v2774, 2
      %v2776 = vadd.f32 %v2774, %v2775
      %v2777 = vrot.slane %v2776, 1
      %v2778 = vadd.f32 %v2776, %v2777
      %v2779 = vrcp.pop %v2729
      %v2780 = vmul.f32 %v2708, %v2779
      %v2781 = vrcp.pop %v2736
      %v2782 = vmul.f32 %v2710, %v2781
      %v2783 = vrcp.pop %v2743
      %v2784 = vmul.f32 %v2712, %v2783
      %v2785 = vrcp.pop %v2750
      %v2786 = vmul.f32 %v2714, %v2785
      %v2787 = vrcp.pop %v2757
      %v2788 = vmul.f32 %v2716, %v2787
      %v2789 = vrcp.pop %v2764
      %v2790 = vmul.f32 %v2718, %v2789
      %v2791 = vrcp.pop %v2771
      %v2792 = vmul.f32 %v2720, %v2791
      %v2793 = vrcp.pop %v2778
      %v2794 = vmul.f32 %v2722, %v2793
      %v2795 = vmul.f32 %v2780, %v2598
      %v2796 = vmul.f32 %v2782, %v2603
      %v2797 = vmul.f32 %v2784, %v2608
      %v2798 = vmul.f32 %v2786, %v2613
      %v2799 = vmul.f32 %v2788, %v2618
      %v2800 = vmul.f32 %v2790, %v2623
      %v2801 = vmul.f32 %v2792, %v2628
      %v2802 = vmul.f32 %v2794, %v2633
      %v2803 = vsel %vm1713, %v2795, 0.0
      %v2804 = vrot.slane %v2803, 4
      %v2805 = vadd.f32 %v2803, %v2804
      %v2806 = vrot.slane %v2805, 2
      %v2807 = vadd.f32 %v2805, %v2806
      %v2808 = vrot.slane %v2807, 1
      %v2809 = vadd.f32 %v2807, %v2808
      %v2810 = vsel %vm1713, %v2796, 0.0
      %v2811 = vrot.slane %v2810, 4
      %v2812 = vadd.f32 %v2810, %v2811
      %v2813 = vrot.slane %v2812, 2
      %v2814 = vadd.f32 %v2812, %v2813
      %v2815 = vrot.slane %v2814, 1
      %v2816 = vadd.f32 %v2814, %v2815
      %v2817 = vsel %vm1713, %v2797, 0.0
      %v2818 = vrot.slane %v2817, 4
      %v2819 = vadd.f32 %v2817, %v2818
      %v2820 = vrot.slane %v2819, 2
      %v2821 = vadd.f32 %v2819, %v2820
      %v2822 = vrot.slane %v2821, 1
      %v2823 = vadd.f32 %v2821, %v2822
      %v2824 = vsel %vm1713, %v2798, 0.0
      %v2825 = vrot.slane %v2824, 4
      %v2826 = vadd.f32 %v2824, %v2825
      %v2827 = vrot.slane %v2826, 2
      %v2828 = vadd.f32 %v2826, %v2827
      %v2829 = vrot.slane %v2828, 1
      %v2830 = vadd.f32 %v2828, %v2829
      %v2831 = vsel %vm1713, %v2799, 0.0
      %v2832 = vrot.slane %v2831, 4
      %v2833 = vadd.f32 %v2831, %v2832
      %v2834 = vrot.slane %v2833, 2
      %v2835 = vadd.f32 %v2833, %v2834
      %v2836 = vrot.slane %v2835, 1
      %v2837 = vadd.f32 %v2835, %v2836
      %v2838 = vsel %vm1713, %v2800, 0.0
      %v2839 = vrot.slane %v2838, 4
      %v2840 = vadd.f32 %v2838, %v2839
      %v2841 = vrot.slane %v2840, 2
      %v2842 = vadd.f32 %v2840, %v2841
      %v2843 = vrot.slane %v2842, 1
      %v2844 = vadd.f32 %v2842, %v2843
      %v2845 = vsel %vm1713, %v2801, 0.0
      %v2846 = vrot.slane %v2845, 4
      %v2847 = vadd.f32 %v2845, %v2846
      %v2848 = vrot.slane %v2847, 2
      %v2849 = vadd.f32 %v2847, %v2848
      %v2850 = vrot.slane %v2849, 1
      %v2851 = vadd.f32 %v2849, %v2850
      %v2852 = vsel %vm1713, %v2802, 0.0
      %v2853 = vrot.slane %v2852, 4
      %v2854 = vadd.f32 %v2852, %v2853
      %v2855 = vrot.slane %v2854, 2
      %v2856 = vadd.f32 %v2854, %v2855
      %v2857 = vrot.slane %v2856, 1
      %v2858 = vadd.f32 %v2856, %v2857
      %v2859 = vadd.f32 %v2809, 1e-13
      %v2860 = vadd.f32 %v2816, 1e-13
      %v2861 = vadd.f32 %v2823, 1e-13
      %v2862 = vadd.f32 %v2830, 1e-13
      %v2863 = vadd.f32 %v2837, 1e-13
      %v2864 = vadd.f32 %v2844, 1e-13
      %v2865 = vadd.f32 %v2851, 1e-13
      %v2866 = vadd.f32 %v2858, 1e-13
      %v2867 = vrcp.pop %v2859
      %v2868 = vmul.f32 %v2795, %v2867
      %v2869 = vrcp.pop %v2860
      %v2870 = vmul.f32 %v2796, %v2869
      %v2871 = vrcp.pop %v2861
      %v2872 = vmul.f32 %v2797, %v2871
      %v2873 = vrcp.pop %v2862
      %v2874 = vmul.f32 %v2798, %v2873
      %v2875 = vrcp.pop %v2863
      %v2876 = vmul.f32 %v2799, %v2875
      %v2877 = vrcp.pop %v2864
      %v2878 = vmul.f32 %v2800, %v2877
      %v2879 = vrcp.pop %v2865
      %v2880 = vmul.f32 %v2801, %v2879
      %v2881 = vrcp.pop %v2866
      %v2882 = vmul.f32 %v2802, %v2881
      %v2883 = vpack.c.bf16 %v2868, %v2868
      %v2884 = vpack.c.bf16 %v2870, %v2870
      %v2885 = vpack.c.bf16 %v2872, %v2872
      %v2886 = vpack.c.bf16 %v2874, %v2874
      %v2887 = vpack.c.bf16 %v2876, %v2876
      %v2888 = vpack.c.bf16 %v2878, %v2878
      %v2889 = vpack.c.bf16 %v2880, %v2880
      %v2890 = vpack.c.bf16 %v2882, %v2882
      %v2892 = vsel %vm1713, %v2883, 0
      %v2894 = vsel %vm2229, %v1243, 0
      %2896 = vmatprep.subr.bf16.mxu0 0
      %2897 = vmatpush1.bf16.msra.mxu0 0
      %2898 = vmatprep.subr.bf16.mxu0 0
      %2899 = vmatpush1.bf16.msra.mxu0 0
      %2900 = vmatprep.subr.bf16.mxu0 0
      %2901 = vmatpush1.bf16.msra.mxu0 0
      %2902 = vmatprep.subr.bf16.mxu0 0
      %2903 = vmatpush1.bf16.msra.mxu0 0
      %2904 = vmatprep.subr.bf16.mxu0 0
      %2905 = vmatpush1.bf16.msra.mxu0 0
      %2906 = vmatprep.subr.bf16.mxu0 0
      %2907 = vmatpush1.bf16.msra.mxu0 0
      %2908 = vmatprep.subr.bf16.mxu0 0
      %2909 = vmatpush1.bf16.msra.mxu0 0
      %2910 = vmatprep.subr.bf16.mxu0 0
      %2911 = vmatpush1.bf16.msra.mxu0 %v2894
      %2912 = vmatprep.subr.bf16.mxu0 0
      %2913 = vmatpush2.bf16.msra.mxu0 0
      %2914 = vmatprep.subr.bf16.mxu0 0
      %2915 = vmatpush2.bf16.msra.mxu0 0
      %2916 = vmatprep.subr.bf16.mxu0 0
      %2917 = vmatpush2.bf16.msra.mxu0 0
      %2918 = vmatprep.subr.bf16.mxu0 0
      %2919 = vmatpush2.bf16.msra.mxu0 0
      %2920 = vmatprep.subr.bf16.mxu0 0
      %2921 = vmatpush2.bf16.msra.mxu0 0
      %2922 = vmatprep.subr.bf16.mxu0 0
      %2923 = vmatpush2.bf16.msra.mxu0 0
      %2924 = vmatprep.subr.bf16.mxu0 0
      %2925 = vmatpush2.bf16.msra.mxu0 0
      %2926 = vmatprep.subr.bf16.mxu0 0
      %2927 = vmatpush2.bf16.msra.mxu0 0
      %2928 = vmatprep.mubr.bf16.mxu0 0
      %2929 = vmatmul.mubr.bf16.gmra.mxu0 %v2892
      %v2930 = vpop.f32.mrf.mxu0
      %v2931 = vadd.f32 0.0, %v2930
      %v2932 = vpop.f32.mrf.mxu0
      %v2933 = vpop.f32.mrf.mxu0
      %v2934 = vpop.f32.mrf.mxu0
      %2935 = vdwg.mxu0
      %v2937 = vsel %vm1713, %v2884, 0
      %v2939 = vsel %vm2229, %v1244, 0
      %2941 = vmatprep.subr.bf16.mxu0 0
      %2942 = vmatpush1.bf16.msra.mxu0 0
      %2943 = vmatprep.subr.bf16.mxu0 0
      %2944 = vmatpush1.bf16.msra.mxu0 0
      %2945 = vmatprep.subr.bf16.mxu0 0
      %2946 = vmatpush1.bf16.msra.mxu0 0
      %2947 = vmatprep.subr.bf16.mxu0 0
      %2948 = vmatpush1.bf16.msra.mxu0 0
      %2949 = vmatprep.subr.bf16.mxu0 0
      %2950 = vmatpush1.bf16.msra.mxu0 0
      %2951 = vmatprep.subr.bf16.mxu0 0
      %2952 = vmatpush1.bf16.msra.mxu0 0
      %2953 = vmatprep.subr.bf16.mxu0 0
      %2954 = vmatpush1.bf16.msra.mxu0 0
      %2955 = vmatprep.subr.bf16.mxu0 0
      %2956 = vmatpush1.bf16.msra.mxu0 %v2939
      %2957 = vmatprep.subr.bf16.mxu0 0
      %2958 = vmatpush2.bf16.msra.mxu0 0
      %2959 = vmatprep.subr.bf16.mxu0 0
      %2960 = vmatpush2.bf16.msra.mxu0 0
      %2961 = vmatprep.subr.bf16.mxu0 0
      %2962 = vmatpush2.bf16.msra.mxu0 0
      %2963 = vmatprep.subr.bf16.mxu0 0
      %2964 = vmatpush2.bf16.msra.mxu0 0
      %2965 = vmatprep.subr.bf16.mxu0 0
      %2966 = vmatpush2.bf16.msra.mxu0 0
      %2967 = vmatprep.subr.bf16.mxu0 0
      %2968 = vmatpush2.bf16.msra.mxu0 0
      %2969 = vmatprep.subr.bf16.mxu0 0
      %2970 = vmatpush2.bf16.msra.mxu0 0
      %2971 = vmatprep.subr.bf16.mxu0 0
      %2972 = vmatpush2.bf16.msra.mxu0 0
      %2973 = vmatprep.mubr.bf16.mxu0 0
      %2974 = vmatmul.mubr.bf16.gmra.mxu0 %v2937
      %v2975 = vpop.f32.mrf.mxu0
      %v2976 = vadd.f32 0.0, %v2975
      %v2977 = vpop.f32.mrf.mxu0
      %v2978 = vpop.f32.mrf.mxu0
      %v2979 = vpop.f32.mrf.mxu0
      %2980 = vdwg.mxu0
      %v2982 = vsel %vm1713, %v2885, 0
      %v2984 = vsel %vm2229, %v1245, 0
      %2986 = vmatprep.subr.bf16.mxu0 0
      %2987 = vmatpush1.bf16.msra.mxu0 0
      %2988 = vmatprep.subr.bf16.mxu0 0
      %2989 = vmatpush1.bf16.msra.mxu0 0
      %2990 = vmatprep.subr.bf16.mxu0 0
      %2991 = vmatpush1.bf16.msra.mxu0 0
      %2992 = vmatprep.subr.bf16.mxu0 0
      %2993 = vmatpush1.bf16.msra.mxu0 0
      %2994 = vmatprep.subr.bf16.mxu0 0
      %2995 = vmatpush1.bf16.msra.mxu0 0
      %2996 = vmatprep.subr.bf16.mxu0 0
      %2997 = vmatpush1.bf16.msra.mxu0 0
      %2998 = vmatprep.subr.bf16.mxu0 0
      %2999 = vmatpush1.bf16.msra.mxu0 0
      %3000 = vmatprep.subr.bf16.mxu0 0
      %3001 = vmatpush1.bf16.msra.mxu0 %v2984
      %3002 = vmatprep.subr.bf16.mxu0 0
      %3003 = vmatpush2.bf16.msra.mxu0 0
      %3004 = vmatprep.subr.bf16.mxu0 0
      %3005 = vmatpush2.bf16.msra.mxu0 0
      %3006 = vmatprep.subr.bf16.mxu0 0
      %3007 = vmatpush2.bf16.msra.mxu0 0
      %3008 = vmatprep.subr.bf16.mxu0 0
      %3009 = vmatpush2.bf16.msra.mxu0 0
      %3010 = vmatprep.subr.bf16.mxu0 0
      %3011 = vmatpush2.bf16.msra.mxu0 0
      %3012 = vmatprep.subr.bf16.mxu0 0
      %3013 = vmatpush2.bf16.msra.mxu0 0
      %3014 = vmatprep.subr.bf16.mxu0 0
      %3015 = vmatpush2.bf16.msra.mxu0 0
      %3016 = vmatprep.subr.bf16.mxu0 0
      %3017 = vmatpush2.bf16.msra.mxu0 0
      %3018 = vmatprep.mubr.bf16.mxu0 0
      %3019 = vmatmul.mubr.bf16.gmra.mxu0 %v2982
      %v3020 = vpop.f32.mrf.mxu0
      %v3021 = vadd.f32 0.0, %v3020
      %v3022 = vpop.f32.mrf.mxu0
      %v3023 = vpop.f32.mrf.mxu0
      %v3024 = vpop.f32.mrf.mxu0
      %3025 = vdwg.mxu0
      %v3027 = vsel %vm1713, %v2886, 0
      %v3029 = vsel %vm2229, %v1246, 0
      %3031 = vmatprep.subr.bf16.mxu0 0
      %3032 = vmatpush1.bf16.msra.mxu0 0
      %3033 = vmatprep.subr.bf16.mxu0 0
      %3034 = vmatpush1.bf16.msra.mxu0 0
      %3035 = vmatprep.subr.bf16.mxu0 0
      %3036 = vmatpush1.bf16.msra.mxu0 0
      %3037 = vmatprep.subr.bf16.mxu0 0
      %3038 = vmatpush1.bf16.msra.mxu0 0
      %3039 = vmatprep.subr.bf16.mxu0 0
      %3040 = vmatpush1.bf16.msra.mxu0 0
      %3041 = vmatprep.subr.bf16.mxu0 0
      %3042 = vmatpush1.bf16.msra.mxu0 0
      %3043 = vmatprep.subr.bf16.mxu0 0
      %3044 = vmatpush1.bf16.msra.mxu0 0
      %3045 = vmatprep.subr.bf16.mxu0 0
      %3046 = vmatpush1.bf16.msra.mxu0 %v3029
      %3047 = vmatprep.subr.bf16.mxu0 0
      %3048 = vmatpush2.bf16.msra.mxu0 0
      %3049 = vmatprep.subr.bf16.mxu0 0
      %3050 = vmatpush2.bf16.msra.mxu0 0
      %3051 = vmatprep.subr.bf16.mxu0 0
      %3052 = vmatpush2.bf16.msra.mxu0 0
      %3053 = vmatprep.subr.bf16.mxu0 0
      %3054 = vmatpush2.bf16.msra.mxu0 0
      %3055 = vmatprep.subr.bf16.mxu0 0
      %3056 = vmatpush2.bf16.msra.mxu0 0
      %3057 = vmatprep.subr.bf16.mxu0 0
      %3058 = vmatpush2.bf16.msra.mxu0 0
      %3059 = vmatprep.subr.bf16.mxu0 0
      %3060 = vmatpush2.bf16.msra.mxu0 0
      %3061 = vmatprep.subr.bf16.mxu0 0
      %3062 = vmatpush2.bf16.msra.mxu0 0
      %3063 = vmatprep.mubr.bf16.mxu0 0
      %3064 = vmatmul.mubr.bf16.gmra.mxu0 %v3027
      %v3065 = vpop.f32.mrf.mxu0
      %v3066 = vadd.f32 0.0, %v3065
      %v3067 = vpop.f32.mrf.mxu0
      %v3068 = vpop.f32.mrf.mxu0
      %v3069 = vpop.f32.mrf.mxu0
      %3070 = vdwg.mxu0
      %v3072 = vsel %vm1713, %v2887, 0
      %v3074 = vsel %vm2229, %v1247, 0
      %3076 = vmatprep.subr.bf16.mxu0 0
      %3077 = vmatpush1.bf16.msra.mxu0 0
      %3078 = vmatprep.subr.bf16.mxu0 0
      %3079 = vmatpush1.bf16.msra.mxu0 0
      %3080 = vmatprep.subr.bf16.mxu0 0
      %3081 = vmatpush1.bf16.msra.mxu0 0
      %3082 = vmatprep.subr.bf16.mxu0 0
      %3083 = vmatpush1.bf16.msra.mxu0 0
      %3084 = vmatprep.subr.bf16.mxu0 0
      %3085 = vmatpush1.bf16.msra.mxu0 0
      %3086 = vmatprep.subr.bf16.mxu0 0
      %3087 = vmatpush1.bf16.msra.mxu0 0
      %3088 = vmatprep.subr.bf16.mxu0 0
      %3089 = vmatpush1.bf16.msra.mxu0 0
      %3090 = vmatprep.subr.bf16.mxu0 0
      %3091 = vmatpush1.bf16.msra.mxu0 %v3074
      %3092 = vmatprep.subr.bf16.mxu0 0
      %3093 = vmatpush2.bf16.msra.mxu0 0
      %3094 = vmatprep.subr.bf16.mxu0 0
      %3095 = vmatpush2.bf16.msra.mxu0 0
      %3096 = vmatprep.subr.bf16.mxu0 0
      %3097 = vmatpush2.bf16.msra.mxu0 0
      %3098 = vmatprep.subr.bf16.mxu0 0
      %3099 = vmatpush2.bf16.msra.mxu0 0
      %3100 = vmatprep.subr.bf16.mxu0 0
      %3101 = vmatpush2.bf16.msra.mxu0 0
      %3102 = vmatprep.subr.bf16.mxu0 0
      %3103 = vmatpush2.bf16.msra.mxu0 0
      %3104 = vmatprep.subr.bf16.mxu0 0
      %3105 = vmatpush2.bf16.msra.mxu0 0
      %3106 = vmatprep.subr.bf16.mxu0 0
      %3107 = vmatpush2.bf16.msra.mxu0 0
      %3108 = vmatprep.mubr.bf16.mxu0 0
      %3109 = vmatmul.mubr.bf16.gmra.mxu0 %v3072
      %v3110 = vpop.f32.mrf.mxu0
      %v3111 = vadd.f32 0.0, %v3110
      %v3112 = vpop.f32.mrf.mxu0
      %v3113 = vpop.f32.mrf.mxu0
      %v3114 = vpop.f32.mrf.mxu0
      %3115 = vdwg.mxu0
      %v3117 = vsel %vm1713, %v2888, 0
      %v3119 = vsel %vm2229, %v1248, 0
      %3121 = vmatprep.subr.bf16.mxu0 0
      %3122 = vmatpush1.bf16.msra.mxu0 0
      %3123 = vmatprep.subr.bf16.mxu0 0
      %3124 = vmatpush1.bf16.msra.mxu0 0
      %3125 = vmatprep.subr.bf16.mxu0 0
      %3126 = vmatpush1.bf16.msra.mxu0 0
      %3127 = vmatprep.subr.bf16.mxu0 0
      %3128 = vmatpush1.bf16.msra.mxu0 0
      %3129 = vmatprep.subr.bf16.mxu0 0
      %3130 = vmatpush1.bf16.msra.mxu0 0
      %3131 = vmatprep.subr.bf16.mxu0 0
      %3132 = vmatpush1.bf16.msra.mxu0 0
      %3133 = vmatprep.subr.bf16.mxu0 0
      %3134 = vmatpush1.bf16.msra.mxu0 0
      %3135 = vmatprep.subr.bf16.mxu0 0
      %3136 = vmatpush1.bf16.msra.mxu0 %v3119
      %3137 = vmatprep.subr.bf16.mxu0 0
      %3138 = vmatpush2.bf16.msra.mxu0 0
      %3139 = vmatprep.subr.bf16.mxu0 0
      %3140 = vmatpush2.bf16.msra.mxu0 0
      %3141 = vmatprep.subr.bf16.mxu0 0
      %3142 = vmatpush2.bf16.msra.mxu0 0
      %3143 = vmatprep.subr.bf16.mxu0 0
      %3144 = vmatpush2.bf16.msra.mxu0 0
      %3145 = vmatprep.subr.bf16.mxu0 0
      %3146 = vmatpush2.bf16.msra.mxu0 0
      %3147 = vmatprep.subr.bf16.mxu0 0
      %3148 = vmatpush2.bf16.msra.mxu0 0
      %3149 = vmatprep.subr.bf16.mxu0 0
      %3150 = vmatpush2.bf16.msra.mxu0 0
      %3151 = vmatprep.subr.bf16.mxu0 0
      %3152 = vmatpush2.bf16.msra.mxu0 0
      %3153 = vmatprep.mubr.bf16.mxu0 0
      %3154 = vmatmul.mubr.bf16.gmra.mxu0 %v3117
      %v3155 = vpop.f32.mrf.mxu0
      %v3156 = vadd.f32 0.0, %v3155
      %v3157 = vpop.f32.mrf.mxu0
      %v3158 = vpop.f32.mrf.mxu0
      %v3159 = vpop.f32.mrf.mxu0
      %3160 = vdwg.mxu0
      %v3162 = vsel %vm1713, %v2889, 0
      %v3164 = vsel %vm2229, %v1249, 0
      %3166 = vmatprep.subr.bf16.mxu0 0
      %3167 = vmatpush1.bf16.msra.mxu0 0
      %3168 = vmatprep.subr.bf16.mxu0 0
      %3169 = vmatpush1.bf16.msra.mxu0 0
      %3170 = vmatprep.subr.bf16.mxu0 0
      %3171 = vmatpush1.bf16.msra.mxu0 0
      %3172 = vmatprep.subr.bf16.mxu0 0
      %3173 = vmatpush1.bf16.msra.mxu0 0
      %3174 = vmatprep.subr.bf16.mxu0 0
      %3175 = vmatpush1.bf16.msra.mxu0 0
      %3176 = vmatprep.subr.bf16.mxu0 0
      %3177 = vmatpush1.bf16.msra.mxu0 0
      %3178 = vmatprep.subr.bf16.mxu0 0
      %3179 = vmatpush1.bf16.msra.mxu0 0
      %3180 = vmatprep.subr.bf16.mxu0 0
      %3181 = vmatpush1.bf16.msra.mxu0 %v3164
      %3182 = vmatprep.subr.bf16.mxu0 0
      %3183 = vmatpush2.bf16.msra.mxu0 0
      %3184 = vmatprep.subr.bf16.mxu0 0
      %3185 = vmatpush2.bf16.msra.mxu0 0
      %3186 = vmatprep.subr.bf16.mxu0 0
      %3187 = vmatpush2.bf16.msra.mxu0 0
      %3188 = vmatprep.subr.bf16.mxu0 0
      %3189 = vmatpush2.bf16.msra.mxu0 0
      %3190 = vmatprep.subr.bf16.mxu0 0
      %3191 = vmatpush2.bf16.msra.mxu0 0
      %3192 = vmatprep.subr.bf16.mxu0 0
      %3193 = vmatpush2.bf16.msra.mxu0 0
      %3194 = vmatprep.subr.bf16.mxu0 0
      %3195 = vmatpush2.bf16.msra.mxu0 0
      %3196 = vmatprep.subr.bf16.mxu0 0
      %3197 = vmatpush2.bf16.msra.mxu0 0
      %3198 = vmatprep.mubr.bf16.mxu0 0
      %3199 = vmatmul.mubr.bf16.gmra.mxu0 %v3162
      %v3200 = vpop.f32.mrf.mxu0
      %v3201 = vadd.f32 0.0, %v3200
      %v3202 = vpop.f32.mrf.mxu0
      %v3203 = vpop.f32.mrf.mxu0
      %v3204 = vpop.f32.mrf.mxu0
      %3205 = vdwg.mxu0
      %v3207 = vsel %vm1713, %v2890, 0
      %v3209 = vsel %vm2229, %v1250, 0
      %3211 = vmatprep.subr.bf16.mxu0 0
      %3212 = vmatpush1.bf16.msra.mxu0 0
      %3213 = vmatprep.subr.bf16.mxu0 0
      %3214 = vmatpush1.bf16.msra.mxu0 0
      %3215 = vmatprep.subr.bf16.mxu0 0
      %3216 = vmatpush1.bf16.msra.mxu0 0
      %3217 = vmatprep.subr.bf16.mxu0 0
      %3218 = vmatpush1.bf16.msra.mxu0 0
      %3219 = vmatprep.subr.bf16.mxu0 0
      %3220 = vmatpush1.bf16.msra.mxu0 0
      %3221 = vmatprep.subr.bf16.mxu0 0
      %3222 = vmatpush1.bf16.msra.mxu0 0
      %3223 = vmatprep.subr.bf16.mxu0 0
      %3224 = vmatpush1.bf16.msra.mxu0 0
      %3225 = vmatprep.subr.bf16.mxu0 0
      %3226 = vmatpush1.bf16.msra.mxu0 %v3209
      %3227 = vmatprep.subr.bf16.mxu0 0
      %3228 = vmatpush2.bf16.msra.mxu0 0
      %3229 = vmatprep.subr.bf16.mxu0 0
      %3230 = vmatpush2.bf16.msra.mxu0 0
      %3231 = vmatprep.subr.bf16.mxu0 0
      %3232 = vmatpush2.bf16.msra.mxu0 0
      %3233 = vmatprep.subr.bf16.mxu0 0
      %3234 = vmatpush2.bf16.msra.mxu0 0
      %3235 = vmatprep.subr.bf16.mxu0 0
      %3236 = vmatpush2.bf16.msra.mxu0 0
      %3237 = vmatprep.subr.bf16.mxu0 0
      %3238 = vmatpush2.bf16.msra.mxu0 0
      %3239 = vmatprep.subr.bf16.mxu0 0
      %3240 = vmatpush2.bf16.msra.mxu0 0
      %3241 = vmatprep.subr.bf16.mxu0 0
      %3242 = vmatpush2.bf16.msra.mxu0 0
      %3243 = vmatprep.mubr.bf16.mxu0 0
      %3244 = vmatmul.mubr.bf16.gmra.mxu0 %v3207
      %v3245 = vpop.f32.mrf.mxu0
      %v3246 = vadd.f32 0.0, %v3245
      %v3247 = vpop.f32.mrf.mxu0
      %v3248 = vpop.f32.mrf.mxu0
      %v3249 = vpop.f32.mrf.mxu0
      %3250 = vdwg.mxu0
      %v3251 = vmul.f32 %v1077, %v2931
      %v3252 = vmul.f32 %v1078, %v2268
      %v3253 = vmul.f32 %v1079, %v2976
      %v3254 = vmul.f32 %v1080, %v2314
      %v3255 = vmul.f32 %v1081, %v3021
      %v3256 = vmul.f32 %v1082, %v2360
      %v3257 = vmul.f32 %v1083, %v3066
      %v3258 = vmul.f32 %v1084, %v2406
      %v3259 = vmul.f32 %v1085, %v3111
      %v3260 = vmul.f32 %v1086, %v2452
      %v3261 = vmul.f32 %v1087, %v3156
      %v3262 = vmul.f32 %v1088, %v2498
      %v3263 = vmul.f32 %v1089, %v3201
      %v3264 = vmul.f32 %v1090, %v2544
      %v3265 = vmul.f32 %v1091, %v3246
      %v3266 = vmul.f32 %v1092, %v2590
      %3283 = vrot.lane.b32.xlu0 %v2931, 32
      %v3284 = vpop.permute.xlu0 %3283
      %3285 = vrot.lane.b32.xlu0 %v2268, 32
      %v3286 = vpop.permute.xlu0 %3285
      %3287 = vrot.lane.b32.xlu0 %v2976, 32
      %v3288 = vpop.permute.xlu0 %3287
      %3289 = vrot.lane.b32.xlu0 %v2314, 32
      %v3290 = vpop.permute.xlu0 %3289
      %3291 = vrot.lane.b32.xlu0 %v3021, 32
      %v3292 = vpop.permute.xlu0 %3291
      %3293 = vrot.lane.b32.xlu0 %v2360, 32
      %v3294 = vpop.permute.xlu0 %3293
      %3295 = vrot.lane.b32.xlu0 %v3066, 32
      %v3296 = vpop.permute.xlu0 %3295
      %3297 = vrot.lane.b32.xlu0 %v2406, 32
      %v3298 = vpop.permute.xlu0 %3297
      %3299 = vrot.lane.b32.xlu0 %v3111, 32
      %v3300 = vpop.permute.xlu0 %3299
      %3301 = vrot.lane.b32.xlu0 %v2452, 32
      %v3302 = vpop.permute.xlu0 %3301
      %3303 = vrot.lane.b32.xlu0 %v3156, 32
      %v3304 = vpop.permute.xlu0 %3303
      %3305 = vrot.lane.b32.xlu0 %v2498, 32
      %v3306 = vpop.permute.xlu0 %3305
      %3307 = vrot.lane.b32.xlu0 %v3201, 32
      %v3308 = vpop.permute.xlu0 %3307
      %3309 = vrot.lane.b32.xlu0 %v2544, 32
      %v3310 = vpop.permute.xlu0 %3309
      %3311 = vrot.lane.b32.xlu0 %v3246, 32
      %v3312 = vpop.permute.xlu0 %3311
      %3313 = vrot.lane.b32.xlu0 %v2590, 32
      %v3314 = vpop.permute.xlu0 %3313
      %3347 = vrot.lane.b32.xlu0 %v3251, 64
      %v3348 = vpop.permute.xlu0 %3347
      %3349 = vrot.lane.b32.xlu0 %v3252, 64
      %v3350 = vpop.permute.xlu0 %3349
      %3351 = vrot.lane.b32.xlu0 %v3253, 64
      %v3352 = vpop.permute.xlu0 %3351
      %3353 = vrot.lane.b32.xlu0 %v3254, 64
      %v3354 = vpop.permute.xlu0 %3353
      %3355 = vrot.lane.b32.xlu0 %v3255, 64
      %v3356 = vpop.permute.xlu0 %3355
      %3357 = vrot.lane.b32.xlu0 %v3256, 64
      %v3358 = vpop.permute.xlu0 %3357
      %3359 = vrot.lane.b32.xlu0 %v3257, 64
      %v3360 = vpop.permute.xlu0 %3359
      %3361 = vrot.lane.b32.xlu0 %v3258, 64
      %v3362 = vpop.permute.xlu0 %3361
      %3363 = vrot.lane.b32.xlu0 %v3259, 64
      %v3364 = vpop.permute.xlu0 %3363
      %3365 = vrot.lane.b32.xlu0 %v3260, 64
      %v3366 = vpop.permute.xlu0 %3365
      %3367 = vrot.lane.b32.xlu0 %v3261, 64
      %v3368 = vpop.permute.xlu0 %3367
      %3369 = vrot.lane.b32.xlu0 %v3262, 64
      %v3370 = vpop.permute.xlu0 %3369
      %3371 = vrot.lane.b32.xlu0 %v3263, 64
      %v3372 = vpop.permute.xlu0 %3371
      %3373 = vrot.lane.b32.xlu0 %v3264, 64
      %v3374 = vpop.permute.xlu0 %3373
      %3375 = vrot.lane.b32.xlu0 %v3265, 64
      %v3376 = vpop.permute.xlu0 %3375
      %3377 = vrot.lane.b32.xlu0 %v3266, 64
      %v3378 = vpop.permute.xlu0 %3377
      %v3395 = vsel %vm466, %v1077, %v3284
      %v3396 = vsel %vm466, %v1078, %v3286
      %v3397 = vsel %vm466, %v1079, %v3288
      %v3398 = vsel %vm466, %v1080, %v3290
      %v3399 = vsel %vm466, %v1081, %v3292
      %v3400 = vsel %vm466, %v1082, %v3294
      %v3401 = vsel %vm466, %v1083, %v3296
      %v3402 = vsel %vm466, %v1084, %v3298
      %v3403 = vsel %vm466, %v1085, %v3300
      %v3404 = vsel %vm466, %v1086, %v3302
      %v3405 = vsel %vm466, %v1087, %v3304
      %v3406 = vsel %vm466, %v1088, %v3306
      %v3407 = vsel %vm466, %v1089, %v3308
      %v3408 = vsel %vm466, %v1090, %v3310
      %v3409 = vsel %vm466, %v1091, %v3312
      %v3410 = vsel %vm466, %v1092, %v3314
      %v3411 = vsel %vm468, %v3395, %v3348
      %v3412 = vsel %vm468, %v3396, %v3350
      %v3413 = vsel %vm468, %v3397, %v3352
      %v3414 = vsel %vm468, %v3398, %v3354
      %v3415 = vsel %vm468, %v3399, %v3356
      %v3416 = vsel %vm468, %v3400, %v3358
      %v3417 = vsel %vm468, %v3401, %v3360
      %v3418 = vsel %vm468, %v3402, %v3362
      %v3419 = vsel %vm468, %v3403, %v3364
      %v3420 = vsel %vm468, %v3404, %v3366
      %v3421 = vsel %vm468, %v3405, %v3368
      %v3422 = vsel %vm468, %v3406, %v3370
      %v3423 = vsel %vm468, %v3407, %v3372
      %v3424 = vsel %vm468, %v3408, %v3374
      %v3425 = vsel %vm468, %v3409, %v3376
      %v3426 = vsel %vm468, %v3410, %v3378
      %v3427 = vpack.c.bf16 %v3412, %v3411
      %v3428 = vpack.c.bf16 %v3414, %v3413
      %v3429 = vpack.c.bf16 %v3416, %v3415
      %v3430 = vpack.c.bf16 %v3418, %v3417
      %v3431 = vpack.c.bf16 %v3420, %v3419
      %v3432 = vpack.c.bf16 %v3422, %v3421
      %v3433 = vpack.c.bf16 %v3424, %v3423
      %v3434 = vpack.c.bf16 %v3426, %v3425
      %v3435 = vld [vmem:[%s5] sm:$0xf]
      %v3436 = vld [vmem:[%s5 + $0x4] sm:$0xf]
      %v3437 = vld [vmem:[%s5 + $0x8] sm:$0xf]
      %v3438 = vld [vmem:[%s5 + $0xc] sm:$0xf]
      %v3439 = vld [vmem:[%s5 + $0x10] sm:$0xf]
      %v3440 = vld [vmem:[%s5 + $0x14] sm:$0xf]
      %v3441 = vld [vmem:[%s5 + $0x18] sm:$0xf]
      %v3442 = vld [vmem:[%s5 + $0x1c] sm:$0xf]
      %v3443 = vld [vmem:[%s5 + $0x20] sm:$0xf]
      %v3444 = vld [vmem:[%s5 + $0x24] sm:$0xf]
      %v3445 = vld [vmem:[%s5 + $0x28] sm:$0xf]
      %v3446 = vld [vmem:[%s5 + $0x2c] sm:$0xf]
      %v3447 = vlaneseq
      %v3448 = vshrl.u32 %v3447, 7
      %v3449 = vsub.s32 4, %v3448
      %v3450 = vrot.slane %v455, %v3449
      %v3463 = vunpack.c.l.b16 %v3435
      %v3464 = vunpack.c.l.b16 %v3436
      %v3465 = vunpack.c.l.b16 %v3437
      %v3466 = vunpack.c.l.b16 %v3438
      %v3467 = vunpack.c.l.b16 %v3439
      %v3468 = vunpack.c.l.b16 %v3440
      %v3469 = vunpack.c.l.b16 %v3441
      %v3470 = vunpack.c.l.b16 %v3442
      %v3471 = vunpack.c.l.b16 %v3443
      %v3472 = vunpack.c.l.b16 %v3444
      %v3473 = vunpack.c.l.b16 %v3445
      %v3474 = vunpack.c.l.b16 %v3446
      %v3475 = vpack.c.b16 %v3464, %v3463
      %v3476 = vpack.c.b16 %v3466, %v3465
      %v3477 = vpack.c.b16 %v3468, %v3467
      %v3478 = vpack.c.b16 %v3470, %v3469
      %v3479 = vpack.c.b16 %v3472, %v3471
      %v3480 = vpack.c.b16 %v3474, %v3473
      %vm3487 = vcmask 785408
      %v3489 = vsel %vm3487, %v3427, 0
      %v3492 = vsel %vm3487, %v3428, 0
      %v3495 = vsel %vm3487, %v3429, 0
      %v3498 = vsel %vm3487, %v3430, 0
      %v3501 = vsel %vm3487, %v3431, 0
      %v3504 = vsel %vm3487, %v3432, 0
      %v3507 = vsel %vm3487, %v3433, 0
      %v3510 = vsel %vm3487, %v3434, 0
      %3512 = vmatprep.subr.bf16.mxu0 0
      %3513 = vmatpush1.bf16.msra.mxu0 0
      %3514 = vmatprep.subr.bf16.mxu0 0
      %3515 = vmatpush1.bf16.msra.mxu0 0
      %3516 = vmatprep.subr.bf16.mxu0 0
      %3517 = vmatpush1.bf16.msra.mxu0 %v3480
      %3518 = vmatprep.subr.bf16.mxu0 0
      %3519 = vmatpush1.bf16.msra.mxu0 %v3479
      %3520 = vmatprep.subr.bf16.mxu0 0
      %3521 = vmatpush1.bf16.msra.mxu0 %v3478
      %3522 = vmatprep.subr.bf16.mxu0 0
      %3523 = vmatpush1.bf16.msra.mxu0 %v3477
      %3524 = vmatprep.subr.bf16.mxu0 0
      %3525 = vmatpush1.bf16.msra.mxu0 %v3476
      %3526 = vmatprep.subr.bf16.mxu0 0
      %3527 = vmatpush1.bf16.msra.mxu0 %v3475
      %3528 = vmatprep.subr.bf16.mxu0 0
      %3529 = vmatpush2.bf16.msra.mxu0 0
      %3530 = vmatprep.subr.bf16.mxu0 0
      %3531 = vmatpush2.bf16.msra.mxu0 0
      %3532 = vmatprep.subr.bf16.mxu0 0
      %3533 = vmatpush2.bf16.msra.mxu0 0
      %3534 = vmatprep.subr.bf16.mxu0 0
      %3535 = vmatpush2.bf16.msra.mxu0 0
      %3536 = vmatprep.subr.bf16.mxu0 0
      %3537 = vmatpush2.bf16.msra.mxu0 0
      %3538 = vmatprep.subr.bf16.mxu0 0
      %3539 = vmatpush2.bf16.msra.mxu0 0
      %3540 = vmatprep.subr.bf16.mxu0 0
      %3541 = vmatpush2.bf16.msra.mxu0 0
      %3542 = vmatprep.subr.bf16.mxu0 0
      %3543 = vmatpush2.bf16.msra.mxu0 0
      %3544 = vmatprep.mubr.bf16.mxu0 0
      %3545 = vmatmul.mubr.bf16.gmra.mxu0 %v3489
      %v3546 = vpop.f32.mrf.mxu0
      %v3547 = vadd.f32 %v3450, %v3546
      %v3548 = vpop.f32.mrf.mxu0
      %v3549 = vpop.f32.mrf.mxu0
      %v3550 = vadd.f32 %v3450, %v3549
      %v3551 = vpop.f32.mrf.mxu0
      %3552 = vmatprep.mubr.bf16.mxu0 0
      %3553 = vmatmul.mubr.bf16.gmra.mxu0 %v3492
      %v3554 = vpop.f32.mrf.mxu0
      %v3555 = vadd.f32 %v3450, %v3554
      %v3556 = vpop.f32.mrf.mxu0
      %v3557 = vpop.f32.mrf.mxu0
      %v3558 = vadd.f32 %v3450, %v3557
      %v3559 = vpop.f32.mrf.mxu0
      %3560 = vmatprep.mubr.bf16.mxu0 0
      %3561 = vmatmul.mubr.bf16.gmra.mxu0 %v3495
      %v3562 = vpop.f32.mrf.mxu0
      %v3563 = vadd.f32 %v3450, %v3562
      %v3564 = vpop.f32.mrf.mxu0
      %v3565 = vpop.f32.mrf.mxu0
      %v3566 = vadd.f32 %v3450, %v3565
      %v3567 = vpop.f32.mrf.mxu0
      %3568 = vmatprep.mubr.bf16.mxu0 0
      %3569 = vmatmul.mubr.bf16.gmra.mxu0 %v3498
      %v3570 = vpop.f32.mrf.mxu0
      %v3571 = vadd.f32 %v3450, %v3570
      %v3572 = vpop.f32.mrf.mxu0
      %v3573 = vpop.f32.mrf.mxu0
      %v3574 = vadd.f32 %v3450, %v3573
      %v3575 = vpop.f32.mrf.mxu0
      %3576 = vmatprep.mubr.bf16.mxu0 0
      %3577 = vmatmul.mubr.bf16.gmra.mxu0 %v3501
      %v3578 = vpop.f32.mrf.mxu0
      %v3579 = vadd.f32 %v3450, %v3578
      %v3580 = vpop.f32.mrf.mxu0
      %v3581 = vpop.f32.mrf.mxu0
      %v3582 = vadd.f32 %v3450, %v3581
      %v3583 = vpop.f32.mrf.mxu0
      %3584 = vmatprep.mubr.bf16.mxu0 0
      %3585 = vmatmul.mubr.bf16.gmra.mxu0 %v3504
      %v3586 = vpop.f32.mrf.mxu0
      %v3587 = vadd.f32 %v3450, %v3586
      %v3588 = vpop.f32.mrf.mxu0
      %v3589 = vpop.f32.mrf.mxu0
      %v3590 = vadd.f32 %v3450, %v3589
      %v3591 = vpop.f32.mrf.mxu0
      %3592 = vmatprep.mubr.bf16.mxu0 0
      %3593 = vmatmul.mubr.bf16.gmra.mxu0 %v3507
      %v3594 = vpop.f32.mrf.mxu0
      %v3595 = vadd.f32 %v3450, %v3594
      %v3596 = vpop.f32.mrf.mxu0
      %v3597 = vpop.f32.mrf.mxu0
      %v3598 = vadd.f32 %v3450, %v3597
      %v3599 = vpop.f32.mrf.mxu0
      %3600 = vmatprep.mubr.bf16.mxu0 0
      %3601 = vmatmul.mubr.bf16.gmra.mxu0 %v3510
      %v3602 = vpop.f32.mrf.mxu0
      %v3603 = vadd.f32 %v3450, %v3602
      %v3604 = vpop.f32.mrf.mxu0
      %v3605 = vpop.f32.mrf.mxu0
      %v3606 = vadd.f32 %v3450, %v3605
      %v3607 = vpop.f32.mrf.mxu0
      %3608 = vdwg.mxu0
      %v3609 = vmax.f32 %v3547, 0.0
      %v3610 = vmax.f32 %v3550, 0.0
      %v3611 = vmax.f32 %v3555, 0.0
      %v3612 = vmax.f32 %v3558, 0.0
      %v3613 = vmax.f32 %v3563, 0.0
      %v3614 = vmax.f32 %v3566, 0.0
      %v3615 = vmax.f32 %v3571, 0.0
      %v3616 = vmax.f32 %v3574, 0.0
      %v3617 = vmax.f32 %v3579, 0.0
      %v3618 = vmax.f32 %v3582, 0.0
      %v3619 = vmax.f32 %v3587, 0.0
      %v3620 = vmax.f32 %v3590, 0.0
      %v3621 = vmax.f32 %v3595, 0.0
      %v3622 = vmax.f32 %v3598, 0.0
      %v3623 = vmax.f32 %v3603, 0.0
      %v3624 = vmax.f32 %v3606, 0.0
      %s3625 = scalar_lea.vmem %s4, 32
      %v3626 = vld [vmem:[%s3625] sm:$0xf]
      %v3627 = vld [vmem:[%s3625 + $0x4] sm:$0xf]
      %v3628 = vld [vmem:[%s3625 + $0x8] sm:$0xf]
      %v3629 = vld [vmem:[%s3625 + $0xc] sm:$0xf]
      %s3630 = scalar_lea.vmem %s4, 48
      %v3631 = vld [vmem:[%s3630] sm:$0xf]
      %v3632 = vld [vmem:[%s3630 + $0x4] sm:$0xf]
      %v3633 = vld [vmem:[%s3630 + $0x8] sm:$0xf]
      %v3634 = vld [vmem:[%s3630 + $0xc] sm:$0xf]
      %v3635 = vpack.c.bf16 %v3610, %v3609
      %v3636 = vpack.c.bf16 %v3612, %v3611
      %v3637 = vpack.c.bf16 %v3614, %v3613
      %v3638 = vpack.c.bf16 %v3616, %v3615
      %v3639 = vpack.c.bf16 %v3618, %v3617
      %v3640 = vpack.c.bf16 %v3620, %v3619
      %v3641 = vpack.c.bf16 %v3622, %v3621
      %v3642 = vpack.c.bf16 %v3624, %v3623
      %v3647 = vunpack.c.l.b16 %v3626
      %v3648 = vunpack.c.l.b16 %v3627
      %v3649 = vunpack.c.l.b16 %v3628
      %v3650 = vunpack.c.l.b16 %v3629
      %v3651 = vpack.c.b16 %v3648, %v3647
      %v3652 = vpack.c.b16 %v3650, %v3649
      %v3656 = vsel %vm466, %v3635, 0
      %v3659 = vsel %vm466, %v3636, 0
      %v3662 = vsel %vm466, %v3637, 0
      %v3665 = vsel %vm466, %v3638, 0
      %v3668 = vsel %vm466, %v3639, 0
      %v3671 = vsel %vm466, %v3640, 0
      %v3674 = vsel %vm466, %v3641, 0
      %v3677 = vsel %vm466, %v3642, 0
      %3679 = vmatprep.subr.bf16.mxu0 0
      %3680 = vmatpush1.bf16.msra.mxu0 0
      %3681 = vmatprep.subr.bf16.mxu0 0
      %3682 = vmatpush1.bf16.msra.mxu0 0
      %3683 = vmatprep.subr.bf16.mxu0 0
      %3684 = vmatpush1.bf16.msra.mxu0 0
      %3685 = vmatprep.subr.bf16.mxu0 0
      %3686 = vmatpush1.bf16.msra.mxu0 0
      %3687 = vmatprep.subr.bf16.mxu0 0
      %3688 = vmatpush1.bf16.msra.mxu0 0
      %3689 = vmatprep.subr.bf16.mxu0 0
      %3690 = vmatpush1.bf16.msra.mxu0 0
      %3691 = vmatprep.subr.bf16.mxu0 0
      %3692 = vmatpush1.bf16.msra.mxu0 %v3652
      %3693 = vmatprep.subr.bf16.mxu0 0
      %3694 = vmatpush1.bf16.msra.mxu0 %v3651
      %3695 = vmatprep.subr.bf16.mxu0 0
      %3696 = vmatpush2.bf16.msra.mxu0 0
      %3697 = vmatprep.subr.bf16.mxu0 0
      %3698 = vmatpush2.bf16.msra.mxu0 0
      %3699 = vmatprep.subr.bf16.mxu0 0
      %3700 = vmatpush2.bf16.msra.mxu0 0
      %3701 = vmatprep.subr.bf16.mxu0 0
      %3702 = vmatpush2.bf16.msra.mxu0 0
      %3703 = vmatprep.subr.bf16.mxu0 0
      %3704 = vmatpush2.bf16.msra.mxu0 0
      %3705 = vmatprep.subr.bf16.mxu0 0
      %3706 = vmatpush2.bf16.msra.mxu0 0
      %3707 = vmatprep.subr.bf16.mxu0 0
      %3708 = vmatpush2.bf16.msra.mxu0 0
      %3709 = vmatprep.subr.bf16.mxu0 0
      %3710 = vmatpush2.bf16.msra.mxu0 0
      %3711 = vmatprep.mubr.bf16.mxu0 0
      %3712 = vmatmul.mubr.bf16.gmra.mxu0 %v3656
      %v3713 = vpop.f32.mrf.mxu0
      %v3714 = vadd.f32 0.0, %v3713
      %v3715 = vpop.f32.mrf.mxu0
      %v3716 = vpop.f32.mrf.mxu0
      %v3717 = vadd.f32 0.0, %v3716
      %v3718 = vpop.f32.mrf.mxu0
      %3719 = vmatprep.mubr.bf16.mxu0 0
      %3720 = vmatmul.mubr.bf16.gmra.mxu0 %v3659
      %v3721 = vpop.f32.mrf.mxu0
      %v3722 = vadd.f32 0.0, %v3721
      %v3723 = vpop.f32.mrf.mxu0
      %v3724 = vpop.f32.mrf.mxu0
      %v3725 = vadd.f32 0.0, %v3724
      %v3726 = vpop.f32.mrf.mxu0
      %3727 = vmatprep.mubr.bf16.mxu0 0
      %3728 = vmatmul.mubr.bf16.gmra.mxu0 %v3662
      %v3729 = vpop.f32.mrf.mxu0
      %v3730 = vadd.f32 0.0, %v3729
      %v3731 = vpop.f32.mrf.mxu0
      %v3732 = vpop.f32.mrf.mxu0
      %v3733 = vadd.f32 0.0, %v3732
      %v3734 = vpop.f32.mrf.mxu0
      %3735 = vmatprep.mubr.bf16.mxu0 0
      %3736 = vmatmul.mubr.bf16.gmra.mxu0 %v3665
      %v3737 = vpop.f32.mrf.mxu0
      %v3738 = vadd.f32 0.0, %v3737
      %v3739 = vpop.f32.mrf.mxu0
      %v3740 = vpop.f32.mrf.mxu0
      %v3741 = vadd.f32 0.0, %v3740
      %v3742 = vpop.f32.mrf.mxu0
      %3743 = vmatprep.mubr.bf16.mxu0 0
      %3744 = vmatmul.mubr.bf16.gmra.mxu0 %v3668
      %v3745 = vpop.f32.mrf.mxu0
      %v3746 = vadd.f32 0.0, %v3745
      %v3747 = vpop.f32.mrf.mxu0
      %v3748 = vpop.f32.mrf.mxu0
      %v3749 = vadd.f32 0.0, %v3748
      %v3750 = vpop.f32.mrf.mxu0
      %3751 = vmatprep.mubr.bf16.mxu0 0
      %3752 = vmatmul.mubr.bf16.gmra.mxu0 %v3671
      %v3753 = vpop.f32.mrf.mxu0
      %v3754 = vadd.f32 0.0, %v3753
      %v3755 = vpop.f32.mrf.mxu0
      %v3756 = vpop.f32.mrf.mxu0
      %v3757 = vadd.f32 0.0, %v3756
      %v3758 = vpop.f32.mrf.mxu0
      %3759 = vmatprep.mubr.bf16.mxu0 0
      %3760 = vmatmul.mubr.bf16.gmra.mxu0 %v3674
      %v3761 = vpop.f32.mrf.mxu0
      %v3762 = vadd.f32 0.0, %v3761
      %v3763 = vpop.f32.mrf.mxu0
      %v3764 = vpop.f32.mrf.mxu0
      %v3765 = vadd.f32 0.0, %v3764
      %v3766 = vpop.f32.mrf.mxu0
      %3767 = vmatprep.mubr.bf16.mxu0 0
      %3768 = vmatmul.mubr.bf16.gmra.mxu0 %v3677
      %v3769 = vpop.f32.mrf.mxu0
      %v3770 = vadd.f32 0.0, %v3769
      %v3771 = vpop.f32.mrf.mxu0
      %v3772 = vpop.f32.mrf.mxu0
      %v3773 = vadd.f32 0.0, %v3772
      %v3774 = vpop.f32.mrf.mxu0
      %3775 = vdwg.mxu0
      %v3776 = vpack.c.bf16 %v3717, %v3714
      %v3777 = vpack.c.bf16 %v3725, %v3722
      %v3778 = vpack.c.bf16 %v3733, %v3730
      %v3779 = vpack.c.bf16 %v3741, %v3738
      %v3780 = vpack.c.bf16 %v3749, %v3746
      %v3781 = vpack.c.bf16 %v3757, %v3754
      %v3782 = vpack.c.bf16 %v3765, %v3762
      %v3783 = vpack.c.bf16 %v3773, %v3770
      %v3784 = vlaneseq
      %v3785 = vshrl.u32 %v3784, 7
      %v3786 = vsub.s32 2, %v3785
      %v3787 = vrot.slane %v455, %v3786
      %3788 = vmatprep.subr.bf16.mxu0 0
      %3789 = vmatpush1.bf16.msra.mxu0 %v3783
      %3790 = vmatprep.subr.bf16.mxu0 0
      %3791 = vmatpush1.bf16.msra.mxu0 %v3782
      %3792 = vmatprep.subr.bf16.mxu0 0
      %3793 = vmatpush1.bf16.msra.mxu0 %v3781
      %3794 = vmatprep.subr.bf16.mxu0 0
      %3795 = vmatpush1.bf16.msra.mxu0 %v3780
      %3796 = vmatprep.subr.bf16.mxu0 0
      %3797 = vmatpush1.bf16.msra.mxu0 %v3779
      %3798 = vmatprep.subr.bf16.mxu0 0
      %3799 = vmatpush1.bf16.msra.mxu0 %v3778
      %3800 = vmatprep.subr.bf16.mxu0 0
      %3801 = vmatpush1.bf16.msra.mxu0 %v3777
      %3802 = vmatprep.subr.bf16.mxu0 0
      %3803 = vmatpush1.bf16.msra.mxu0 %v3776
      %3804 = vmatprep.subr.bf16.mxu0 0
      %3805 = vmatpush2.bf16.msra.mxu0 0
      %3806 = vmatprep.subr.bf16.mxu0 0
      %3807 = vmatpush2.bf16.msra.mxu0 0
      %3808 = vmatprep.subr.bf16.mxu0 0
      %3809 = vmatpush2.bf16.msra.mxu0 0
      %3810 = vmatprep.subr.bf16.mxu0 0
      %3811 = vmatpush2.bf16.msra.mxu0 0
      %3812 = vmatprep.subr.bf16.mxu0 0
      %3813 = vmatpush2.bf16.msra.mxu0 0
      %3814 = vmatprep.subr.bf16.mxu0 0
      %3815 = vmatpush2.bf16.msra.mxu0 0
      %3816 = vmatprep.subr.bf16.mxu0 0
      %3817 = vmatpush2.bf16.msra.mxu0 0
      %3818 = vmatprep.subr.bf16.mxu0 0
      %3819 = vmatpush2.bf16.msra.mxu0 0
      %3820 = vmatprep.mubr.bf16.mxu0 0
      %3821 = vmatmul.mubr.bf16.gmra.mxu0 %v698
      %v3822 = vpop.f32.mrf.mxu0
      %v3823 = vadd.f32 %v3787, %v3822
      %v3824 = vpop.f32.mrf.mxu0
      %v3825 = vpop.f32.mrf.mxu0
      %v3826 = vadd.f32 %v3787, %v3825
      %v3827 = vpop.f32.mrf.mxu0
      %3828 = vmatprep.mubr.bf16.mxu0 0
      %3829 = vmatmul.mubr.bf16.gmra.mxu0 %v699
      %v3830 = vpop.f32.mrf.mxu0
      %v3831 = vadd.f32 %v3787, %v3830
      %v3832 = vpop.f32.mrf.mxu0
      %v3833 = vpop.f32.mrf.mxu0
      %v3834 = vadd.f32 %v3787, %v3833
      %v3835 = vpop.f32.mrf.mxu0
      %3836 = vmatprep.mubr.bf16.mxu0 0
      %3837 = vmatmul.mubr.bf16.gmra.mxu0 %v700
      %v3838 = vpop.f32.mrf.mxu0
      %v3839 = vadd.f32 %v3787, %v3838
      %v3840 = vpop.f32.mrf.mxu0
      %v3841 = vpop.f32.mrf.mxu0
      %v3842 = vadd.f32 %v3787, %v3841
      %v3843 = vpop.f32.mrf.mxu0
      %3844 = vmatprep.mubr.bf16.mxu0 0
      %3845 = vmatmul.mubr.bf16.gmra.mxu0 %v701
      %v3846 = vpop.f32.mrf.mxu0
      %v3847 = vadd.f32 %v3787, %v3846
      %v3848 = vpop.f32.mrf.mxu0
      %v3849 = vpop.f32.mrf.mxu0
      %v3850 = vadd.f32 %v3787, %v3849
      %v3851 = vpop.f32.mrf.mxu0
      %3852 = vmatprep.mubr.bf16.mxu0 0
      %3853 = vmatmul.mubr.bf16.gmra.mxu0 %v702
      %v3854 = vpop.f32.mrf.mxu0
      %v3855 = vadd.f32 %v3787, %v3854
      %v3856 = vpop.f32.mrf.mxu0
      %v3857 = vpop.f32.mrf.mxu0
      %v3858 = vadd.f32 %v3787, %v3857
      %v3859 = vpop.f32.mrf.mxu0
      %3860 = vmatprep.mubr.bf16.mxu0 0
      %3861 = vmatmul.mubr.bf16.gmra.mxu0 %v703
      %v3862 = vpop.f32.mrf.mxu0
      %v3863 = vadd.f32 %v3787, %v3862
      %v3864 = vpop.f32.mrf.mxu0
      %v3865 = vpop.f32.mrf.mxu0
      %v3866 = vadd.f32 %v3787, %v3865
      %v3867 = vpop.f32.mrf.mxu0
      %3868 = vmatprep.mubr.bf16.mxu0 0
      %3869 = vmatmul.mubr.bf16.gmra.mxu0 %v704
      %v3870 = vpop.f32.mrf.mxu0
      %v3871 = vadd.f32 %v3787, %v3870
      %v3872 = vpop.f32.mrf.mxu0
      %v3873 = vpop.f32.mrf.mxu0
      %v3874 = vadd.f32 %v3787, %v3873
      %v3875 = vpop.f32.mrf.mxu0
      %3876 = vmatprep.mubr.bf16.mxu0 0
      %3877 = vmatmul.mubr.bf16.gmra.mxu0 %v705
      %v3878 = vpop.f32.mrf.mxu0
      %v3879 = vadd.f32 %v3787, %v3878
      %v3880 = vpop.f32.mrf.mxu0
      %v3881 = vpop.f32.mrf.mxu0
      %v3882 = vadd.f32 %v3787, %v3881
      %v3883 = vpop.f32.mrf.mxu0
      %3884 = vdwg.mxu0
      %v3885 = vmax.f32 %v3823, 0.0
      %v3886 = vmax.f32 %v3826, 0.0
      %v3887 = vmax.f32 %v3831, 0.0
      %v3888 = vmax.f32 %v3834, 0.0
      %v3889 = vmax.f32 %v3839, 0.0
      %v3890 = vmax.f32 %v3842, 0.0
      %v3891 = vmax.f32 %v3847, 0.0
      %v3892 = vmax.f32 %v3850, 0.0
      %v3893 = vmax.f32 %v3855, 0.0
      %v3894 = vmax.f32 %v3858, 0.0
      %v3895 = vmax.f32 %v3863, 0.0
      %v3896 = vmax.f32 %v3866, 0.0
      %v3897 = vmax.f32 %v3871, 0.0
      %v3898 = vmax.f32 %v3874, 0.0
      %v3899 = vmax.f32 %v3879, 0.0
      %v3900 = vmax.f32 %v3882, 0.0
      %v3901 = vpack.c.bf16 %v3886, %v3885
      %v3902 = vpack.c.bf16 %v3888, %v3887
      %v3903 = vpack.c.bf16 %v3890, %v3889
      %v3904 = vpack.c.bf16 %v3892, %v3891
      %v3905 = vpack.c.bf16 %v3894, %v3893
      %v3906 = vpack.c.bf16 %v3896, %v3895
      %v3907 = vpack.c.bf16 %v3898, %v3897
      %v3908 = vpack.c.bf16 %v3900, %v3899
      %v3913 = vunpack.c.l.b16 %v3631
      %v3914 = vunpack.c.l.b16 %v3632
      %v3915 = vunpack.c.l.b16 %v3633
      %v3916 = vunpack.c.l.b16 %v3634
      %v3917 = vpack.c.b16 %v3914, %v3913
      %v3918 = vpack.c.b16 %v3916, %v3915
      %v3922 = vsel %vm466, %v3901, 0
      %v3925 = vsel %vm466, %v3902, 0
      %v3928 = vsel %vm466, %v3903, 0
      %v3931 = vsel %vm466, %v3904, 0
      %v3934 = vsel %vm466, %v3905, 0
      %v3937 = vsel %vm466, %v3906, 0
      %v3940 = vsel %vm466, %v3907, 0
      %v3943 = vsel %vm466, %v3908, 0
      %3945 = vmatprep.subr.bf16.mxu0 0
      %3946 = vmatpush1.bf16.msra.mxu0 0
      %3947 = vmatprep.subr.bf16.mxu0 0
      %3948 = vmatpush1.bf16.msra.mxu0 0
      %3949 = vmatprep.subr.bf16.mxu0 0
      %3950 = vmatpush1.bf16.msra.mxu0 0
      %3951 = vmatprep.subr.bf16.mxu0 0
      %3952 = vmatpush1.bf16.msra.mxu0 0
      %3953 = vmatprep.subr.bf16.mxu0 0
      %3954 = vmatpush1.bf16.msra.mxu0 0
      %3955 = vmatprep.subr.bf16.mxu0 0
      %3956 = vmatpush1.bf16.msra.mxu0 0
      %3957 = vmatprep.subr.bf16.mxu0 0
      %3958 = vmatpush1.bf16.msra.mxu0 %v3918
      %3959 = vmatprep.subr.bf16.mxu0 0
      %3960 = vmatpush1.bf16.msra.mxu0 %v3917
      %3961 = vmatprep.subr.bf16.mxu0 0
      %3962 = vmatpush2.bf16.msra.mxu0 0
      %3963 = vmatprep.subr.bf16.mxu0 0
      %3964 = vmatpush2.bf16.msra.mxu0 0
      %3965 = vmatprep.subr.bf16.mxu0 0
      %3966 = vmatpush2.bf16.msra.mxu0 0
      %3967 = vmatprep.subr.bf16.mxu0 0
      %3968 = vmatpush2.bf16.msra.mxu0 0
      %3969 = vmatprep.subr.bf16.mxu0 0
      %3970 = vmatpush2.bf16.msra.mxu0 0
      %3971 = vmatprep.subr.bf16.mxu0 0
      %3972 = vmatpush2.bf16.msra.mxu0 0
      %3973 = vmatprep.subr.bf16.mxu0 0
      %3974 = vmatpush2.bf16.msra.mxu0 0
      %3975 = vmatprep.subr.bf16.mxu0 0
      %3976 = vmatpush2.bf16.msra.mxu0 0
      %3977 = vmatprep.mubr.bf16.mxu0 0
      %3978 = vmatmul.mubr.bf16.gmra.mxu0 %v3922
      %v3979 = vpop.f32.mrf.mxu0
      %v3980 = vadd.f32 0.0, %v3979
      %v3981 = vpop.f32.mrf.mxu0
      %v3982 = vpop.f32.mrf.mxu0
      %v3983 = vadd.f32 0.0, %v3982
      %v3984 = vpop.f32.mrf.mxu0
      %3985 = vmatprep.mubr.bf16.mxu0 0
      %3986 = vmatmul.mubr.bf16.gmra.mxu0 %v3925
      %v3987 = vpop.f32.mrf.mxu0
      %v3988 = vadd.f32 0.0, %v3987
      %v3989 = vpop.f32.mrf.mxu0
      %v3990 = vpop.f32.mrf.mxu0
      %v3991 = vadd.f32 0.0, %v3990
      %v3992 = vpop.f32.mrf.mxu0
      %3993 = vmatprep.mubr.bf16.mxu0 0
      %3994 = vmatmul.mubr.bf16.gmra.mxu0 %v3928
      %v3995 = vpop.f32.mrf.mxu0
      %v3996 = vadd.f32 0.0, %v3995
      %v3997 = vpop.f32.mrf.mxu0
      %v3998 = vpop.f32.mrf.mxu0
      %v3999 = vadd.f32 0.0, %v3998
      %v4000 = vpop.f32.mrf.mxu0
      %4001 = vmatprep.mubr.bf16.mxu0 0
      %4002 = vmatmul.mubr.bf16.gmra.mxu0 %v3931
      %v4003 = vpop.f32.mrf.mxu0
      %v4004 = vadd.f32 0.0, %v4003
      %v4005 = vpop.f32.mrf.mxu0
      %v4006 = vpop.f32.mrf.mxu0
      %v4007 = vadd.f32 0.0, %v4006
      %v4008 = vpop.f32.mrf.mxu0
      %4009 = vmatprep.mubr.bf16.mxu0 0
      %4010 = vmatmul.mubr.bf16.gmra.mxu0 %v3934
      %v4011 = vpop.f32.mrf.mxu0
      %v4012 = vadd.f32 0.0, %v4011
      %v4013 = vpop.f32.mrf.mxu0
      %v4014 = vpop.f32.mrf.mxu0
      %v4015 = vadd.f32 0.0, %v4014
      %v4016 = vpop.f32.mrf.mxu0
      %4017 = vmatprep.mubr.bf16.mxu0 0
      %4018 = vmatmul.mubr.bf16.gmra.mxu0 %v3937
      %v4019 = vpop.f32.mrf.mxu0
      %v4020 = vadd.f32 0.0, %v4019
      %v4021 = vpop.f32.mrf.mxu0
      %v4022 = vpop.f32.mrf.mxu0
      %v4023 = vadd.f32 0.0, %v4022
      %v4024 = vpop.f32.mrf.mxu0
      %4025 = vmatprep.mubr.bf16.mxu0 0
      %4026 = vmatmul.mubr.bf16.gmra.mxu0 %v3940
      %v4027 = vpop.f32.mrf.mxu0
      %v4028 = vadd.f32 0.0, %v4027
      %v4029 = vpop.f32.mrf.mxu0
      %v4030 = vpop.f32.mrf.mxu0
      %v4031 = vadd.f32 0.0, %v4030
      %v4032 = vpop.f32.mrf.mxu0
      %4033 = vmatprep.mubr.bf16.mxu0 0
      %4034 = vmatmul.mubr.bf16.gmra.mxu0 %v3943
      %v4035 = vpop.f32.mrf.mxu0
      %v4036 = vadd.f32 0.0, %v4035
      %v4037 = vpop.f32.mrf.mxu0
      %v4038 = vpop.f32.mrf.mxu0
      %v4039 = vadd.f32 0.0, %v4038
      %v4040 = vpop.f32.mrf.mxu0
      %4041 = vdwg.mxu0
      %v4042 = vpack.c.bf16 %v3983, %v3980
      %v4043 = vpack.c.bf16 %v3991, %v3988
      %v4044 = vpack.c.bf16 %v3999, %v3996
      %v4045 = vpack.c.bf16 %v4007, %v4004
      %v4046 = vpack.c.bf16 %v4015, %v4012
      %v4047 = vpack.c.bf16 %v4023, %v4020
      %v4048 = vpack.c.bf16 %v4031, %v4028
      %v4049 = vpack.c.bf16 %v4039, %v4036
      %v4050 = vlaneseq
      %v4051 = vshrl.u32 %v4050, 7
      %v4052 = vsub.s32 3, %v4051
      %v4053 = vrot.slane %v455, %v4052
      %4054 = vmatprep.subr.bf16.mxu0 0
      %4055 = vmatpush1.bf16.msra.mxu0 %v4049
      %4056 = vmatprep.subr.bf16.mxu0 0
      %4057 = vmatpush1.bf16.msra.mxu0 %v4048
      %4058 = vmatprep.subr.bf16.mxu0 0
      %4059 = vmatpush1.bf16.msra.mxu0 %v4047
      %4060 = vmatprep.subr.bf16.mxu0 0
      %4061 = vmatpush1.bf16.msra.mxu0 %v4046
      %4062 = vmatprep.subr.bf16.mxu0 0
      %4063 = vmatpush1.bf16.msra.mxu0 %v4045
      %4064 = vmatprep.subr.bf16.mxu0 0
      %4065 = vmatpush1.bf16.msra.mxu0 %v4044
      %4066 = vmatprep.subr.bf16.mxu0 0
      %4067 = vmatpush1.bf16.msra.mxu0 %v4043
      %4068 = vmatprep.subr.bf16.mxu0 0
      %4069 = vmatpush1.bf16.msra.mxu0 %v4042
      %4070 = vmatprep.subr.bf16.mxu0 0
      %4071 = vmatpush2.bf16.msra.mxu0 0
      %4072 = vmatprep.subr.bf16.mxu0 0
      %4073 = vmatpush2.bf16.msra.mxu0 0
      %4074 = vmatprep.subr.bf16.mxu0 0
      %4075 = vmatpush2.bf16.msra.mxu0 0
      %4076 = vmatprep.subr.bf16.mxu0 0
      %4077 = vmatpush2.bf16.msra.mxu0 0
      %4078 = vmatprep.subr.bf16.mxu0 0
      %4079 = vmatpush2.bf16.msra.mxu0 0
      %4080 = vmatprep.subr.bf16.mxu0 0
      %4081 = vmatpush2.bf16.msra.mxu0 0
      %4082 = vmatprep.subr.bf16.mxu0 0
      %4083 = vmatpush2.bf16.msra.mxu0 0
      %4084 = vmatprep.subr.bf16.mxu0 0
      %4085 = vmatpush2.bf16.msra.mxu0 0
      %4086 = vmatprep.mubr.bf16.mxu0 0
      %4087 = vmatmul.mubr.bf16.gmra.mxu0 %v698
      %v4088 = vpop.f32.mrf.mxu0
      %v4089 = vadd.f32 %v4053, %v4088
      %v4090 = vpop.f32.mrf.mxu0
      %v4091 = vpop.f32.mrf.mxu0
      %v4092 = vadd.f32 %v4053, %v4091
      %v4093 = vpop.f32.mrf.mxu0
      %4094 = vmatprep.mubr.bf16.mxu0 0
      %4095 = vmatmul.mubr.bf16.gmra.mxu0 %v699
      %v4096 = vpop.f32.mrf.mxu0
      %v4097 = vadd.f32 %v4053, %v4096
      %v4098 = vpop.f32.mrf.mxu0
      %v4099 = vpop.f32.mrf.mxu0
      %v4100 = vadd.f32 %v4053, %v4099
      %v4101 = vpop.f32.mrf.mxu0
      %4102 = vmatprep.mubr.bf16.mxu0 0
      %4103 = vmatmul.mubr.bf16.gmra.mxu0 %v700
      %v4104 = vpop.f32.mrf.mxu0
      %v4105 = vadd.f32 %v4053, %v4104
      %v4106 = vpop.f32.mrf.mxu0
      %v4107 = vpop.f32.mrf.mxu0
      %v4108 = vadd.f32 %v4053, %v4107
      %v4109 = vpop.f32.mrf.mxu0
      %4110 = vmatprep.mubr.bf16.mxu0 0
      %4111 = vmatmul.mubr.bf16.gmra.mxu0 %v701
      %v4112 = vpop.f32.mrf.mxu0
      %v4113 = vadd.f32 %v4053, %v4112
      %v4114 = vpop.f32.mrf.mxu0
      %v4115 = vpop.f32.mrf.mxu0
      %v4116 = vadd.f32 %v4053, %v4115
      %v4117 = vpop.f32.mrf.mxu0
      %4118 = vmatprep.mubr.bf16.mxu0 0
      %4119 = vmatmul.mubr.bf16.gmra.mxu0 %v702
      %v4120 = vpop.f32.mrf.mxu0
      %v4121 = vadd.f32 %v4053, %v4120
      %v4122 = vpop.f32.mrf.mxu0
      %v4123 = vpop.f32.mrf.mxu0
      %v4124 = vadd.f32 %v4053, %v4123
      %v4125 = vpop.f32.mrf.mxu0
      %4126 = vmatprep.mubr.bf16.mxu0 0
      %4127 = vmatmul.mubr.bf16.gmra.mxu0 %v703
      %v4128 = vpop.f32.mrf.mxu0
      %v4129 = vadd.f32 %v4053, %v4128
      %v4130 = vpop.f32.mrf.mxu0
      %v4131 = vpop.f32.mrf.mxu0
      %v4132 = vadd.f32 %v4053, %v4131
      %v4133 = vpop.f32.mrf.mxu0
      %4134 = vmatprep.mubr.bf16.mxu0 0
      %4135 = vmatmul.mubr.bf16.gmra.mxu0 %v704
      %v4136 = vpop.f32.mrf.mxu0
      %v4137 = vadd.f32 %v4053, %v4136
      %v4138 = vpop.f32.mrf.mxu0
      %v4139 = vpop.f32.mrf.mxu0
      %v4140 = vadd.f32 %v4053, %v4139
      %v4141 = vpop.f32.mrf.mxu0
      %4142 = vmatprep.mubr.bf16.mxu0 0
      %4143 = vmatmul.mubr.bf16.gmra.mxu0 %v705
      %v4144 = vpop.f32.mrf.mxu0
      %v4145 = vadd.f32 %v4053, %v4144
      %v4146 = vpop.f32.mrf.mxu0
      %v4147 = vpop.f32.mrf.mxu0
      %v4148 = vadd.f32 %v4053, %v4147
      %v4149 = vpop.f32.mrf.mxu0
      %4150 = vdwg.mxu0
      %v4151 = vmax.f32 %v4089, 0.0
      %v4152 = vmax.f32 %v4092, 0.0
      %v4153 = vmax.f32 %v4097, 0.0
      %v4154 = vmax.f32 %v4100, 0.0
      %v4155 = vmax.f32 %v4105, 0.0
      %v4156 = vmax.f32 %v4108, 0.0
      %v4157 = vmax.f32 %v4113, 0.0
      %v4158 = vmax.f32 %v4116, 0.0
      %v4159 = vmax.f32 %v4121, 0.0
      %v4160 = vmax.f32 %v4124, 0.0
      %v4161 = vmax.f32 %v4129, 0.0
      %v4162 = vmax.f32 %v4132, 0.0
      %v4163 = vmax.f32 %v4137, 0.0
      %v4164 = vmax.f32 %v4140, 0.0
      %v4165 = vmax.f32 %v4145, 0.0
      %v4166 = vmax.f32 %v4148, 0.0
      %v4167 = vmul.f32 %v4151, %v1668
      %v4168 = vmul.f32 %v4153, %v1673
      %v4169 = vmul.f32 %v4155, %v1678
      %v4170 = vmul.f32 %v4157, %v1683
      %v4171 = vmul.f32 %v4159, %v1688
      %v4172 = vmul.f32 %v4161, %v1693
      %v4173 = vmul.f32 %v4163, %v1698
      %v4174 = vmul.f32 %v4165, %v1703
      %v4175 = vsel %vm466, %v4167, 0.0
      %v4176 = vrot.slane %v4175, 4
      %v4177 = vadd.f32 %v4175, %v4176
      %v4178 = vrot.slane %v4177, 2
      %v4179 = vadd.f32 %v4177, %v4178
      %v4180 = vrot.slane %v4179, 1
      %v4181 = vadd.f32 %v4179, %v4180
      %v4182 = vsel %vm466, %v4168, 0.0
      %v4183 = vrot.slane %v4182, 4
      %v4184 = vadd.f32 %v4182, %v4183
      %v4185 = vrot.slane %v4184, 2
      %v4186 = vadd.f32 %v4184, %v4185
      %v4187 = vrot.slane %v4186, 1
      %v4188 = vadd.f32 %v4186, %v4187
      %v4189 = vsel %vm466, %v4169, 0.0
      %v4190 = vrot.slane %v4189, 4
      %v4191 = vadd.f32 %v4189, %v4190
      %v4192 = vrot.slane %v4191, 2
      %v4193 = vadd.f32 %v4191, %v4192
      %v4194 = vrot.slane %v4193, 1
      %v4195 = vadd.f32 %v4193, %v4194
      %v4196 = vsel %vm466, %v4170, 0.0
      %v4197 = vrot.slane %v4196, 4
      %v4198 = vadd.f32 %v4196, %v4197
      %v4199 = vrot.slane %v4198, 2
      %v4200 = vadd.f32 %v4198, %v4199
      %v4201 = vrot.slane %v4200, 1
      %v4202 = vadd.f32 %v4200, %v4201
      %v4203 = vsel %vm466, %v4171, 0.0
      %v4204 = vrot.slane %v4203, 4
      %v4205 = vadd.f32 %v4203, %v4204
      %v4206 = vrot.slane %v4205, 2
      %v4207 = vadd.f32 %v4205, %v4206
      %v4208 = vrot.slane %v4207, 1
      %v4209 = vadd.f32 %v4207, %v4208
      %v4210 = vsel %vm466, %v4172, 0.0
      %v4211 = vrot.slane %v4210, 4
      %v4212 = vadd.f32 %v4210, %v4211
      %v4213 = vrot.slane %v4212, 2
      %v4214 = vadd.f32 %v4212, %v4213
      %v4215 = vrot.slane %v4214, 1
      %v4216 = vadd.f32 %v4214, %v4215
      %v4217 = vsel %vm466, %v4173, 0.0
      %v4218 = vrot.slane %v4217, 4
      %v4219 = vadd.f32 %v4217, %v4218
      %v4220 = vrot.slane %v4219, 2
      %v4221 = vadd.f32 %v4219, %v4220
      %v4222 = vrot.slane %v4221, 1
      %v4223 = vadd.f32 %v4221, %v4222
      %v4224 = vsel %vm466, %v4174, 0.0
      %v4225 = vrot.slane %v4224, 4
      %v4226 = vadd.f32 %v4224, %v4225
      %v4227 = vrot.slane %v4226, 2
      %v4228 = vadd.f32 %v4226, %v4227
      %v4229 = vrot.slane %v4228, 1
      %v4230 = vadd.f32 %v4228, %v4229
      %vm4231 = vcmask 7168
      %v4232 = vsel %vm4231, %v439, 0.0
      %v4233 = vrot.slane %v4232, 4
      %v4234 = vadd.f32 %v4232, %v4233
      %v4235 = vrot.slane %v4234, 2
      %v4236 = vadd.f32 %v4234, %v4235
      %v4237 = vrot.slane %v4236, 1
      %v4238 = vadd.f32 %v4236, %v4237
      %v4239 = vsel %vm4231, %v441, 0.0
      %v4240 = vrot.slane %v4239, 4
      %v4241 = vadd.f32 %v4239, %v4240
      %v4242 = vrot.slane %v4241, 2
      %v4243 = vadd.f32 %v4241, %v4242
      %v4244 = vrot.slane %v4243, 1
      %v4245 = vadd.f32 %v4243, %v4244
      %v4246 = vsel %vm4231, %v443, 0.0
      %v4247 = vrot.slane %v4246, 4
      %v4248 = vadd.f32 %v4246, %v4247
      %v4249 = vrot.slane %v4248, 2
      %v4250 = vadd.f32 %v4248, %v4249
      %v4251 = vrot.slane %v4250, 1
      %v4252 = vadd.f32 %v4250, %v4251
      %v4253 = vsel %vm4231, %v445, 0.0
      %v4254 = vrot.slane %v4253, 4
      %v4255 = vadd.f32 %v4253, %v4254
      %v4256 = vrot.slane %v4255, 2
      %v4257 = vadd.f32 %v4255, %v4256
      %v4258 = vrot.slane %v4257, 1
      %v4259 = vadd.f32 %v4257, %v4258
      %v4260 = vsel %vm4231, %v447, 0.0
      %v4261 = vrot.slane %v4260, 4
      %v4262 = vadd.f32 %v4260, %v4261
      %v4263 = vrot.slane %v4262, 2
      %v4264 = vadd.f32 %v4262, %v4263
      %v4265 = vrot.slane %v4264, 1
      %v4266 = vadd.f32 %v4264, %v4265
      %v4267 = vsel %vm4231, %v449, 0.0
      %v4268 = vrot.slane %v4267, 4
      %v4269 = vadd.f32 %v4267, %v4268
      %v4270 = vrot.slane %v4269, 2
      %v4271 = vadd.f32 %v4269, %v4270
      %v4272 = vrot.slane %v4271, 1
      %v4273 = vadd.f32 %v4271, %v4272
      %v4274 = vsel %vm4231, %v451, 0.0
      %v4275 = vrot.slane %v4274, 4
      %v4276 = vadd.f32 %v4274, %v4275
      %v4277 = vrot.slane %v4276, 2
      %v4278 = vadd.f32 %v4276, %v4277
      %v4279 = vrot.slane %v4278, 1
      %v4280 = vadd.f32 %v4278, %v4279
      %v4281 = vsel %vm4231, %v453, 0.0
      %v4282 = vrot.slane %v4281, 4
      %v4283 = vadd.f32 %v4281, %v4282
      %v4284 = vrot.slane %v4283, 2
      %v4285 = vadd.f32 %v4283, %v4284
      %v4286 = vrot.slane %v4285, 1
      %v4287 = vadd.f32 %v4285, %v4286
      %v4288 = vmax.f32 %v4238, 1e-13
      %v4289 = vmax.f32 %v4245, 1e-13
      %v4290 = vmax.f32 %v4252, 1e-13
      %v4291 = vmax.f32 %v4259, 1e-13
      %v4292 = vmax.f32 %v4266, 1e-13
      %v4293 = vmax.f32 %v4273, 1e-13
      %v4294 = vmax.f32 %v4280, 1e-13
      %v4295 = vmax.f32 %v4287, 1e-13
      %4297 = vset.pattern.permute.xlu0 0
      %4298 = vperm.xlu0 %4297, %v4288
      %v4299 = vpop.permute.xlu0 %4298
      %4302 = vset.pattern.permute.xlu0 0
      %4303 = vperm.xlu0 %4302, %v4289
      %v4304 = vpop.permute.xlu0 %4303
      %4307 = vset.pattern.permute.xlu0 0
      %4308 = vperm.xlu0 %4307, %v4290
      %v4309 = vpop.permute.xlu0 %4308
      %4312 = vset.pattern.permute.xlu0 0
      %4313 = vperm.xlu0 %4312, %v4291
      %v4314 = vpop.permute.xlu0 %4313
      %4317 = vset.pattern.permute.xlu0 0
      %4318 = vperm.xlu0 %4317, %v4292
      %v4319 = vpop.permute.xlu0 %4318
      %4322 = vset.pattern.permute.xlu0 0
      %4323 = vperm.xlu0 %4322, %v4293
      %v4324 = vpop.permute.xlu0 %4323
      %4327 = vset.pattern.permute.xlu0 0
      %4328 = vperm.xlu0 %4327, %v4294
      %v4329 = vpop.permute.xlu0 %4328
      %4332 = vset.pattern.permute.xlu0 0
      %4333 = vperm.xlu0 %4332, %v4295
      %v4334 = vpop.permute.xlu0 %4333
      %v4336 = vrcp.pop %v4299
      %v4337 = vmul.f32 %v4181, %v4336
      %v4338 = vrcp.pop %v4304
      %v4339 = vmul.f32 %v4188, %v4338
      %v4340 = vrcp.pop %v4309
      %v4341 = vmul.f32 %v4195, %v4340
      %v4342 = vrcp.pop %v4314
      %v4343 = vmul.f32 %v4202, %v4342
      %v4344 = vrcp.pop %v4319
      %v4345 = vmul.f32 %v4209, %v4344
      %v4346 = vrcp.pop %v4324
      %v4347 = vmul.f32 %v4216, %v4346
      %v4348 = vrcp.pop %v4329
      %v4349 = vmul.f32 %v4223, %v4348
      %v4350 = vrcp.pop %v4334
      %v4351 = vmul.f32 %v4230, %v4350
      %v4352 = vmul.f32 %v4152, %v2598
      %v4353 = vmul.f32 %v4154, %v2603
      %v4354 = vmul.f32 %v4156, %v2608
      %v4355 = vmul.f32 %v4158, %v2613
      %v4356 = vmul.f32 %v4160, %v2618
      %v4357 = vmul.f32 %v4162, %v2623
      %v4358 = vmul.f32 %v4164, %v2628
      %v4359 = vmul.f32 %v4166, %v2633
      %v4360 = vsel %vm466, %v4352, 0.0
      %v4361 = vrot.slane %v4360, 4
      %v4362 = vadd.f32 %v4360, %v4361
      %v4363 = vrot.slane %v4362, 2
      %v4364 = vadd.f32 %v4362, %v4363
      %v4365 = vrot.slane %v4364, 1
      %v4366 = vadd.f32 %v4364, %v4365
      %v4367 = vsel %vm466, %v4353, 0.0
      %v4368 = vrot.slane %v4367, 4
      %v4369 = vadd.f32 %v4367, %v4368
      %v4370 = vrot.slane %v4369, 2
      %v4371 = vadd.f32 %v4369, %v4370
      %v4372 = vrot.slane %v4371, 1
      %v4373 = vadd.f32 %v4371, %v4372
      %v4374 = vsel %vm466, %v4354, 0.0
      %v4375 = vrot.slane %v4374, 4
      %v4376 = vadd.f32 %v4374, %v4375
      %v4377 = vrot.slane %v4376, 2
      %v4378 = vadd.f32 %v4376, %v4377
      %v4379 = vrot.slane %v4378, 1
      %v4380 = vadd.f32 %v4378, %v4379
      %v4381 = vsel %vm466, %v4355, 0.0
      %v4382 = vrot.slane %v4381, 4
      %v4383 = vadd.f32 %v4381, %v4382
      %v4384 = vrot.slane %v4383, 2
      %v4385 = vadd.f32 %v4383, %v4384
      %v4386 = vrot.slane %v4385, 1
      %v4387 = vadd.f32 %v4385, %v4386
      %v4388 = vsel %vm466, %v4356, 0.0
      %v4389 = vrot.slane %v4388, 4
      %v4390 = vadd.f32 %v4388, %v4389
      %v4391 = vrot.slane %v4390, 2
      %v4392 = vadd.f32 %v4390, %v4391
      %v4393 = vrot.slane %v4392, 1
      %v4394 = vadd.f32 %v4392, %v4393
      %v4395 = vsel %vm466, %v4357, 0.0
      %v4396 = vrot.slane %v4395, 4
      %v4397 = vadd.f32 %v4395, %v4396
      %v4398 = vrot.slane %v4397, 2
      %v4399 = vadd.f32 %v4397, %v4398
      %v4400 = vrot.slane %v4399, 1
      %v4401 = vadd.f32 %v4399, %v4400
      %v4402 = vsel %vm466, %v4358, 0.0
      %v4403 = vrot.slane %v4402, 4
      %v4404 = vadd.f32 %v4402, %v4403
      %v4405 = vrot.slane %v4404, 2
      %v4406 = vadd.f32 %v4404, %v4405
      %v4407 = vrot.slane %v4406, 1
      %v4408 = vadd.f32 %v4406, %v4407
      %v4409 = vsel %vm466, %v4359, 0.0
      %v4410 = vrot.slane %v4409, 4
      %v4411 = vadd.f32 %v4409, %v4410
      %v4412 = vrot.slane %v4411, 2
      %v4413 = vadd.f32 %v4411, %v4412
      %v4414 = vrot.slane %v4413, 1
      %v4415 = vadd.f32 %v4413, %v4414
      %v4416 = vsel %vm4231, %v440, 0.0
      %v4417 = vrot.slane %v4416, 4
      %v4418 = vadd.f32 %v4416, %v4417
      %v4419 = vrot.slane %v4418, 2
      %v4420 = vadd.f32 %v4418, %v4419
      %v4421 = vrot.slane %v4420, 1
      %v4422 = vadd.f32 %v4420, %v4421
      %v4423 = vsel %vm4231, %v442, 0.0
      %v4424 = vrot.slane %v4423, 4
      %v4425 = vadd.f32 %v4423, %v4424
      %v4426 = vrot.slane %v4425, 2
      %v4427 = vadd.f32 %v4425, %v4426
      %v4428 = vrot.slane %v4427, 1
      %v4429 = vadd.f32 %v4427, %v4428
      %v4430 = vsel %vm4231, %v444, 0.0
      %v4431 = vrot.slane %v4430, 4
      %v4432 = vadd.f32 %v4430, %v4431
      %v4433 = vrot.slane %v4432, 2
      %v4434 = vadd.f32 %v4432, %v4433
      %v4435 = vrot.slane %v4434, 1
      %v4436 = vadd.f32 %v4434, %v4435
      %v4437 = vsel %vm4231, %v446, 0.0
      %v4438 = vrot.slane %v4437, 4
      %v4439 = vadd.f32 %v4437, %v4438
      %v4440 = vrot.slane %v4439, 2
      %v4441 = vadd.f32 %v4439, %v4440
      %v4442 = vrot.slane %v4441, 1
      %v4443 = vadd.f32 %v4441, %v4442
      %v4444 = vsel %vm4231, %v448, 0.0
      %v4445 = vrot.slane %v4444, 4
      %v4446 = vadd.f32 %v4444, %v4445
      %v4447 = vrot.slane %v4446, 2
      %v4448 = vadd.f32 %v4446, %v4447
      %v4449 = vrot.slane %v4448, 1
      %v4450 = vadd.f32 %v4448, %v4449
      %v4451 = vsel %vm4231, %v450, 0.0
      %v4452 = vrot.slane %v4451, 4
      %v4453 = vadd.f32 %v4451, %v4452
      %v4454 = vrot.slane %v4453, 2
      %v4455 = vadd.f32 %v4453, %v4454
      %v4456 = vrot.slane %v4455, 1
      %v4457 = vadd.f32 %v4455, %v4456
      %v4458 = vsel %vm4231, %v452, 0.0
      %v4459 = vrot.slane %v4458, 4
      %v4460 = vadd.f32 %v4458, %v4459
      %v4461 = vrot.slane %v4460, 2
      %v4462 = vadd.f32 %v4460, %v4461
      %v4463 = vrot.slane %v4462, 1
      %v4464 = vadd.f32 %v4462, %v4463
      %v4465 = vsel %vm4231, %v454, 0.0
      %v4466 = vrot.slane %v4465, 4
      %v4467 = vadd.f32 %v4465, %v4466
      %v4468 = vrot.slane %v4467, 2
      %v4469 = vadd.f32 %v4467, %v4468
      %v4470 = vrot.slane %v4469, 1
      %v4471 = vadd.f32 %v4469, %v4470
      %v4472 = vmax.f32 %v4422, 1e-13
      %v4473 = vmax.f32 %v4429, 1e-13
      %v4474 = vmax.f32 %v4436, 1e-13
      %v4475 = vmax.f32 %v4443, 1e-13
      %v4476 = vmax.f32 %v4450, 1e-13
      %v4477 = vmax.f32 %v4457, 1e-13
      %v4478 = vmax.f32 %v4464, 1e-13
      %v4479 = vmax.f32 %v4471, 1e-13
      %4481 = vset.pattern.permute.xlu0 0
      %4482 = vperm.xlu0 %4481, %v4472
      %v4483 = vpop.permute.xlu0 %4482
      %4486 = vset.pattern.permute.xlu0 0
      %4487 = vperm.xlu0 %4486, %v4473
      %v4488 = vpop.permute.xlu0 %4487
      %4491 = vset.pattern.permute.xlu0 0
      %4492 = vperm.xlu0 %4491, %v4474
      %v4493 = vpop.permute.xlu0 %4492
      %4496 = vset.pattern.permute.xlu0 0
      %4497 = vperm.xlu0 %4496, %v4475
      %v4498 = vpop.permute.xlu0 %4497
      %4501 = vset.pattern.permute.xlu0 0
      %4502 = vperm.xlu0 %4501, %v4476
      %v4503 = vpop.permute.xlu0 %4502
      %4506 = vset.pattern.permute.xlu0 0
      %4507 = vperm.xlu0 %4506, %v4477
      %v4508 = vpop.permute.xlu0 %4507
      %4511 = vset.pattern.permute.xlu0 0
      %4512 = vperm.xlu0 %4511, %v4478
      %v4513 = vpop.permute.xlu0 %4512
      %4516 = vset.pattern.permute.xlu0 0
      %4517 = vperm.xlu0 %4516, %v4479
      %v4518 = vpop.permute.xlu0 %4517
      %v4520 = vrcp.pop %v4483
      %v4521 = vmul.f32 %v4366, %v4520
      %v4522 = vrcp.pop %v4488
      %v4523 = vmul.f32 %v4373, %v4522
      %v4524 = vrcp.pop %v4493
      %v4525 = vmul.f32 %v4380, %v4524
      %v4526 = vrcp.pop %v4498
      %v4527 = vmul.f32 %v4387, %v4526
      %v4528 = vrcp.pop %v4503
      %v4529 = vmul.f32 %v4394, %v4528
      %v4530 = vrcp.pop %v4508
      %v4531 = vmul.f32 %v4401, %v4530
      %v4532 = vrcp.pop %v4513
      %v4533 = vmul.f32 %v4408, %v4532
      %v4534 = vrcp.pop %v4518
      %v4535 = vmul.f32 %v4415, %v4534
      %v4536 = vld [vmem:[%s386] sm:$0x1]
      %v4537 = vld [vmem:[%s386 + $0x1] sm:$0x1]
      %v4538 = vld [vmem:[%s386 + $0x2] sm:$0x1]
      %v4539 = vld [vmem:[%s386 + $0x3] sm:$0x1]
      %v4540 = vld [vmem:[%s386 + $0x4] sm:$0x1]
      %v4541 = vld [vmem:[%s386 + $0x5] sm:$0x1]
      %v4542 = vld [vmem:[%s386 + $0x6] sm:$0x1]
      %v4543 = vld [vmem:[%s386 + $0x7] sm:$0x1]
      %v4552 = vcombine.low %v4536, %v4537
      %v4553 = vcombine.low %v4538, %v4539
      %v4554 = vcombine.low %v4540, %v4541
      %v4555 = vcombine.low %v4542, %v4543
      %v4557 = vunpack.c.l.s4 1966171168
      %v4558 = vunpack.c.0.s8 %v4557
      %v4559 = vlaneseq
      %v4560 = vshrl.u32 %v4559, 7
      %v4561 = vsub.s32 %v4558, %v4560
      %v4562 = vrot.slane %v4552, %v4561
      %v4564 = vunpack.c.l.s4 1966171168
      %v4565 = vunpack.c.0.s8 %v4564
      %v4566 = vlaneseq
      %v4567 = vshrl.u32 %v4566, 7
      %v4568 = vsub.s32 %v4565, %v4567
      %v4569 = vrot.slane %v4553, %v4568
      %v4571 = vunpack.c.l.s4 1966171168
      %v4572 = vunpack.c.0.s8 %v4571
      %v4573 = vlaneseq
      %v4574 = vshrl.u32 %v4573, 7
      %v4575 = vsub.s32 %v4572, %v4574
      %v4576 = vrot.slane %v4554, %v4575
      %v4578 = vunpack.c.l.s4 1966171168
      %v4579 = vunpack.c.0.s8 %v4578
      %v4580 = vlaneseq
      %v4581 = vshrl.u32 %v4580, 7
      %v4582 = vsub.s32 %v4579, %v4581
      %v4583 = vrot.slane %v4555, %v4582
      %v4584 = vcombine.low %v4562, %v4569
      %v4585 = vcombine.low %v4576, %v4583
      %v4587 = vunpack.c.l.s4 1966171168
      %v4588 = vunpack.c.0.s8 %v4587
      %v4589 = vlaneseq
      %v4590 = vshrl.u32 %v4589, 7
      %v4591 = vsub.s32 %v4588, %v4590
      %v4592 = vrot.slane %v4584, %v4591
      %v4594 = vunpack.c.l.s4 1966171168
      %v4595 = vunpack.c.0.s8 %v4594
      %v4596 = vlaneseq
      %v4597 = vshrl.u32 %v4596, 7
      %v4598 = vsub.s32 %v4595, %v4597
      %v4599 = vrot.slane %v4585, %v4598
      %v4600 = vcombine.low %v4592, %v4599
      %vm4610 = vcmask 1041409
      %v4611 = vsel %vm4610, %v4339, %v4337
      %vm4612 = vcmask 1042434
      %v4613 = vsel %vm4612, %v4341, %v4611
      %vm4614 = vcmask 1043459
      %v4615 = vsel %vm4614, %v4343, %v4613
      %vm4616 = vcmask 1044484
      %v4617 = vsel %vm4616, %v4345, %v4615
      %vm4618 = vcmask 1045509
      %v4619 = vsel %vm4618, %v4347, %v4617
      %vm4620 = vcmask 1046534
      %v4621 = vsel %vm4620, %v4349, %v4619
      %vm4622 = vcmask 1047559
      %v4623 = vsel %vm4622, %v4351, %v4621
      %4624 = vrot.lane.b32.xlu0 %v4623, 32
      %v4625 = vpop.permute.xlu0 %4624
      %v4635 = vsel %vm4610, %v4523, %v4521
      %v4636 = vsel %vm4612, %v4525, %v4635
      %v4637 = vsel %vm4614, %v4527, %v4636
      %v4638 = vsel %vm4616, %v4529, %v4637
      %v4639 = vsel %vm4618, %v4531, %v4638
      %v4640 = vsel %vm4620, %v4533, %v4639
      %v4641 = vsel %vm4622, %v4535, %v4640
      %4642 = vrot.lane.b32.xlu0 %v4641, 64
      %v4643 = vpop.permute.xlu0 %4642
      %v4645 = vsel %vm466, %v4600, %v4625
      %v4646 = vsel %vm468, %v4645, %v4643
      %v4647 = vsel %vm3487, %v4646, 0.0
      %4648 = vadd.xlane.f32.xlu0 %v4647
      %v4649 = vpop.xlane.xlu0 %4648
      %v4650 = vrcp.pop 96.0
      %v4651 = vmul.f32 %v4649, %v4650
      %v4652 = vsub.f32 %v4646, %v4651
      %v4653 = vmul.f32 %v4652, %v4652
      %v4654 = vsel %vm3487, %v4653, 0.0
      %4655 = vadd.xlane.f32.xlu0 %v4654
      %v4656 = vpop.xlane.xlu0 %4655
      %v4657 = vmul.f32 %v4656, %v4650
      %v4658 = vadd.f32 %v4657, 1e-05
      %v4659 = vrsqrt.pop %v4658
      %v4660 = vmul.f32 %v4652, %v4659
      %v4661 = vlaneseq
      %v4662 = vshrl.u32 %v4661, 7
      %v4663 = vsub.s32 7, %v4662
      %v4664 = vrot.slane %v469, %v4663
      %v4665 = vmul.f32 %v4660, %v4664
      %v4666 = vlaneseq
      %v4667 = vshrl.u32 %v4666, 7
      %v4668 = vsub.s32 2, %v4667
      %v4669 = vrot.slane %v471, %v4668
      %v4670 = vadd.f32 %v4665, %v4669
      %v4671 = vpack.c.bf16 %v4670, %v4670
      %v4672 = vld [vmem:[%s7] sm:$0xf]
      %v4673 = vld [vmem:[%s7 + $0x4] sm:$0xf]
      %v4674 = vld [vmem:[%s7 + $0x8] sm:$0xf]
      %v4675 = vld [vmem:[%s7 + $0xc] sm:$0xf]
      %v4676 = vld [vmem:[%s7 + $0x10] sm:$0xf]
      %v4677 = vld [vmem:[%s7 + $0x14] sm:$0xf]
      %v4678 = vld [vmem:[%s7 + $0x18] sm:$0xf]
      %v4679 = vld [vmem:[%s7 + $0x1c] sm:$0xf]
      %v4680 = vld [vmem:[%s7 + $0x20] sm:$0xf]
      %v4681 = vld [vmem:[%s7 + $0x24] sm:$0xf]
      %v4682 = vld [vmem:[%s7 + $0x28] sm:$0xf]
      %v4683 = vld [vmem:[%s7 + $0x2c] sm:$0xf]
      %v4684 = vld [vmem:[%s8] sm:$0x1]
      %v4686 = vlaneseq
      %v4687 = vshrl.u32 %v4686, 7
      %v4688 = vsub.s32 0, %v4687
      %v4689 = vrot.slane %v4684, %v4688
      %v4703 = vunpack.c.l.b16 %v4672
      %v4704 = vunpack.c.l.b16 %v4673
      %v4705 = vunpack.c.l.b16 %v4674
      %v4706 = vunpack.c.l.b16 %v4675
      %v4707 = vunpack.c.l.b16 %v4676
      %v4708 = vunpack.c.l.b16 %v4677
      %v4709 = vunpack.c.l.b16 %v4678
      %v4710 = vunpack.c.l.b16 %v4679
      %v4711 = vunpack.c.l.b16 %v4680
      %v4712 = vunpack.c.l.b16 %v4681
      %v4713 = vunpack.c.l.b16 %v4682
      %v4714 = vunpack.c.l.b16 %v4683
      %v4715 = vpack.c.b16 %v4704, %v4703
      %v4716 = vpack.c.b16 %v4706, %v4705
      %v4717 = vpack.c.b16 %v4708, %v4707
      %v4718 = vpack.c.b16 %v4710, %v4709
      %v4719 = vpack.c.b16 %v4712, %v4711
      %v4720 = vpack.c.b16 %v4714, %v4713
      %v4728 = vsel %vm3487, %v4671, 0
      %4730 = vmatprep.subr.bf16.mxu0 0
      %4731 = vmatpush1.bf16.msra.mxu0 0
      %4732 = vmatprep.subr.bf16.mxu0 0
      %4733 = vmatpush1.bf16.msra.mxu0 0
      %4734 = vmatprep.subr.bf16.mxu0 0
      %4735 = vmatpush1.bf16.msra.mxu0 %v4720
      %4736 = vmatprep.subr.bf16.mxu0 0
      %4737 = vmatpush1.bf16.msra.mxu0 %v4719
      %4738 = vmatprep.subr.bf16.mxu0 0
      %4739 = vmatpush1.bf16.msra.mxu0 %v4718
      %4740 = vmatprep.subr.bf16.mxu0 0
      %4741 = vmatpush1.bf16.msra.mxu0 %v4717
      %4742 = vmatprep.subr.bf16.mxu0 0
      %4743 = vmatpush1.bf16.msra.mxu0 %v4716
      %4744 = vmatprep.subr.bf16.mxu0 0
      %4745 = vmatpush1.bf16.msra.mxu0 %v4715
      %4746 = vmatprep.subr.bf16.mxu0 0
      %4747 = vmatpush2.bf16.msra.mxu0 0
      %4748 = vmatprep.subr.bf16.mxu0 0
      %4749 = vmatpush2.bf16.msra.mxu0 0
      %4750 = vmatprep.subr.bf16.mxu0 0
      %4751 = vmatpush2.bf16.msra.mxu0 0
      %4752 = vmatprep.subr.bf16.mxu0 0
      %4753 = vmatpush2.bf16.msra.mxu0 0
      %4754 = vmatprep.subr.bf16.mxu0 0
      %4755 = vmatpush2.bf16.msra.mxu0 0
      %4756 = vmatprep.subr.bf16.mxu0 0
      %4757 = vmatpush2.bf16.msra.mxu0 0
      %4758 = vmatprep.subr.bf16.mxu0 0
      %4759 = vmatpush2.bf16.msra.mxu0 0
      %4760 = vmatprep.subr.bf16.mxu0 0
      %4761 = vmatpush2.bf16.msra.mxu0 0
      %4762 = vmatprep.mubr.bf16.mxu0 0
      %4763 = vmatmul.mubr.bf16.gmra.mxu0 %v4728
      %v4764 = vpop.f32.mrf.mxu0
      %v4765 = vadd.f32 %v4689, %v4764
      %v4766 = vpop.f32.mrf.mxu0
      %v4767 = vpop.f32.mrf.mxu0
      %v4768 = vpop.f32.mrf.mxu0
      %4769 = vdwg.mxu0
      %v4771 = vcombine.high %v4765, %v4765
      %v4773 = vunpack.c.l.s4 1966171168
      %v4774 = vunpack.c.0.s8 %v4773
      %v4775 = vlaneseq
      %v4776 = vshrl.u32 %v4775, 7
      %v4777 = vsub.s32 %v4774, %v4776
      %v4778 = vrot.slane %v4765, %v4777
      %v4780 = vunpack.c.l.s4 1966171168
      %v4781 = vunpack.c.0.s8 %v4780
      %v4782 = vlaneseq
      %v4783 = vshrl.u32 %v4782, 7
      %v4784 = vsub.s32 %v4781, %v4783
      %v4785 = vrot.slane %v4771, %v4784
      %v4786 = vcombine.high %v4778, %v4778
      %v4787 = vcombine.high %v4785, %v4785
      %v4789 = vunpack.c.l.s4 1966171168
      %v4790 = vunpack.c.0.s8 %v4789
      %v4791 = vlaneseq
      %v4792 = vshrl.u32 %v4791, 7
      %v4793 = vsub.s32 %v4790, %v4792
      %v4794 = vrot.slane %v4778, %v4793
      %v4796 = vunpack.c.l.s4 1966171168
      %v4797 = vunpack.c.0.s8 %v4796
      %v4798 = vlaneseq
      %v4799 = vshrl.u32 %v4798, 7
      %v4800 = vsub.s32 %v4797, %v4799
      %v4801 = vrot.slane %v4785, %v4800
      %v4803 = vunpack.c.l.s4 1966171168
      %v4804 = vunpack.c.0.s8 %v4803
      %v4805 = vlaneseq
      %v4806 = vshrl.u32 %v4805, 7
      %v4807 = vsub.s32 %v4804, %v4806
      %v4808 = vrot.slane %v4786, %v4807
      %v4810 = vunpack.c.l.s4 1966171168
      %v4811 = vunpack.c.0.s8 %v4810
      %v4812 = vlaneseq
      %v4813 = vshrl.u32 %v4812, 7
      %v4814 = vsub.s32 %v4811, %v4813
      %v4815 = vrot.slane %v4787, %v4814
      %v4816 = vcombine.high %v4794, %v4794
      %v4817 = vcombine.high %v4801, %v4801
      %v4818 = vcombine.high %v4808, %v4808
      %v4819 = vcombine.high %v4815, %v4815
      %vm4828 = vcmask 16384
      %4829 = vst.msk [vmem:[%s404] sm:$0x1] %vm4828, %v4794
      %4830 = vst.msk [vmem:[%s404 + $0x1] sm:$0x1] %vm4828, %v4808
      %4831 = vst.msk [vmem:[%s404 + $0x2] sm:$0x1] %vm4828, %v4816
      %4832 = vst.msk [vmem:[%s404 + $0x3] sm:$0x1] %vm4828, %v4818
      %4833 = vst.msk [vmem:[%s404 + $0x4] sm:$0x1] %vm4828, %v4801
      %4834 = vst.msk [vmem:[%s404 + $0x5] sm:$0x1] %vm4828, %v4815
      %4835 = vst.msk [vmem:[%s404 + $0x6] sm:$0x1] %vm4828, %v4817
      %4836 = vst.msk [vmem:[%s404 + $0x7] sm:$0x1] %vm4828, %v4819
      %s4837 = smul.u32 8, %s22
      %p4838 = scmp.lt.s32.totalorder %s4837, 15
      %s4839 = scalar_select %p4838, %s4837, 15
      %s4840 = scalar_lea.vmem %s10, %s4839
      // Predicated region
      $region61: #{sentence_level_net_forward.1} parent=59 // pred_check
        %p4841 = pneg %p265
      $region62: #{sentence_level_net_forward.1} parent=59 // pred_check_branch
        %4843 = sbr.rel (%p4841) target = $region64
      $region63: #{sentence_level_net_forward.1} parent=59 // pred_region
        %s4844 = smul.u32 8, %s22
      $region64: #{sentence_level_net_forward.1} parent=59 // pred_fallthru
        _
    $region60: #{sentence_level_net_forward.1} parent=5 // pred_fallthru
      _
    %p4845 = scmp.le.s32.totalorder 2, %s17
    // Predicated region
    $region65: #{sentence_level_net_forward.1} parent=5 // pred_check
      %p4846 = pneg %p4845
    $region66: #{sentence_level_net_forward.1} parent=5 // pred_check_branch
      %4848 = sbr.rel (%p4846) target = $region68
    $region67: #{sentence_level_net_forward.1} parent=5 // pred_region
      %s4849 = ssub.s32 %s17, 2
      // Predicated region
      $region69: #{sentence_level_net_forward.1} parent=67 // pred_check
        %p4850 = pneg %p271
      $region70: #{sentence_level_net_forward.1} parent=67 // pred_check_branch
        %4852 = sbr.rel (%p4850) target = $region72
      $region71: #{sentence_level_net_forward.1} parent=67 // pred_region
        %s4853 = smul.u32 8, %s23
        %p4854 = scmp.lt.s32.totalorder %s4853, 15
        %s4855 = scalar_select %p4854, %s4853, 15
        %s4856 = scalar_lea.vmem %s10, %s4855
      $region72: #{sentence_level_net_forward.1} parent=67 // pred_fallthru
        _
    $region68: #{sentence_level_net_forward.1} parent=5 // pred_fallthru
      _
  $region6: #{sentence_level_net_forward.1} parent=0 // loop_footer
    %s21 = sadd.s32 1, %s17
  $region7: #{sentence_level_net_forward.1} parent=0 // loop_footer_branch
    %16 = sbr.rel target = $region3
  $region8: #{sentence_level_net_forward.1} parent=0 // loop_exit
    _

</llo_original>
